<compile_context>
chip_gen: v5e
topology: v5e:2x2
jax: 0.10.0
libtpu: 0.0.40
codegen_flags: <defaults>
</compile_context>

<pallas_src>
import numpy as np
import jax
import jax.numpy as jnp
from jax.experimental import pallas as pl
from jax.experimental.pallas import tpu as pltpu

IN_DIM = 16          # node feature dim
EDGE_IN_DIM = 8      # edge feature dim
HIDDEN = 32          # hidden_dim
N_ITER = 4           # n_iter
SND = 6 * HIDDEN     # LinearBlock.snd_n_feats

EPS = 1e-5
ALPHA = 0.6          # GlobalAttentionPool.alpha
NEG_SLOPE = 0.2      # GAT LeakyReLU slope
NEG_INF = -1e30

# ----------------------------- packed-parameter layout -----------------------------
# One [N_VEC_ROWS, SND] f32 slab; each row holds one bias / BN-gamma / BN-beta / misc
# vector left-justified in the lanes.  Row order is fixed here and mirrored in
# prepare_params().
_VEC_ROWS = [
    ("mlp_b1", HIDDEN), ("mlp_b2", HIDDEN), ("mlp_g1", HIDDEN), ("mlp_be1", HIDDEN),
    ("mlp_b3", HIDDEN), ("mlp_g2", HIDDEN), ("mlp_be2", HIDDEN),
    ("b_gat", HIDDEN), ("b_gout", HIDDEN), ("a_bias", N_ITER), ("c_src", HIDDEN),
    ("lb_g1", HIDDEN), ("lb_be1", HIDDEN), ("lb_b5", HIDDEN),
    ("lb_b1", SND), ("lb_g2", SND), ("lb_be2", SND), ("lb_b2", SND),
    ("lb_g3", SND), ("lb_be3", SND), ("lb_b3", SND),
    ("lb_g4", SND), ("lb_be4", SND), ("lb_b4", SND),
    ("lb_g5", SND), ("lb_be5", SND),
]
VEC_ROW = {name: i for i, (name, _) in enumerate(_VEC_ROWS)}
VEC_WIDTH = dict(_VEC_ROWS)
N_VEC_ROWS = len(_VEC_ROWS)

# True scalars live in SMEM.
_SCALARS = ["mlp_p1", "mlp_p2", "b_gcn", "b_f", "lb_p2", "lb_p3", "lb_p4", "lb_p5"]
SCAL_IDX = {n: i for i, n in enumerate(_SCALARS)}


# ----------------------------- in-kernel helpers -----------------------------

def _lin(x, w_ref, bias=None):
    # weights are pre-transposed to [in, out] in the wrapper -> no .T in-kernel
    y = jnp.dot(x, w_ref[...], preferred_element_type=jnp.float32)
    if bias is not None:
        y = y + bias
    return y


def _bn_train(x, gamma, beta):
    # BatchNorm1d in train mode (fresh module): batch statistics, biased variance.
    mean = jnp.mean(x, axis=0, keepdims=True)
    var = jnp.mean(jnp.square(x - mean), axis=0, keepdims=True)
    return gamma * (x - mean) * jax.lax.rsqrt(var + EPS) + beta


def _prelu(x, a):
    # a is a traced scalar (PyTorch PReLU with a single parameter)
    return jnp.where(x >= 0, x, a * x)


# --------------------------------- fused kernel --------------------------------

def drug_encoder_kernel(
        # data / graph structure
        x_ref, ea_ref, ssrc_ref, sdst_ref, sdstT_ref, alg_ref, agcn_ref, p_ref, pt_ref,
        # packed parameters
        vec_ref, sca_ref,
        # weights (all pre-transposed to [in, out])
        m_w1, m_w2, m_w3, wu, wv, we, wbig, wgout, a_w,
        lb_w1, lb_w2, lb_w3, lb_w4, lb_w5,
        # output
        o_ref):
    f32 = jnp.float32

    def vrow(name):                      # [1, width] slice of the packed slab
        r = VEC_ROW[name]
        return vec_ref[r:r + 1, :VEC_WIDTH[name]]

    def sca(name):                       # scalar from SMEM
        return sca_ref[SCAL_IDX[name]]

    # ---------------- DrugEncoder.mlp : data.x = mlp(data.x) ----------------
    h = _prelu(_lin(x_ref[...], m_w1, vrow("mlp_b1")), sca("mlp_p1"))
    h = _bn_train(_lin(h, m_w2, vrow("mlp_b2")), vrow("mlp_g1"), vrow("mlp_be1"))
    h = _prelu(h, sca("mlp_p2"))
    h = _bn_train(_lin(h, m_w3, vrow("mlp_b3")), vrow("mlp_g2"), vrow("mlp_be2"))   # [N,H]

    # ---- edge_attr = (lin_u(x)[src] + lin_v(x)[dst] + lin_edge(ea)) / 3 ----
    eu = jnp.dot(h, wu[...], preferred_element_type=f32)                 # [N,H]
    ev = jnp.dot(h, wv[...], preferred_element_type=f32)                 # [N,H]
    edge_attr = (jnp.dot(ssrc_ref[...], eu, preferred_element_type=f32)
                 + jnp.dot(sdst_ref[...], ev, preferred_element_type=f32)
                 + jnp.dot(ea_ref[...], we[...], preferred_element_type=f32)
                 ) * (1.0 / 3.0)                                          # [E,H]

    # ---------------- hoisted loop invariants ----------------
    E = alg_ref.shape[0]
    A_lg = alg_ref[...]                                    # [E,E] line-graph scatter-add
    A_gcn = agcn_ref[...]                                  # [E,E] GCN-normalized adjacency
    row_ids = jax.lax.broadcasted_iota(jnp.int32, (E, E), 0)
    col_ids = jax.lax.broadcasted_iota(jnp.int32, (E, E), 1)
    # GAT adjacency mask (+ self loops), derived from the exact 0/1 structure matrix
    mask_add = jnp.where((A_lg > 0.0) | (row_ids == col_ids), 0.0, NEG_INF)
    P = p_ref[...]                                         # [B,E] edge->graph one-hot
    Pt = pt_ref[...]                                       # [E,B]
    pt_bool = Pt > 0.0
    W_big = wbig[...]                                      # [H, H+3] = [Wgat^T | wgcn | wf | Wgat^T@a_dst]
    Wg = wgout[...]                                        # [H,H]
    a_param = a_w[...]                                     # [H, n_iter]
    c_src = vrow("c_src")                                  # [1,H] composed a_src weight row
    b_gat = vrow("b_gat")
    b_gout = vrow("b_gout")
    b_gcn = sca("b_gcn")
    b_f = sca("b_f")

    out = edge_attr
    out_list = []
    s_cols = []
    for n in range(N_ITER):
        # out = edge_attr + scatter_add(out[lg[0]], lg[1])
        out = edge_attr + jnp.dot(A_lg, out, preferred_element_type=f32)

        # ---- GlobalAttentionPool(out, line_graph_edge_index, edge_index_batch) ----
        # one fused matmul: GAT features + GCN gate + Linear gate + a_dst
        z = jnp.dot(out, W_big, preferred_element_type=f32)              # [E, H+3]
        wx = z[:, :HIDDEN]                                                # [E,H]   (GAT Wx)
        g3 = z[:, HIDDEN:HIDDEN + 3]                                      # [E,3]
        xw_gcn = g3[:, 0:1]                                               # GCN gate pre-prop
        score_f = g3[:, 1:2] + b_f                                        # Linear(H,1) gate
        a_dst = g3[:, 2:3]                                                # (Wx) . a_dst

        score_s = jnp.dot(A_gcn, xw_gcn, preferred_element_type=f32) + b_gcn
        score = ALPHA * score_s + (1.0 - ALPHA) * score_f                 # [E,1]

        # GATConv(H, H, heads=1): a_src row computed on the MXU (trans-B matmul, no XLU .T)
        a_src_row = jax.lax.dot_general(
            c_src, out, dimension_numbers=(((1,), (1,)), ((), ())),
            preferred_element_type=f32)                                   # [1,E]
        logits = a_dst + a_src_row                                        # [E,E] row=dst
        logits = jnp.where(logits >= 0, logits, NEG_SLOPE * logits)       # LeakyReLU
        logits = logits + mask_add
        logits = logits - jnp.max(logits, axis=1, keepdims=True)
        ez = jnp.exp(logits)
        attn = ez * pl.reciprocal(jnp.sum(ez, axis=1, keepdims=True), approx=True)
        x_gat = jnp.dot(attn, wx, preferred_element_type=f32) + b_gat     # [E,H]

        # segment softmax over edge batches, folded into global_add_pool:
        #   gout[b] = (1/sum_{e in b} exp(score_e - max_b)) * sum_{e in b} exp(score_e - max_b) x_gat[e]
        m2 = jnp.where(pt_bool, score, NEG_INF)                           # [E,B]
        seg_max = jnp.max(m2, axis=0, keepdims=True)                      # [1,B] per-graph max
        e_max = jnp.sum(jnp.where(pt_bool, seg_max, 0.0), axis=1, keepdims=True)  # [E,1]
        ex = jnp.exp(score - e_max)                                       # [E,1]
        seg_sum = jnp.dot(P, ex, preferred_element_type=f32)              # [B,1] (>= 1)
        gout = (jnp.dot(P, x_gat * ex, preferred_element_type=f32)
                * pl.reciprocal(seg_sum, approx=True))                    # [B,H]

        gout_t = jnp.tanh(jnp.dot(gout, Wg, preferred_element_type=f32) + b_gout)
        s_n = jnp.dot(gout_t, a_param[:, n:n + 1], preferred_element_type=f32)    # [B,1]

        out_list.append(out)
        s_cols.append(s_n)

    # scores = softmax((gout_all * a).sum(1) + a_bias, dim=-1)
    scores = jnp.concatenate(s_cols, axis=1) + vrow("a_bias")             # [B, n_iter]
    scores = scores - jnp.max(scores, axis=1, keepdims=True)
    esc = jnp.exp(scores)
    scores = esc * pl.reciprocal(jnp.sum(esc, axis=1, keepdims=True), approx=True)

    # repeat_interleave by per-graph edge counts == per-edge gather of its graph row
    edge_scores = jnp.dot(Pt, scores, preferred_element_type=f32)         # [E, n_iter]
    out_w = out_list[0] * edge_scores[:, 0:1]
    for n in range(1, N_ITER):
        out_w = out_w + out_list[n] * edge_scores[:, n:n + 1]

    # x = data.x + scatter_add(out, edge_index[1])
    node_agg = jnp.dot(sdstT_ref[...], out_w, preferred_element_type=f32)  # [N,H]
    xp = h + node_agg

    # ---------------- LinearBlock ----------------
    xp = _lin(_bn_train(xp, vrow("lb_g1"), vrow("lb_be1")), lb_w1, vrow("lb_b1"))      # lin1
    t2 = _lin(_prelu(_bn_train(xp, vrow("lb_g2"), vrow("lb_be2")), sca("lb_p2")),
              lb_w2, vrow("lb_b2"))                                                    # lin2
    t3 = _lin(_prelu(_bn_train(t2, vrow("lb_g3"), vrow("lb_be3")), sca("lb_p3")),
              lb_w3, vrow("lb_b3"))                                                    # lin3
    xp = (t3 + xp) * 0.5
    t4 = _lin(_prelu(_bn_train(xp, vrow("lb_g4"), vrow("lb_be4")), sca("lb_p4")),
              lb_w4, vrow("lb_b4"))                                                    # lin4
    xp = (t4 + xp) * 0.5
    xp = _lin(_prelu(_bn_train(xp, vrow("lb_g5"), vrow("lb_be5")), sca("lb_p5")),
              lb_w5, vrow("lb_b5"))                                                    # lin5
    o_ref[...] = xp


# ------------------------------- pallas glue ----------------------------------

def prepare_params(p):
    """Pre-transpose ([out,in] -> [in,out]), fuse, and pack parameters outside the kernel."""
    t = jnp.transpose
    wgat_t = t(p["wgat"])                                            # [H,H]
    adst_c = jnp.dot(wgat_t, t(p["adst"]))                           # [H,1]  Wgat^T @ a_dst
    c_src = jnp.reshape(jnp.dot(wgat_t, t(p["asrc"])), (1, HIDDEN))  # [1,H]  (Wgat^T @ a_src)^T
    # fused per-iteration weight: one matmul gives Wx, GCN gate, Linear gate, a_dst
    wbig = jnp.concatenate([wgat_t, t(p["wgcn"]), t(p["wf"]), adst_c], axis=1)  # [H, H+3]

    vec_vals = {
        "mlp_b1": p["mlp_b1"], "mlp_b2": p["mlp_b2"], "mlp_g1": p["mlp_g1"],
        "mlp_be1": p["mlp_be1"], "mlp_b3": p["mlp_b3"], "mlp_g2": p["mlp_g2"],
        "mlp_be2": p["mlp_be2"], "b_gat": p["bgat"], "b_gout": p["bgout"],
        "a_bias": p["a_bias"], "c_src": c_src,
        "lb_g1": p["lb_g1"], "lb_be1": p["lb_be1"], "lb_b5": p["lb_b5"],
        "lb_b1": p["lb_b1"], "lb_g2": p["lb_g2"], "lb_be2": p["lb_be2"], "lb_b2": p["lb_b2"],
        "lb_g3": p["lb_g3"], "lb_be3": p["lb_be3"], "lb_b3": p["lb_b3"],
        "lb_g4": p["lb_g4"], "lb_be4": p["lb_be4"], "lb_b4": p["lb_b4"],
        "lb_g5": p["lb_g5"], "lb_be5": p["lb_be5"],
    }
    rows = []
    for name, width in _VEC_ROWS:
        v = jnp.reshape(vec_vals[name], (1, -1)).astype(jnp.float32)
        assert v.shape[1] == width, (name, v.shape, width)
        rows.append(jnp.pad(v, ((0, 0), (0, SND - width))))
    vec_slab = jnp.concatenate(rows, axis=0)                          # [N_VEC_ROWS, SND]

    sca_vals = {"mlp_p1": p["mlp_p1"], "mlp_p2": p["mlp_p2"],
                "b_gcn": p["bgcn"], "b_f": p["bf"],
                "lb_p2": p["lb_p2"], "lb_p3": p["lb_p3"],
                "lb_p4": p["lb_p4"], "lb_p5": p["lb_p5"]}
    sca_vec = jnp.concatenate(
        [jnp.reshape(sca_vals[n], (1,)).astype(jnp.float32) for n in _SCALARS], axis=0)  # [8]

    weights = [
        t(p["mlp_w1"]), t(p["mlp_w2"]), t(p["mlp_w3"]),
        t(p["wu"]), t(p["wv"]), t(p["we"]),
        wbig, t(p["wgout"]), p["a"],
        t(p["lb_w1"]), t(p["lb_w2"]), t(p["lb_w3"]), t(p["lb_w4"]), t(p["lb_w5"]),
    ]
    return vec_slab, sca_vec, weights


def drug_encoder_forward(x, edge_attr, mats, p):
    N = x.shape[0]
    vec_slab, sca_vec, weights = prepare_params(p)
    args = [x, edge_attr, mats["S_src"], mats["S_dst"], mats["S_dst_T"],
            mats["A_lg"], mats["A_gcn"], mats["P"], mats["P_T"],
            vec_slab, sca_vec] + weights
    vmem = pl.BlockSpec(memory_space=pltpu.MemorySpace.VMEM)
    smem = pl.BlockSpec(memory_space=pltpu.MemorySpace.SMEM)
    in_specs = [vmem] * 10 + [smem] + [vmem] * len(weights)
    return pl.pallas_call(
        drug_encoder_kernel,
        out_shape=jax.ShapeDtypeStruct((N, HIDDEN), jnp.float32),
        in_specs=in_specs,
        out_specs=vmem,
        compiler_params=pltpu.CompilerParams(vmem_limit_bytes=32 * 1024 * 1024),
    )(*args)


# ------------------------------ parameter init ---------------------------------

def init_params(key):
    ks = iter(jax.random.split(key, 64))

    def lin_w(out_f, in_f):
        b = 1.0 / np.sqrt(in_f)
        return jax.random.uniform(next(ks), (out_f, in_f), jnp.float32, -b, b)

    def lin_b(out_f, in_f):
        b = 1.0 / np.sqrt(in_f)
        return jax.random.uniform(next(ks), (1, out_f), jnp.float32, -b, b)

    ones = lambda n: jnp.ones((1, n), jnp.float32)
    zeros = lambda n: jnp.zeros((1, n), jnp.float32)
    prelu = lambda: jnp.full((1, 1), 0.25, jnp.float32)

    p = {}
    # DrugEncoder.mlp
    p["mlp_w1"], p["mlp_b1"] = lin_w(HIDDEN, IN_DIM), lin_b(HIDDEN, IN_DIM)
    p["mlp_p1"] = prelu()
    p["mlp_w2"], p["mlp_b2"] = lin_w(HIDDEN, HIDDEN), lin_b(HIDDEN, HIDDEN)
    p["mlp_g1"], p["mlp_be1"] = ones(HIDDEN), zeros(HIDDEN)
    p["mlp_p2"] = prelu()
    p["mlp_w3"], p["mlp_b3"] = lin_w(HIDDEN, HIDDEN), lin_b(HIDDEN, HIDDEN)
    p["mlp_g2"], p["mlp_be2"] = ones(HIDDEN), zeros(HIDDEN)
    # (DrugEncoder.lin0 is defined but unused in forward; omitted)

    # GSP_DMPNN
    p["wu"] = lin_w(HIDDEN, HIDDEN)
    p["wv"] = lin_w(HIDDEN, HIDDEN)
    p["we"] = lin_w(HIDDEN, EDGE_IN_DIM)

    # GlobalAttentionPool: GCNConv(H,1), Linear(H,1), GATConv(H,H,heads=1)
    p["wgcn"] = lin_w(1, HIDDEN)
    p["bgcn"] = jnp.zeros((1, 1), jnp.float32)
    p["wf"], p["bf"] = lin_w(1, HIDDEN), lin_b(1, HIDDEN)
    p["wgat"] = lin_w(HIDDEN, HIDDEN)
    p["asrc"] = lin_w(1, HIDDEN)
    p["adst"] = lin_w(1, HIDDEN)
    p["bgat"] = zeros(HIDDEN)

    glorot = float(np.sqrt(6.0 / (HIDDEN + N_ITER)))
    p["a"] = jax.random.uniform(next(ks), (HIDDEN, N_ITER), jnp.float32, -glorot, glorot)
    p["wgout"], p["bgout"] = lin_w(HIDDEN, HIDDEN), lin_b(HIDDEN, HIDDEN)
    p["a_bias"] = jnp.zeros((1, N_ITER), jnp.float32)

    # LinearBlock
    p["lb_g1"], p["lb_be1"] = ones(HIDDEN), zeros(HIDDEN)
    p["lb_w1"], p["lb_b1"] = lin_w(SND, HIDDEN), lin_b(SND, HIDDEN)
    for i in (2, 3, 4):
        p[f"lb_g{i}"], p[f"lb_be{i}"] = ones(SND), zeros(SND)
        p[f"lb_p{i}"] = prelu()
        p[f"lb_w{i}"], p[f"lb_b{i}"] = lin_w(SND, SND), lin_b(SND, SND)
    p["lb_g5"], p["lb_be5"] = ones(SND), zeros(SND)
    p["lb_p5"] = prelu()
    p["lb_w5"], p["lb_b5"] = lin_w(HIDDEN, SND), lin_b(HIDDEN, SND)
    return p


# ----------------------------------- main ---------------------------------------

if __name__ == "__main__":
    # Synthetic batch of 2 molecular graphs (4-node directed cycles, both directions).
    n_per_graph, B = 4, 2
    N = B * n_per_graph
    edges = []
    for g in range(B):
        base = g * n_per_graph
        for k in range(n_per_graph):
            u, v = base + k, base + (k + 1) % n_per_graph
            edges.append((u, v))
            edges.append((v, u))
    E = len(edges)                                          # 16 directed edges
    edge_src = np.array([e[0] for e in edges])
    edge_dst = np.array([e[1] for e in edges])
    edge_batch = np.array([0] * (E // 2) + [1] * (E // 2))  # sorted per graph (PyG batching)

    # D-MPNN line graph: edge (u,v) -> edge (v,w), w != u  (no duplicates / self loops)
    lg = []
    for i, (u, v) in enumerate(edges):
        for j, (v2, w) in enumerate(edges):
            if v2 == v and w != u:
                lg.append((i, j))
    lg = np.array(lg, dtype=np.int64)

    S_src = np.zeros((E, N), np.float32); S_src[np.arange(E), edge_src] = 1.0
    S_dst = np.zeros((E, N), np.float32); S_dst[np.arange(E), edge_dst] = 1.0

    A_lg = np.zeros((E, E), np.float32)
    A_lg[lg[:, 1], lg[:, 0]] = 1.0                          # new[dst] += old[src]

    adj_hat = A_lg + np.eye(E, dtype=np.float32)            # + self loops (GCN default)
    deg = adj_hat.sum(axis=1)                               # degree incl. self loop
    dis = 1.0 / np.sqrt(deg)
    A_gcn = (adj_hat * dis[:, None] * dis[None, :]).astype(np.float32)

    P = np.zeros((B, E), np.float32)
    P[edge_batch, np.arange(E)] = 1.0

    mats = {k: jnp.asarray(v) for k, v in dict(
        S_src=S_src, S_dst=S_dst, S_dst_T=S_dst.T, A_lg=A_lg, A_gcn=A_gcn,
        P=P, P_T=P.T).items()}

    key = jax.random.PRNGKey(0)
    kx, ke, kp = jax.random.split(key, 3)
    x = jax.random.normal(kx, (N, IN_DIM), jnp.float32)
    edge_attr = jax.random.normal(ke, (E, EDGE_IN_DIM), jnp.float32)
    params = init_params(kp)

    fwd = jax.jit(drug_encoder_forward)
    out = fwd(x, edge_attr, mats, params)
    out = jax.block_until_ready(out)
    assert out.shape == (N, HIDDEN)
    assert bool(jnp.all(jnp.isfinite(out)))
    print("KERNEL_OK")
</pallas_src>

<mosaic_0001>
module attributes {stable_mosaic.version = 11 : i64} {
  func.func @drug_encoder_kernel(%arg0: memref<8x16xf32, #tpu.memory_space<vmem>>, %arg1: memref<16x8xf32, #tpu.memory_space<vmem>>, %arg2: memref<16x8xf32, #tpu.memory_space<vmem>>, %arg3: memref<16x8xf32, #tpu.memory_space<vmem>>, %arg4: memref<8x16xf32, #tpu.memory_space<vmem>>, %arg5: memref<16x16xf32, #tpu.memory_space<vmem>>, %arg6: memref<16x16xf32, #tpu.memory_space<vmem>>, %arg7: memref<2x16xf32, #tpu.memory_space<vmem>>, %arg8: memref<16x2xf32, #tpu.memory_space<vmem>>, %arg9: memref<26x192xf32, #tpu.memory_space<vmem>>, %arg10: memref<8xf32, #tpu.memory_space<smem>>, %arg11: memref<16x32xf32, #tpu.memory_space<vmem>>, %arg12: memref<32x32xf32, #tpu.memory_space<vmem>>, %arg13: memref<32x32xf32, #tpu.memory_space<vmem>>, %arg14: memref<32x32xf32, #tpu.memory_space<vmem>>, %arg15: memref<32x32xf32, #tpu.memory_space<vmem>>, %arg16: memref<8x32xf32, #tpu.memory_space<vmem>>, %arg17: memref<32x35xf32, #tpu.memory_space<vmem>>, %arg18: memref<32x32xf32, #tpu.memory_space<vmem>>, %arg19: memref<32x4xf32, #tpu.memory_space<vmem>>, %arg20: memref<32x192xf32, #tpu.memory_space<vmem>>, %arg21: memref<192x192xf32, #tpu.memory_space<vmem>>, %arg22: memref<192x192xf32, #tpu.memory_space<vmem>>, %arg23: memref<192x192xf32, #tpu.memory_space<vmem>>, %arg24: memref<192x32xf32, #tpu.memory_space<vmem>>, %arg25: memref<8x32xf32, #tpu.memory_space<vmem>>) attributes {dimension_semantics = [], scalar_prefetch = 0 : i64, scratch_operands = 0 : i64, tpu.core_type = #tpu.core_type<tc>} {
    %c0 = arith.constant 0 : index
    %c0_0 = arith.constant 0 : index
    %0 = vector.load %arg0[%c0, %c0_0] : memref<8x16xf32, #tpu.memory_space<vmem>>, vector<8x16xf32>
    %c0_1 = arith.constant 0 : index
    %c0_2 = arith.constant 0 : index
    %1 = vector.load %arg9[%c0_1, %c0_2] : memref<26x192xf32, #tpu.memory_space<vmem>>, vector<1x32xf32>
    %c0_3 = arith.constant 0 : index
    %c0_4 = arith.constant 0 : index
    %2 = vector.load %arg11[%c0_3, %c0_4] : memref<16x32xf32, #tpu.memory_space<vmem>>, vector<16x32xf32>
    %cst = arith.constant dense<0.000000e+00> : vector<8x32xf32>
    %3 = tpu.matmul %0, %2, %cst {dimension_numbers = #tpu.dot_dimension_numbers<[1], [0], [0], [1], [0, 0, 1, 1], [], []>} : vector<8x16xf32>, vector<16x32xf32>, vector<8x32xf32> -> vector<8x32xf32>
    %4 = vector.broadcast %1 : vector<1x32xf32> to vector<8x32xf32>
    %5 = arith.addf %3, %4 : vector<8x32xf32>
    %c0_5 = arith.constant 0 : index
    %6 = memref.load %arg10[%c0_5] : memref<8xf32, #tpu.memory_space<smem>>
    %cst_6 = arith.constant 0.000000e+00 : f32
    %7 = vector.broadcast %cst_6 : f32 to vector<8x32xf32>
    %8 = arith.cmpf oge, %5, %7 : vector<8x32xf32>
    %9 = vector.broadcast %6 : f32 to vector<8x32xf32>
    %10 = arith.mulf %9, %5 : vector<8x32xf32>
    %11 = arith.select %8, %5, %10 : vector<8x32xi1>, vector<8x32xf32>
    %c1 = arith.constant 1 : index
    %c0_7 = arith.constant 0 : index
    %12 = vector.load %arg9[%c1, %c0_7] : memref<26x192xf32, #tpu.memory_space<vmem>>, vector<1x32xf32>
    %c0_8 = arith.constant 0 : index
    %c0_9 = arith.constant 0 : index
    %13 = vector.load %arg12[%c0_8, %c0_9] : memref<32x32xf32, #tpu.memory_space<vmem>>, vector<32x32xf32>
    %cst_10 = arith.constant dense<0.000000e+00> : vector<8x32xf32>
    %14 = tpu.matmul %11, %13, %cst_10 {dimension_numbers = #tpu.dot_dimension_numbers<[1], [0], [0], [1], [0, 0, 1, 1], [], []>} : vector<8x32xf32>, vector<32x32xf32>, vector<8x32xf32> -> vector<8x32xf32>
    %15 = vector.broadcast %12 : vector<1x32xf32> to vector<8x32xf32>
    %16 = arith.addf %14, %15 : vector<8x32xf32>
    %c2 = arith.constant 2 : index
    %c0_11 = arith.constant 0 : index
    %17 = vector.load %arg9[%c2, %c0_11] : memref<26x192xf32, #tpu.memory_space<vmem>>, vector<1x32xf32>
    %c3 = arith.constant 3 : index
    %c0_12 = arith.constant 0 : index
    %18 = vector.load %arg9[%c3, %c0_12] : memref<26x192xf32, #tpu.memory_space<vmem>>, vector<1x32xf32>
    %cst_13 = arith.constant dense<0.000000e+00> : vector<32xf32>
    %19 = vector.multi_reduction <add>, %16, %cst_13 [0] : vector<8x32xf32> to vector<32xf32>
    %20 = vector.shape_cast %19 : vector<32xf32> to vector<1x32xf32>
    %cst_14 = arith.constant 8.000000e+00 : f32
    %21 = vector.broadcast %cst_14 : f32 to vector<1x32xf32>
    %22 = arith.divf %20, %21 : vector<1x32xf32>
    %23 = vector.broadcast %22 : vector<1x32xf32> to vector<8x32xf32>
    %24 = arith.subf %16, %23 : vector<8x32xf32>
    %25 = arith.mulf %24, %24 : vector<8x32xf32>
    %cst_15 = arith.constant dense<0.000000e+00> : vector<32xf32>
    %26 = vector.multi_reduction <add>, %25, %cst_15 [0] : vector<8x32xf32> to vector<32xf32>
    %27 = vector.shape_cast %26 : vector<32xf32> to vector<1x32xf32>
    %cst_16 = arith.constant 8.000000e+00 : f32
    %28 = vector.broadcast %cst_16 : f32 to vector<1x32xf32>
    %29 = arith.divf %27, %28 : vector<1x32xf32>
    %30 = vector.broadcast %22 : vector<1x32xf32> to vector<8x32xf32>
    %31 = arith.subf %16, %30 : vector<8x32xf32>
    %32 = vector.broadcast %17 : vector<1x32xf32> to vector<8x32xf32>
    %33 = arith.mulf %32, %31 : vector<8x32xf32>
    %cst_17 = arith.constant 9.99999974E-6 : f32
    %34 = vector.broadcast %cst_17 : f32 to vector<1x32xf32>
    %35 = arith.addf %29, %34 : vector<1x32xf32>
    %36 = math.rsqrt %35 : vector<1x32xf32>
    %37 = vector.broadcast %36 : vector<1x32xf32> to vector<8x32xf32>
    %38 = arith.mulf %33, %37 : vector<8x32xf32>
    %39 = vector.broadcast %18 : vector<1x32xf32> to vector<8x32xf32>
    %40 = arith.addf %38, %39 : vector<8x32xf32>
    %c1_18 = arith.constant 1 : index
    %41 = memref.load %arg10[%c1_18] : memref<8xf32, #tpu.memory_space<smem>>
    %cst_19 = arith.constant 0.000000e+00 : f32
    %42 = vector.broadcast %cst_19 : f32 to vector<8x32xf32>
    %43 = arith.cmpf oge, %40, %42 : vector<8x32xf32>
    %44 = vector.broadcast %41 : f32 to vector<8x32xf32>
    %45 = arith.mulf %44, %40 : vector<8x32xf32>
    %46 = arith.select %43, %40, %45 : vector<8x32xi1>, vector<8x32xf32>
    %c4 = arith.constant 4 : index
    %c0_20 = arith.constant 0 : index
    %47 = vector.load %arg9[%c4, %c0_20] : memref<26x192xf32, #tpu.memory_space<vmem>>, vector<1x32xf32>
    %c0_21 = arith.constant 0 : index
    %c0_22 = arith.constant 0 : index
    %48 = vector.load %arg13[%c0_21, %c0_22] : memref<32x32xf32, #tpu.memory_space<vmem>>, vector<32x32xf32>
    %cst_23 = arith.constant dense<0.000000e+00> : vector<8x32xf32>
    %49 = tpu.matmul %46, %48, %cst_23 {dimension_numbers = #tpu.dot_dimension_numbers<[1], [0], [0], [1], [0, 0, 1, 1], [], []>} : vector<8x32xf32>, vector<32x32xf32>, vector<8x32xf32> -> vector<8x32xf32>
    %50 = vector.broadcast %47 : vector<1x32xf32> to vector<8x32xf32>
    %51 = arith.addf %49, %50 : vector<8x32xf32>
    %c5 = arith.constant 5 : index
    %c0_24 = arith.constant 0 : index
    %52 = vector.load %arg9[%c5, %c0_24] : memref<26x192xf32, #tpu.memory_space<vmem>>, vector<1x32xf32>
    %c6 = arith.constant 6 : index
    %c0_25 = arith.constant 0 : index
    %53 = vector.load %arg9[%c6, %c0_25] : memref<26x192xf32, #tpu.memory_space<vmem>>, vector<1x32xf32>
    %cst_26 = arith.constant dense<0.000000e+00> : vector<32xf32>
    %54 = vector.multi_reduction <add>, %51, %cst_26 [0] : vector<8x32xf32> to vector<32xf32>
    %55 = vector.shape_cast %54 : vector<32xf32> to vector<1x32xf32>
    %cst_27 = arith.constant 8.000000e+00 : f32
    %56 = vector.broadcast %cst_27 : f32 to vector<1x32xf32>
    %57 = arith.divf %55, %56 : vector<1x32xf32>
    %58 = vector.broadcast %57 : vector<1x32xf32> to vector<8x32xf32>
    %59 = arith.subf %51, %58 : vector<8x32xf32>
    %60 = arith.mulf %59, %59 : vector<8x32xf32>
    %cst_28 = arith.constant dense<0.000000e+00> : vector<32xf32>
    %61 = vector.multi_reduction <add>, %60, %cst_28 [0] : vector<8x32xf32> to vector<32xf32>
    %62 = vector.shape_cast %61 : vector<32xf32> to vector<1x32xf32>
    %cst_29 = arith.constant 8.000000e+00 : f32
    %63 = vector.broadcast %cst_29 : f32 to vector<1x32xf32>
    %64 = arith.divf %62, %63 : vector<1x32xf32>
    %65 = vector.broadcast %57 : vector<1x32xf32> to vector<8x32xf32>
    %66 = arith.subf %51, %65 : vector<8x32xf32>
    %67 = vector.broadcast %52 : vector<1x32xf32> to vector<8x32xf32>
    %68 = arith.mulf %67, %66 : vector<8x32xf32>
    %cst_30 = arith.constant 9.99999974E-6 : f32
    %69 = vector.broadcast %cst_30 : f32 to vector<1x32xf32>
    %70 = arith.addf %64, %69 : vector<1x32xf32>
    %71 = math.rsqrt %70 : vector<1x32xf32>
    %72 = vector.broadcast %71 : vector<1x32xf32> to vector<8x32xf32>
    %73 = arith.mulf %68, %72 : vector<8x32xf32>
    %74 = vector.broadcast %53 : vector<1x32xf32> to vector<8x32xf32>
    %75 = arith.addf %73, %74 : vector<8x32xf32>
    %c0_31 = arith.constant 0 : index
    %c0_32 = arith.constant 0 : index
    %76 = vector.load %arg14[%c0_31, %c0_32] : memref<32x32xf32, #tpu.memory_space<vmem>>, vector<32x32xf32>
    %cst_33 = arith.constant dense<0.000000e+00> : vector<8x32xf32>
    %77 = tpu.matmul %75, %76, %cst_33 {dimension_numbers = #tpu.dot_dimension_numbers<[1], [0], [0], [1], [0, 0, 1, 1], [], []>} : vector<8x32xf32>, vector<32x32xf32>, vector<8x32xf32> -> vector<8x32xf32>
    %c0_34 = arith.constant 0 : index
    %c0_35 = arith.constant 0 : index
    %78 = vector.load %arg15[%c0_34, %c0_35] : memref<32x32xf32, #tpu.memory_space<vmem>>, vector<32x32xf32>
    %cst_36 = arith.constant dense<0.000000e+00> : vector<8x32xf32>
    %79 = tpu.matmul %75, %78, %cst_36 {dimension_numbers = #tpu.dot_dimension_numbers<[1], [0], [0], [1], [0, 0, 1, 1], [], []>} : vector<8x32xf32>, vector<32x32xf32>, vector<8x32xf32> -> vector<8x32xf32>
    %c0_37 = arith.constant 0 : index
    %c0_38 = arith.constant 0 : index
    %80 = vector.load %arg2[%c0_37, %c0_38] : memref<16x8xf32, #tpu.memory_space<vmem>>, vector<16x8xf32>
    %cst_39 = arith.constant dense<0.000000e+00> : vector<16x32xf32>
    %81 = tpu.matmul %80, %77, %cst_39 {dimension_numbers = #tpu.dot_dimension_numbers<[1], [0], [0], [1], [0, 0, 1, 1], [], []>} : vector<16x8xf32>, vector<8x32xf32>, vector<16x32xf32> -> vector<16x32xf32>
    %c0_40 = arith.constant 0 : index
    %c0_41 = arith.constant 0 : index
    %82 = vector.load %arg3[%c0_40, %c0_41] : memref<16x8xf32, #tpu.memory_space<vmem>>, vector<16x8xf32>
    %cst_42 = arith.constant dense<0.000000e+00> : vector<16x32xf32>
    %83 = tpu.matmul %82, %79, %cst_42 {dimension_numbers = #tpu.dot_dimension_numbers<[1], [0], [0], [1], [0, 0, 1, 1], [], []>} : vector<16x8xf32>, vector<8x32xf32>, vector<16x32xf32> -> vector<16x32xf32>
    %84 = arith.addf %81, %83 : vector<16x32xf32>
    %c0_43 = arith.constant 0 : index
    %c0_44 = arith.constant 0 : index
    %85 = vector.load %arg1[%c0_43, %c0_44] : memref<16x8xf32, #tpu.memory_space<vmem>>, vector<16x8xf32>
    %c0_45 = arith.constant 0 : index
    %c0_46 = arith.constant 0 : index
    %86 = vector.load %arg16[%c0_45, %c0_46] : memref<8x32xf32, #tpu.memory_space<vmem>>, vector<8x32xf32>
    %cst_47 = arith.constant dense<0.000000e+00> : vector<16x32xf32>
    %87 = tpu.matmul %85, %86, %cst_47 {dimension_numbers = #tpu.dot_dimension_numbers<[1], [0], [0], [1], [0, 0, 1, 1], [], []>} : vector<16x8xf32>, vector<8x32xf32>, vector<16x32xf32> -> vector<16x32xf32>
    %88 = arith.addf %84, %87 : vector<16x32xf32>
    %cst_48 = arith.constant 0.333333343 : f32
    %89 = vector.broadcast %cst_48 : f32 to vector<16x32xf32>
    %90 = arith.mulf %88, %89 : vector<16x32xf32>
    %c0_49 = arith.constant 0 : index
    %c0_50 = arith.constant 0 : index
    %91 = vector.load %arg5[%c0_49, %c0_50] : memref<16x16xf32, #tpu.memory_space<vmem>>, vector<16x16xf32>
    %c0_51 = arith.constant 0 : index
    %c0_52 = arith.constant 0 : index
    %92 = vector.load %arg6[%c0_51, %c0_52] : memref<16x16xf32, #tpu.memory_space<vmem>>, vector<16x16xf32>
    %93 = tpu.iota {dimensions = array<i32: 0>} : vector<16x16xi32>
    %94 = tpu.iota {dimensions = array<i32: 1>} : vector<16x16xi32>
    %cst_53 = arith.constant 0.000000e+00 : f32
    %95 = vector.broadcast %cst_53 : f32 to vector<16x16xf32>
    %96 = arith.cmpf ogt, %91, %95 : vector<16x16xf32>
    %97 = arith.cmpi eq, %93, %94 : vector<16x16xi32>
    %98 = arith.ori %96, %97 : vector<16x16xi1>
    %cst_54 = arith.constant 0.000000e+00 : f32
    %cst_55 = arith.constant -1.000000e+30 : f32
    %99 = vector.broadcast %cst_54 : f32 to vector<16x16xf32>
    %100 = vector.broadcast %cst_55 : f32 to vector<16x16xf32>
    %101 = arith.select %98, %99, %100 : vector<16x16xi1>, vector<16x16xf32>
    %c0_56 = arith.constant 0 : index
    %c0_57 = arith.constant 0 : index
    %102 = vector.load %arg7[%c0_56, %c0_57] : memref<2x16xf32, #tpu.memory_space<vmem>>, vector<2x16xf32>
    %c0_58 = arith.constant 0 : index
    %c0_59 = arith.constant 0 : index
    %103 = vector.load %arg8[%c0_58, %c0_59] : memref<16x2xf32, #tpu.memory_space<vmem>>, vector<16x2xf32>
    %cst_60 = arith.constant 0.000000e+00 : f32
    %104 = vector.broadcast %cst_60 : f32 to vector<16x2xf32>
    %105 = arith.cmpf ogt, %103, %104 : vector<16x2xf32>
    %c0_61 = arith.constant 0 : index
    %c0_62 = arith.constant 0 : index
    %106 = vector.load %arg17[%c0_61, %c0_62] : memref<32x35xf32, #tpu.memory_space<vmem>>, vector<32x35xf32>
    %c0_63 = arith.constant 0 : index
    %c0_64 = arith.constant 0 : index
    %107 = vector.load %arg18[%c0_63, %c0_64] : memref<32x32xf32, #tpu.memory_space<vmem>>, vector<32x32xf32>
    %c0_65 = arith.constant 0 : index
    %c0_66 = arith.constant 0 : index
    %108 = vector.load %arg19[%c0_65, %c0_66] : memref<32x4xf32, #tpu.memory_space<vmem>>, vector<32x4xf32>
    %c10 = arith.constant 10 : index
    %c0_67 = arith.constant 0 : index
    %109 = vector.load %arg9[%c10, %c0_67] : memref<26x192xf32, #tpu.memory_space<vmem>>, vector<1x32xf32>
    %c7 = arith.constant 7 : index
    %c0_68 = arith.constant 0 : index
    %110 = vector.load %arg9[%c7, %c0_68] : memref<26x192xf32, #tpu.memory_space<vmem>>, vector<1x32xf32>
    %c8 = arith.constant 8 : index
    %c0_69 = arith.constant 0 : index
    %111 = vector.load %arg9[%c8, %c0_69] : memref<26x192xf32, #tpu.memory_space<vmem>>, vector<1x32xf32>
    %c2_70 = arith.constant 2 : index
    %112 = memref.load %arg10[%c2_70] : memref<8xf32, #tpu.memory_space<smem>>
    %c3_71 = arith.constant 3 : index
    %113 = memref.load %arg10[%c3_71] : memref<8xf32, #tpu.memory_space<smem>>
    %cst_72 = arith.constant dense<0.000000e+00> : vector<16x32xf32>
    %114 = tpu.matmul %91, %90, %cst_72 {dimension_numbers = #tpu.dot_dimension_numbers<[1], [0], [0], [1], [0, 0, 1, 1], [], []>} : vector<16x16xf32>, vector<16x32xf32>, vector<16x32xf32> -> vector<16x32xf32>
    %115 = arith.addf %90, %114 : vector<16x32xf32>
    %cst_73 = arith.constant dense<0.000000e+00> : vector<16x35xf32>
    %116 = tpu.matmul %115, %106, %cst_73 {dimension_numbers = #tpu.dot_dimension_numbers<[1], [0], [0], [1], [0, 0, 1, 1], [], []>} : vector<16x32xf32>, vector<32x35xf32>, vector<16x35xf32> -> vector<16x35xf32>
    %117 = vector.extract_strided_slice %116 {offsets = [0, 0], sizes = [16, 32], strides = [1, 1]} : vector<16x35xf32> to vector<16x32xf32>
    %118 = vector.extract_strided_slice %116 {offsets = [0, 32], sizes = [16, 3], strides = [1, 1]} : vector<16x35xf32> to vector<16x3xf32>
    %119 = vector.extract_strided_slice %118 {offsets = [0, 0], sizes = [16, 1], strides = [1, 1]} : vector<16x3xf32> to vector<16x1xf32>
    %120 = vector.extract_strided_slice %118 {offsets = [0, 1], sizes = [16, 1], strides = [1, 1]} : vector<16x3xf32> to vector<16x1xf32>
    %121 = vector.broadcast %113 : f32 to vector<16x1xf32>
    %122 = arith.addf %120, %121 : vector<16x1xf32>
    %123 = vector.extract_strided_slice %118 {offsets = [0, 2], sizes = [16, 1], strides = [1, 1]} : vector<16x3xf32> to vector<16x1xf32>
    %cst_74 = arith.constant dense<0.000000e+00> : vector<16x1xf32>
    %124 = tpu.matmul %92, %119, %cst_74 {dimension_numbers = #tpu.dot_dimension_numbers<[1], [0], [0], [1], [0, 0, 1, 1], [], []>} : vector<16x16xf32>, vector<16x1xf32>, vector<16x1xf32> -> vector<16x1xf32>
    %125 = vector.broadcast %112 : f32 to vector<16x1xf32>
    %126 = arith.addf %124, %125 : vector<16x1xf32>
    %cst_75 = arith.constant 6.000000e-01 : f32
    %127 = vector.broadcast %cst_75 : f32 to vector<16x1xf32>
    %128 = arith.mulf %127, %126 : vector<16x1xf32>
    %cst_76 = arith.constant 4.000000e-01 : f32
    %129 = vector.broadcast %cst_76 : f32 to vector<16x1xf32>
    %130 = arith.mulf %129, %122 : vector<16x1xf32>
    %131 = arith.addf %128, %130 : vector<16x1xf32>
    %cst_77 = arith.constant dense<0.000000e+00> : vector<1x16xf32>
    %132 = tpu.matmul %109, %115, %cst_77 {dimension_numbers = #tpu.dot_dimension_numbers<[1], [1], [0], [0], [0, 0, 1, 0], [], []>} : vector<1x32xf32>, vector<16x32xf32>, vector<1x16xf32> -> vector<1x16xf32>
    %133 = vector.broadcast %123 : vector<16x1xf32> to vector<16x16xf32>
    %134 = vector.broadcast %132 : vector<1x16xf32> to vector<16x16xf32>
    %135 = arith.addf %133, %134 : vector<16x16xf32>
    %cst_78 = arith.constant 0.000000e+00 : f32
    %136 = vector.broadcast %cst_78 : f32 to vector<16x16xf32>
    %137 = arith.cmpf oge, %135, %136 : vector<16x16xf32>
    %cst_79 = arith.constant 2.000000e-01 : f32
    %138 = vector.broadcast %cst_79 : f32 to vector<16x16xf32>
    %139 = arith.mulf %138, %135 : vector<16x16xf32>
    %140 = arith.select %137, %135, %139 : vector<16x16xi1>, vector<16x16xf32>
    %141 = arith.addf %140, %101 : vector<16x16xf32>
    %cst_80 = arith.constant dense<0xFF800000> : vector<16xf32>
    %142 = vector.multi_reduction <maximumf>, %141, %cst_80 [1] : vector<16x16xf32> to vector<16xf32>
    %143 = vector.shape_cast %142 : vector<16xf32> to vector<16x1xf32>
    %144 = vector.broadcast %143 : vector<16x1xf32> to vector<16x16xf32>
    %145 = arith.subf %141, %144 : vector<16x16xf32>
    %146 = math.exp %145 : vector<16x16xf32>
    %cst_81 = arith.constant dense<0.000000e+00> : vector<16xf32>
    %147 = vector.multi_reduction <add>, %146, %cst_81 [1] : vector<16x16xf32> to vector<16xf32>
    %148 = vector.shape_cast %147 : vector<16xf32> to vector<16x1xf32>
    %149 = tpu.reciprocal %148 {approx = true} : vector<16x1xf32> -> vector<16x1xf32>
    %150 = vector.broadcast %149 : vector<16x1xf32> to vector<16x16xf32>
    %151 = arith.mulf %146, %150 : vector<16x16xf32>
    %cst_82 = arith.constant dense<0.000000e+00> : vector<16x32xf32>
    %152 = tpu.matmul %151, %117, %cst_82 {dimension_numbers = #tpu.dot_dimension_numbers<[1], [0], [0], [1], [0, 0, 1, 1], [], []>} : vector<16x16xf32>, vector<16x32xf32>, vector<16x32xf32> -> vector<16x32xf32>
    %153 = vector.broadcast %110 : vector<1x32xf32> to vector<16x32xf32>
    %154 = arith.addf %152, %153 : vector<16x32xf32>
    %cst_83 = arith.constant -1.000000e+30 : f32
    %155 = vector.shape_cast %131 : vector<16x1xf32> to vector<16x1xf32>
    %156 = vector.broadcast %155 : vector<16x1xf32> to vector<16x2xf32>
    %157 = vector.broadcast %cst_83 : f32 to vector<16x2xf32>
    %158 = arith.select %105, %156, %157 : vector<16x2xi1>, vector<16x2xf32>
    %cst_84 = arith.constant dense<0xFF800000> : vector<2xf32>
    %159 = vector.multi_reduction <maximumf>, %158, %cst_84 [0] : vector<16x2xf32> to vector<2xf32>
    %160 = vector.shape_cast %159 : vector<2xf32> to vector<1x2xf32>
    %cst_85 = arith.constant 0.000000e+00 : f32
    %161 = vector.shape_cast %160 : vector<1x2xf32> to vector<1x2xf32>
    %162 = vector.broadcast %161 : vector<1x2xf32> to vector<16x2xf32>
    %163 = vector.broadcast %cst_85 : f32 to vector<16x2xf32>
    %164 = arith.select %105, %162, %163 : vector<16x2xi1>, vector<16x2xf32>
    %cst_86 = arith.constant dense<0.000000e+00> : vector<16xf32>
    %165 = vector.multi_reduction <add>, %164, %cst_86 [1] : vector<16x2xf32> to vector<16xf32>
    %166 = vector.shape_cast %165 : vector<16xf32> to vector<16x1xf32>
    %167 = arith.subf %131, %166 : vector<16x1xf32>
    %168 = math.exp %167 : vector<16x1xf32>
    %cst_87 = arith.constant dense<0.000000e+00> : vector<2x1xf32>
    %169 = tpu.matmul %102, %168, %cst_87 {dimension_numbers = #tpu.dot_dimension_numbers<[1], [0], [0], [1], [0, 0, 1, 1], [], []>} : vector<2x16xf32>, vector<16x1xf32>, vector<2x1xf32> -> vector<2x1xf32>
    %170 = vector.broadcast %168 : vector<16x1xf32> to vector<16x32xf32>
    %171 = arith.mulf %154, %170 : vector<16x32xf32>
    %cst_88 = arith.constant dense<0.000000e+00> : vector<2x32xf32>
    %172 = tpu.matmul %102, %171, %cst_88 {dimension_numbers = #tpu.dot_dimension_numbers<[1], [0], [0], [1], [0, 0, 1, 1], [], []>} : vector<2x16xf32>, vector<16x32xf32>, vector<2x32xf32> -> vector<2x32xf32>
    %173 = tpu.reciprocal %169 {approx = true} : vector<2x1xf32> -> vector<2x1xf32>
    %174 = vector.broadcast %173 : vector<2x1xf32> to vector<2x32xf32>
    %175 = arith.mulf %172, %174 : vector<2x32xf32>
    %cst_89 = arith.constant dense<0.000000e+00> : vector<2x32xf32>
    %176 = tpu.matmul %175, %107, %cst_89 {dimension_numbers = #tpu.dot_dimension_numbers<[1], [0], [0], [1], [0, 0, 1, 1], [], []>} : vector<2x32xf32>, vector<32x32xf32>, vector<2x32xf32> -> vector<2x32xf32>
    %177 = vector.broadcast %111 : vector<1x32xf32> to vector<2x32xf32>
    %178 = arith.addf %176, %177 : vector<2x32xf32>
    %179 = math.tanh %178 : vector<2x32xf32>
    %180 = vector.extract_strided_slice %108 {offsets = [0, 0], sizes = [32, 1], strides = [1, 1]} : vector<32x4xf32> to vector<32x1xf32>
    %cst_90 = arith.constant dense<0.000000e+00> : vector<2x1xf32>
    %181 = tpu.matmul %179, %180, %cst_90 {dimension_numbers = #tpu.dot_dimension_numbers<[1], [0], [0], [1], [0, 0, 1, 1], [], []>} : vector<2x32xf32>, vector<32x1xf32>, vector<2x1xf32> -> vector<2x1xf32>
    %cst_91 = arith.constant dense<0.000000e+00> : vector<16x32xf32>
    %182 = tpu.matmul %91, %115, %cst_91 {dimension_numbers = #tpu.dot_dimension_numbers<[1], [0], [0], [1], [0, 0, 1, 1], [], []>} : vector<16x16xf32>, vector<16x32xf32>, vector<16x32xf32> -> vector<16x32xf32>
    %183 = arith.addf %90, %182 : vector<16x32xf32>
    %cst_92 = arith.constant dense<0.000000e+00> : vector<16x35xf32>
    %184 = tpu.matmul %183, %106, %cst_92 {dimension_numbers = #tpu.dot_dimension_numbers<[1], [0], [0], [1], [0, 0, 1, 1], [], []>} : vector<16x32xf32>, vector<32x35xf32>, vector<16x35xf32> -> vector<16x35xf32>
    %185 = vector.extract_strided_slice %184 {offsets = [0, 0], sizes = [16, 32], strides = [1, 1]} : vector<16x35xf32> to vector<16x32xf32>
    %186 = vector.extract_strided_slice %184 {offsets = [0, 32], sizes = [16, 3], strides = [1, 1]} : vector<16x35xf32> to vector<16x3xf32>
    %187 = vector.extract_strided_slice %186 {offsets = [0, 0], sizes = [16, 1], strides = [1, 1]} : vector<16x3xf32> to vector<16x1xf32>
    %188 = vector.extract_strided_slice %186 {offsets = [0, 1], sizes = [16, 1], strides = [1, 1]} : vector<16x3xf32> to vector<16x1xf32>
    %189 = vector.broadcast %113 : f32 to vector<16x1xf32>
    %190 = arith.addf %188, %189 : vector<16x1xf32>
    %191 = vector.extract_strided_slice %186 {offsets = [0, 2], sizes = [16, 1], strides = [1, 1]} : vector<16x3xf32> to vector<16x1xf32>
    %cst_93 = arith.constant dense<0.000000e+00> : vector<16x1xf32>
    %192 = tpu.matmul %92, %187, %cst_93 {dimension_numbers = #tpu.dot_dimension_numbers<[1], [0], [0], [1], [0, 0, 1, 1], [], []>} : vector<16x16xf32>, vector<16x1xf32>, vector<16x1xf32> -> vector<16x1xf32>
    %193 = vector.broadcast %112 : f32 to vector<16x1xf32>
    %194 = arith.addf %192, %193 : vector<16x1xf32>
    %cst_94 = arith.constant 6.000000e-01 : f32
    %195 = vector.broadcast %cst_94 : f32 to vector<16x1xf32>
    %196 = arith.mulf %195, %194 : vector<16x1xf32>
    %cst_95 = arith.constant 4.000000e-01 : f32
    %197 = vector.broadcast %cst_95 : f32 to vector<16x1xf32>
    %198 = arith.mulf %197, %190 : vector<16x1xf32>
    %199 = arith.addf %196, %198 : vector<16x1xf32>
    %cst_96 = arith.constant dense<0.000000e+00> : vector<1x16xf32>
    %200 = tpu.matmul %109, %183, %cst_96 {dimension_numbers = #tpu.dot_dimension_numbers<[1], [1], [0], [0], [0, 0, 1, 0], [], []>} : vector<1x32xf32>, vector<16x32xf32>, vector<1x16xf32> -> vector<1x16xf32>
    %201 = vector.broadcast %191 : vector<16x1xf32> to vector<16x16xf32>
    %202 = vector.broadcast %200 : vector<1x16xf32> to vector<16x16xf32>
    %203 = arith.addf %201, %202 : vector<16x16xf32>
    %cst_97 = arith.constant 0.000000e+00 : f32
    %204 = vector.broadcast %cst_97 : f32 to vector<16x16xf32>
    %205 = arith.cmpf oge, %203, %204 : vector<16x16xf32>
    %cst_98 = arith.constant 2.000000e-01 : f32
    %206 = vector.broadcast %cst_98 : f32 to vector<16x16xf32>
    %207 = arith.mulf %206, %203 : vector<16x16xf32>
    %208 = arith.select %205, %203, %207 : vector<16x16xi1>, vector<16x16xf32>
    %209 = arith.addf %208, %101 : vector<16x16xf32>
    %cst_99 = arith.constant dense<0xFF800000> : vector<16xf32>
    %210 = vector.multi_reduction <maximumf>, %209, %cst_99 [1] : vector<16x16xf32> to vector<16xf32>
    %211 = vector.shape_cast %210 : vector<16xf32> to vector<16x1xf32>
    %212 = vector.broadcast %211 : vector<16x1xf32> to vector<16x16xf32>
    %213 = arith.subf %209, %212 : vector<16x16xf32>
    %214 = math.exp %213 : vector<16x16xf32>
    %cst_100 = arith.constant dense<0.000000e+00> : vector<16xf32>
    %215 = vector.multi_reduction <add>, %214, %cst_100 [1] : vector<16x16xf32> to vector<16xf32>
    %216 = vector.shape_cast %215 : vector<16xf32> to vector<16x1xf32>
    %217 = tpu.reciprocal %216 {approx = true} : vector<16x1xf32> -> vector<16x1xf32>
    %218 = vector.broadcast %217 : vector<16x1xf32> to vector<16x16xf32>
    %219 = arith.mulf %214, %218 : vector<16x16xf32>
    %cst_101 = arith.constant dense<0.000000e+00> : vector<16x32xf32>
    %220 = tpu.matmul %219, %185, %cst_101 {dimension_numbers = #tpu.dot_dimension_numbers<[1], [0], [0], [1], [0, 0, 1, 1], [], []>} : vector<16x16xf32>, vector<16x32xf32>, vector<16x32xf32> -> vector<16x32xf32>
    %221 = vector.broadcast %110 : vector<1x32xf32> to vector<16x32xf32>
    %222 = arith.addf %220, %221 : vector<16x32xf32>
    %cst_102 = arith.constant -1.000000e+30 : f32
    %223 = vector.shape_cast %199 : vector<16x1xf32> to vector<16x1xf32>
    %224 = vector.broadcast %223 : vector<16x1xf32> to vector<16x2xf32>
    %225 = vector.broadcast %cst_102 : f32 to vector<16x2xf32>
    %226 = arith.select %105, %224, %225 : vector<16x2xi1>, vector<16x2xf32>
    %cst_103 = arith.constant dense<0xFF800000> : vector<2xf32>
    %227 = vector.multi_reduction <maximumf>, %226, %cst_103 [0] : vector<16x2xf32> to vector<2xf32>
    %228 = vector.shape_cast %227 : vector<2xf32> to vector<1x2xf32>
    %cst_104 = arith.constant 0.000000e+00 : f32
    %229 = vector.shape_cast %228 : vector<1x2xf32> to vector<1x2xf32>
    %230 = vector.broadcast %229 : vector<1x2xf32> to vector<16x2xf32>
    %231 = vector.broadcast %cst_104 : f32 to vector<16x2xf32>
    %232 = arith.select %105, %230, %231 : vector<16x2xi1>, vector<16x2xf32>
    %cst_105 = arith.constant dense<0.000000e+00> : vector<16xf32>
    %233 = vector.multi_reduction <add>, %232, %cst_105 [1] : vector<16x2xf32> to vector<16xf32>
    %234 = vector.shape_cast %233 : vector<16xf32> to vector<16x1xf32>
    %235 = arith.subf %199, %234 : vector<16x1xf32>
    %236 = math.exp %235 : vector<16x1xf32>
    %cst_106 = arith.constant dense<0.000000e+00> : vector<2x1xf32>
    %237 = tpu.matmul %102, %236, %cst_106 {dimension_numbers = #tpu.dot_dimension_numbers<[1], [0], [0], [1], [0, 0, 1, 1], [], []>} : vector<2x16xf32>, vector<16x1xf32>, vector<2x1xf32> -> vector<2x1xf32>
    %238 = vector.broadcast %236 : vector<16x1xf32> to vector<16x32xf32>
    %239 = arith.mulf %222, %238 : vector<16x32xf32>
    %cst_107 = arith.constant dense<0.000000e+00> : vector<2x32xf32>
    %240 = tpu.matmul %102, %239, %cst_107 {dimension_numbers = #tpu.dot_dimension_numbers<[1], [0], [0], [1], [0, 0, 1, 1], [], []>} : vector<2x16xf32>, vector<16x32xf32>, vector<2x32xf32> -> vector<2x32xf32>
    %241 = tpu.reciprocal %237 {approx = true} : vector<2x1xf32> -> vector<2x1xf32>
    %242 = vector.broadcast %241 : vector<2x1xf32> to vector<2x32xf32>
    %243 = arith.mulf %240, %242 : vector<2x32xf32>
    %cst_108 = arith.constant dense<0.000000e+00> : vector<2x32xf32>
    %244 = tpu.matmul %243, %107, %cst_108 {dimension_numbers = #tpu.dot_dimension_numbers<[1], [0], [0], [1], [0, 0, 1, 1], [], []>} : vector<2x32xf32>, vector<32x32xf32>, vector<2x32xf32> -> vector<2x32xf32>
    %245 = vector.broadcast %111 : vector<1x32xf32> to vector<2x32xf32>
    %246 = arith.addf %244, %245 : vector<2x32xf32>
    %247 = math.tanh %246 : vector<2x32xf32>
    %248 = vector.extract_strided_slice %108 {offsets = [0, 1], sizes = [32, 1], strides = [1, 1]} : vector<32x4xf32> to vector<32x1xf32>
    %cst_109 = arith.constant dense<0.000000e+00> : vector<2x1xf32>
    %249 = tpu.matmul %247, %248, %cst_109 {dimension_numbers = #tpu.dot_dimension_numbers<[1], [0], [0], [1], [0, 0, 1, 1], [], []>} : vector<2x32xf32>, vector<32x1xf32>, vector<2x1xf32> -> vector<2x1xf32>
    %cst_110 = arith.constant dense<0.000000e+00> : vector<16x32xf32>
    %250 = tpu.matmul %91, %183, %cst_110 {dimension_numbers = #tpu.dot_dimension_numbers<[1], [0], [0], [1], [0, 0, 1, 1], [], []>} : vector<16x16xf32>, vector<16x32xf32>, vector<16x32xf32> -> vector<16x32xf32>
    %251 = arith.addf %90, %250 : vector<16x32xf32>
    %cst_111 = arith.constant dense<0.000000e+00> : vector<16x35xf32>
    %252 = tpu.matmul %251, %106, %cst_111 {dimension_numbers = #tpu.dot_dimension_numbers<[1], [0], [0], [1], [0, 0, 1, 1], [], []>} : vector<16x32xf32>, vector<32x35xf32>, vector<16x35xf32> -> vector<16x35xf32>
    %253 = vector.extract_strided_slice %252 {offsets = [0, 0], sizes = [16, 32], strides = [1, 1]} : vector<16x35xf32> to vector<16x32xf32>
    %254 = vector.extract_strided_slice %252 {offsets = [0, 32], sizes = [16, 3], strides = [1, 1]} : vector<16x35xf32> to vector<16x3xf32>
    %255 = vector.extract_strided_slice %254 {offsets = [0, 0], sizes = [16, 1], strides = [1, 1]} : vector<16x3xf32> to vector<16x1xf32>
    %256 = vector.extract_strided_slice %254 {offsets = [0, 1], sizes = [16, 1], strides = [1, 1]} : vector<16x3xf32> to vector<16x1xf32>
    %257 = vector.broadcast %113 : f32 to vector<16x1xf32>
    %258 = arith.addf %256, %257 : vector<16x1xf32>
    %259 = vector.extract_strided_slice %254 {offsets = [0, 2], sizes = [16, 1], strides = [1, 1]} : vector<16x3xf32> to vector<16x1xf32>
    %cst_112 = arith.constant dense<0.000000e+00> : vector<16x1xf32>
    %260 = tpu.matmul %92, %255, %cst_112 {dimension_numbers = #tpu.dot_dimension_numbers<[1], [0], [0], [1], [0, 0, 1, 1], [], []>} : vector<16x16xf32>, vector<16x1xf32>, vector<16x1xf32> -> vector<16x1xf32>
    %261 = vector.broadcast %112 : f32 to vector<16x1xf32>
    %262 = arith.addf %260, %261 : vector<16x1xf32>
    %cst_113 = arith.constant 6.000000e-01 : f32
    %263 = vector.broadcast %cst_113 : f32 to vector<16x1xf32>
    %264 = arith.mulf %263, %262 : vector<16x1xf32>
    %cst_114 = arith.constant 4.000000e-01 : f32
    %265 = vector.broadcast %cst_114 : f32 to vector<16x1xf32>
    %266 = arith.mulf %265, %258 : vector<16x1xf32>
    %267 = arith.addf %264, %266 : vector<16x1xf32>
    %cst_115 = arith.constant dense<0.000000e+00> : vector<1x16xf32>
    %268 = tpu.matmul %109, %251, %cst_115 {dimension_numbers = #tpu.dot_dimension_numbers<[1], [1], [0], [0], [0, 0, 1, 0], [], []>} : vector<1x32xf32>, vector<16x32xf32>, vector<1x16xf32> -> vector<1x16xf32>
    %269 = vector.broadcast %259 : vector<16x1xf32> to vector<16x16xf32>
    %270 = vector.broadcast %268 : vector<1x16xf32> to vector<16x16xf32>
    %271 = arith.addf %269, %270 : vector<16x16xf32>
    %cst_116 = arith.constant 0.000000e+00 : f32
    %272 = vector.broadcast %cst_116 : f32 to vector<16x16xf32>
    %273 = arith.cmpf oge, %271, %272 : vector<16x16xf32>
    %cst_117 = arith.constant 2.000000e-01 : f32
    %274 = vector.broadcast %cst_117 : f32 to vector<16x16xf32>
    %275 = arith.mulf %274, %271 : vector<16x16xf32>
    %276 = arith.select %273, %271, %275 : vector<16x16xi1>, vector<16x16xf32>
    %277 = arith.addf %276, %101 : vector<16x16xf32>
    %cst_118 = arith.constant dense<0xFF800000> : vector<16xf32>
    %278 = vector.multi_reduction <maximumf>, %277, %cst_118 [1] : vector<16x16xf32> to vector<16xf32>
    %279 = vector.shape_cast %278 : vector<16xf32> to vector<16x1xf32>
    %280 = vector.broadcast %279 : vector<16x1xf32> to vector<16x16xf32>
    %281 = arith.subf %277, %280 : vector<16x16xf32>
    %282 = math.exp %281 : vector<16x16xf32>
    %cst_119 = arith.constant dense<0.000000e+00> : vector<16xf32>
    %283 = vector.multi_reduction <add>, %282, %cst_119 [1] : vector<16x16xf32> to vector<16xf32>
    %284 = vector.shape_cast %283 : vector<16xf32> to vector<16x1xf32>
    %285 = tpu.reciprocal %284 {approx = true} : vector<16x1xf32> -> vector<16x1xf32>
    %286 = vector.broadcast %285 : vector<16x1xf32> to vector<16x16xf32>
    %287 = arith.mulf %282, %286 : vector<16x16xf32>
    %cst_120 = arith.constant dense<0.000000e+00> : vector<16x32xf32>
    %288 = tpu.matmul %287, %253, %cst_120 {dimension_numbers = #tpu.dot_dimension_numbers<[1], [0], [0], [1], [0, 0, 1, 1], [], []>} : vector<16x16xf32>, vector<16x32xf32>, vector<16x32xf32> -> vector<16x32xf32>
    %289 = vector.broadcast %110 : vector<1x32xf32> to vector<16x32xf32>
    %290 = arith.addf %288, %289 : vector<16x32xf32>
    %cst_121 = arith.constant -1.000000e+30 : f32
    %291 = vector.shape_cast %267 : vector<16x1xf32> to vector<16x1xf32>
    %292 = vector.broadcast %291 : vector<16x1xf32> to vector<16x2xf32>
    %293 = vector.broadcast %cst_121 : f32 to vector<16x2xf32>
    %294 = arith.select %105, %292, %293 : vector<16x2xi1>, vector<16x2xf32>
    %cst_122 = arith.constant dense<0xFF800000> : vector<2xf32>
    %295 = vector.multi_reduction <maximumf>, %294, %cst_122 [0] : vector<16x2xf32> to vector<2xf32>
    %296 = vector.shape_cast %295 : vector<2xf32> to vector<1x2xf32>
    %cst_123 = arith.constant 0.000000e+00 : f32
    %297 = vector.shape_cast %296 : vector<1x2xf32> to vector<1x2xf32>
    %298 = vector.broadcast %297 : vector<1x2xf32> to vector<16x2xf32>
    %299 = vector.broadcast %cst_123 : f32 to vector<16x2xf32>
    %300 = arith.select %105, %298, %299 : vector<16x2xi1>, vector<16x2xf32>
    %cst_124 = arith.constant dense<0.000000e+00> : vector<16xf32>
    %301 = vector.multi_reduction <add>, %300, %cst_124 [1] : vector<16x2xf32> to vector<16xf32>
    %302 = vector.shape_cast %301 : vector<16xf32> to vector<16x1xf32>
    %303 = arith.subf %267, %302 : vector<16x1xf32>
    %304 = math.exp %303 : vector<16x1xf32>
    %cst_125 = arith.constant dense<0.000000e+00> : vector<2x1xf32>
    %305 = tpu.matmul %102, %304, %cst_125 {dimension_numbers = #tpu.dot_dimension_numbers<[1], [0], [0], [1], [0, 0, 1, 1], [], []>} : vector<2x16xf32>, vector<16x1xf32>, vector<2x1xf32> -> vector<2x1xf32>
    %306 = vector.broadcast %304 : vector<16x1xf32> to vector<16x32xf32>
    %307 = arith.mulf %290, %306 : vector<16x32xf32>
    %cst_126 = arith.constant dense<0.000000e+00> : vector<2x32xf32>
    %308 = tpu.matmul %102, %307, %cst_126 {dimension_numbers = #tpu.dot_dimension_numbers<[1], [0], [0], [1], [0, 0, 1, 1], [], []>} : vector<2x16xf32>, vector<16x32xf32>, vector<2x32xf32> -> vector<2x32xf32>
    %309 = tpu.reciprocal %305 {approx = true} : vector<2x1xf32> -> vector<2x1xf32>
    %310 = vector.broadcast %309 : vector<2x1xf32> to vector<2x32xf32>
    %311 = arith.mulf %308, %310 : vector<2x32xf32>
    %cst_127 = arith.constant dense<0.000000e+00> : vector<2x32xf32>
    %312 = tpu.matmul %311, %107, %cst_127 {dimension_numbers = #tpu.dot_dimension_numbers<[1], [0], [0], [1], [0, 0, 1, 1], [], []>} : vector<2x32xf32>, vector<32x32xf32>, vector<2x32xf32> -> vector<2x32xf32>
    %313 = vector.broadcast %111 : vector<1x32xf32> to vector<2x32xf32>
    %314 = arith.addf %312, %313 : vector<2x32xf32>
    %315 = math.tanh %314 : vector<2x32xf32>
    %316 = vector.extract_strided_slice %108 {offsets = [0, 2], sizes = [32, 1], strides = [1, 1]} : vector<32x4xf32> to vector<32x1xf32>
    %cst_128 = arith.constant dense<0.000000e+00> : vector<2x1xf32>
    %317 = tpu.matmul %315, %316, %cst_128 {dimension_numbers = #tpu.dot_dimension_numbers<[1], [0], [0], [1], [0, 0, 1, 1], [], []>} : vector<2x32xf32>, vector<32x1xf32>, vector<2x1xf32> -> vector<2x1xf32>
    %cst_129 = arith.constant dense<0.000000e+00> : vector<16x32xf32>
    %318 = tpu.matmul %91, %251, %cst_129 {dimension_numbers = #tpu.dot_dimension_numbers<[1], [0], [0], [1], [0, 0, 1, 1], [], []>} : vector<16x16xf32>, vector<16x32xf32>, vector<16x32xf32> -> vector<16x32xf32>
    %319 = arith.addf %90, %318 : vector<16x32xf32>
    %cst_130 = arith.constant dense<0.000000e+00> : vector<16x35xf32>
    %320 = tpu.matmul %319, %106, %cst_130 {dimension_numbers = #tpu.dot_dimension_numbers<[1], [0], [0], [1], [0, 0, 1, 1], [], []>} : vector<16x32xf32>, vector<32x35xf32>, vector<16x35xf32> -> vector<16x35xf32>
    %321 = vector.extract_strided_slice %320 {offsets = [0, 0], sizes = [16, 32], strides = [1, 1]} : vector<16x35xf32> to vector<16x32xf32>
    %322 = vector.extract_strided_slice %320 {offsets = [0, 32], sizes = [16, 3], strides = [1, 1]} : vector<16x35xf32> to vector<16x3xf32>
    %323 = vector.extract_strided_slice %322 {offsets = [0, 0], sizes = [16, 1], strides = [1, 1]} : vector<16x3xf32> to vector<16x1xf32>
    %324 = vector.extract_strided_slice %322 {offsets = [0, 1], sizes = [16, 1], strides = [1, 1]} : vector<16x3xf32> to vector<16x1xf32>
    %325 = vector.broadcast %113 : f32 to vector<16x1xf32>
    %326 = arith.addf %324, %325 : vector<16x1xf32>
    %327 = vector.extract_strided_slice %322 {offsets = [0, 2], sizes = [16, 1], strides = [1, 1]} : vector<16x3xf32> to vector<16x1xf32>
    %cst_131 = arith.constant dense<0.000000e+00> : vector<16x1xf32>
    %328 = tpu.matmul %92, %323, %cst_131 {dimension_numbers = #tpu.dot_dimension_numbers<[1], [0], [0], [1], [0, 0, 1, 1], [], []>} : vector<16x16xf32>, vector<16x1xf32>, vector<16x1xf32> -> vector<16x1xf32>
    %329 = vector.broadcast %112 : f32 to vector<16x1xf32>
    %330 = arith.addf %328, %329 : vector<16x1xf32>
    %cst_132 = arith.constant 6.000000e-01 : f32
    %331 = vector.broadcast %cst_132 : f32 to vector<16x1xf32>
    %332 = arith.mulf %331, %330 : vector<16x1xf32>
    %cst_133 = arith.constant 4.000000e-01 : f32
    %333 = vector.broadcast %cst_133 : f32 to vector<16x1xf32>
    %334 = arith.mulf %333, %326 : vector<16x1xf32>
    %335 = arith.addf %332, %334 : vector<16x1xf32>
    %cst_134 = arith.constant dense<0.000000e+00> : vector<1x16xf32>
    %336 = tpu.matmul %109, %319, %cst_134 {dimension_numbers = #tpu.dot_dimension_numbers<[1], [1], [0], [0], [0, 0, 1, 0], [], []>} : vector<1x32xf32>, vector<16x32xf32>, vector<1x16xf32> -> vector<1x16xf32>
    %337 = vector.broadcast %327 : vector<16x1xf32> to vector<16x16xf32>
    %338 = vector.broadcast %336 : vector<1x16xf32> to vector<16x16xf32>
    %339 = arith.addf %337, %338 : vector<16x16xf32>
    %cst_135 = arith.constant 0.000000e+00 : f32
    %340 = vector.broadcast %cst_135 : f32 to vector<16x16xf32>
    %341 = arith.cmpf oge, %339, %340 : vector<16x16xf32>
    %cst_136 = arith.constant 2.000000e-01 : f32
    %342 = vector.broadcast %cst_136 : f32 to vector<16x16xf32>
    %343 = arith.mulf %342, %339 : vector<16x16xf32>
    %344 = arith.select %341, %339, %343 : vector<16x16xi1>, vector<16x16xf32>
    %345 = arith.addf %344, %101 : vector<16x16xf32>
    %cst_137 = arith.constant dense<0xFF800000> : vector<16xf32>
    %346 = vector.multi_reduction <maximumf>, %345, %cst_137 [1] : vector<16x16xf32> to vector<16xf32>
    %347 = vector.shape_cast %346 : vector<16xf32> to vector<16x1xf32>
    %348 = vector.broadcast %347 : vector<16x1xf32> to vector<16x16xf32>
    %349 = arith.subf %345, %348 : vector<16x16xf32>
    %350 = math.exp %349 : vector<16x16xf32>
    %cst_138 = arith.constant dense<0.000000e+00> : vector<16xf32>
    %351 = vector.multi_reduction <add>, %350, %cst_138 [1] : vector<16x16xf32> to vector<16xf32>
    %352 = vector.shape_cast %351 : vector<16xf32> to vector<16x1xf32>
    %353 = tpu.reciprocal %352 {approx = true} : vector<16x1xf32> -> vector<16x1xf32>
    %354 = vector.broadcast %353 : vector<16x1xf32> to vector<16x16xf32>
    %355 = arith.mulf %350, %354 : vector<16x16xf32>
    %cst_139 = arith.constant dense<0.000000e+00> : vector<16x32xf32>
    %356 = tpu.matmul %355, %321, %cst_139 {dimension_numbers = #tpu.dot_dimension_numbers<[1], [0], [0], [1], [0, 0, 1, 1], [], []>} : vector<16x16xf32>, vector<16x32xf32>, vector<16x32xf32> -> vector<16x32xf32>
    %357 = vector.broadcast %110 : vector<1x32xf32> to vector<16x32xf32>
    %358 = arith.addf %356, %357 : vector<16x32xf32>
    %cst_140 = arith.constant -1.000000e+30 : f32
    %359 = vector.shape_cast %335 : vector<16x1xf32> to vector<16x1xf32>
    %360 = vector.broadcast %359 : vector<16x1xf32> to vector<16x2xf32>
    %361 = vector.broadcast %cst_140 : f32 to vector<16x2xf32>
    %362 = arith.select %105, %360, %361 : vector<16x2xi1>, vector<16x2xf32>
    %cst_141 = arith.constant dense<0xFF800000> : vector<2xf32>
    %363 = vector.multi_reduction <maximumf>, %362, %cst_141 [0] : vector<16x2xf32> to vector<2xf32>
    %364 = vector.shape_cast %363 : vector<2xf32> to vector<1x2xf32>
    %cst_142 = arith.constant 0.000000e+00 : f32
    %365 = vector.shape_cast %364 : vector<1x2xf32> to vector<1x2xf32>
    %366 = vector.broadcast %365 : vector<1x2xf32> to vector<16x2xf32>
    %367 = vector.broadcast %cst_142 : f32 to vector<16x2xf32>
    %368 = arith.select %105, %366, %367 : vector<16x2xi1>, vector<16x2xf32>
    %cst_143 = arith.constant dense<0.000000e+00> : vector<16xf32>
    %369 = vector.multi_reduction <add>, %368, %cst_143 [1] : vector<16x2xf32> to vector<16xf32>
    %370 = vector.shape_cast %369 : vector<16xf32> to vector<16x1xf32>
    %371 = arith.subf %335, %370 : vector<16x1xf32>
    %372 = math.exp %371 : vector<16x1xf32>
    %cst_144 = arith.constant dense<0.000000e+00> : vector<2x1xf32>
    %373 = tpu.matmul %102, %372, %cst_144 {dimension_numbers = #tpu.dot_dimension_numbers<[1], [0], [0], [1], [0, 0, 1, 1], [], []>} : vector<2x16xf32>, vector<16x1xf32>, vector<2x1xf32> -> vector<2x1xf32>
    %374 = vector.broadcast %372 : vector<16x1xf32> to vector<16x32xf32>
    %375 = arith.mulf %358, %374 : vector<16x32xf32>
    %cst_145 = arith.constant dense<0.000000e+00> : vector<2x32xf32>
    %376 = tpu.matmul %102, %375, %cst_145 {dimension_numbers = #tpu.dot_dimension_numbers<[1], [0], [0], [1], [0, 0, 1, 1], [], []>} : vector<2x16xf32>, vector<16x32xf32>, vector<2x32xf32> -> vector<2x32xf32>
    %377 = tpu.reciprocal %373 {approx = true} : vector<2x1xf32> -> vector<2x1xf32>
    %378 = vector.broadcast %377 : vector<2x1xf32> to vector<2x32xf32>
    %379 = arith.mulf %376, %378 : vector<2x32xf32>
    %cst_146 = arith.constant dense<0.000000e+00> : vector<2x32xf32>
    %380 = tpu.matmul %379, %107, %cst_146 {dimension_numbers = #tpu.dot_dimension_numbers<[1], [0], [0], [1], [0, 0, 1, 1], [], []>} : vector<2x32xf32>, vector<32x32xf32>, vector<2x32xf32> -> vector<2x32xf32>
    %381 = vector.broadcast %111 : vector<1x32xf32> to vector<2x32xf32>
    %382 = arith.addf %380, %381 : vector<2x32xf32>
    %383 = math.tanh %382 : vector<2x32xf32>
    %384 = vector.extract_strided_slice %108 {offsets = [0, 3], sizes = [32, 1], strides = [1, 1]} : vector<32x4xf32> to vector<32x1xf32>
    %cst_147 = arith.constant dense<0.000000e+00> : vector<2x1xf32>
    %385 = tpu.matmul %383, %384, %cst_147 {dimension_numbers = #tpu.dot_dimension_numbers<[1], [0], [0], [1], [0, 0, 1, 1], [], []>} : vector<2x32xf32>, vector<32x1xf32>, vector<2x1xf32> -> vector<2x1xf32>
    %386 = tpu.concatenate %181, %249, %317, %385 in 1 : vector<2x1xf32>, vector<2x1xf32>, vector<2x1xf32>, vector<2x1xf32> -> vector<2x4xf32>
    %c9 = arith.constant 9 : index
    %c0_148 = arith.constant 0 : index
    %387 = vector.load %arg9[%c9, %c0_148] : memref<26x192xf32, #tpu.memory_space<vmem>>, vector<1x4xf32>
    %388 = vector.broadcast %387 : vector<1x4xf32> to vector<2x4xf32>
    %389 = arith.addf %386, %388 : vector<2x4xf32>
    %cst_149 = arith.constant dense<0xFF800000> : vector<2xf32>
    %390 = vector.multi_reduction <maximumf>, %389, %cst_149 [1] : vector<2x4xf32> to vector<2xf32>
    %391 = vector.shape_cast %390 : vector<2xf32> to vector<2x1xf32>
    %392 = vector.broadcast %391 : vector<2x1xf32> to vector<2x4xf32>
    %393 = arith.subf %389, %392 : vector<2x4xf32>
    %394 = math.exp %393 : vector<2x4xf32>
    %cst_150 = arith.constant dense<0.000000e+00> : vector<2xf32>
    %395 = vector.multi_reduction <add>, %394, %cst_150 [1] : vector<2x4xf32> to vector<2xf32>
    %396 = vector.shape_cast %395 : vector<2xf32> to vector<2x1xf32>
    %397 = tpu.reciprocal %396 {approx = true} : vector<2x1xf32> -> vector<2x1xf32>
    %398 = vector.broadcast %397 : vector<2x1xf32> to vector<2x4xf32>
    %399 = arith.mulf %394, %398 : vector<2x4xf32>
    %cst_151 = arith.constant dense<0.000000e+00> : vector<16x4xf32>
    %400 = tpu.matmul %103, %399, %cst_151 {dimension_numbers = #tpu.dot_dimension_numbers<[1], [0], [0], [1], [0, 0, 1, 1], [], []>} : vector<16x2xf32>, vector<2x4xf32>, vector<16x4xf32> -> vector<16x4xf32>
    %401 = vector.extract_strided_slice %400 {offsets = [0, 0], sizes = [16, 1], strides = [1, 1]} : vector<16x4xf32> to vector<16x1xf32>
    %402 = vector.broadcast %401 : vector<16x1xf32> to vector<16x32xf32>
    %403 = arith.mulf %115, %402 : vector<16x32xf32>
    %404 = vector.extract_strided_slice %400 {offsets = [0, 1], sizes = [16, 1], strides = [1, 1]} : vector<16x4xf32> to vector<16x1xf32>
    %405 = vector.broadcast %404 : vector<16x1xf32> to vector<16x32xf32>
    %406 = arith.mulf %183, %405 : vector<16x32xf32>
    %407 = arith.addf %403, %406 : vector<16x32xf32>
    %408 = vector.extract_strided_slice %400 {offsets = [0, 2], sizes = [16, 1], strides = [1, 1]} : vector<16x4xf32> to vector<16x1xf32>
    %409 = vector.broadcast %408 : vector<16x1xf32> to vector<16x32xf32>
    %410 = arith.mulf %251, %409 : vector<16x32xf32>
    %411 = arith.addf %407, %410 : vector<16x32xf32>
    %412 = vector.extract_strided_slice %400 {offsets = [0, 3], sizes = [16, 1], strides = [1, 1]} : vector<16x4xf32> to vector<16x1xf32>
    %413 = vector.broadcast %412 : vector<16x1xf32> to vector<16x32xf32>
    %414 = arith.mulf %319, %413 : vector<16x32xf32>
    %415 = arith.addf %411, %414 : vector<16x32xf32>
    %c0_152 = arith.constant 0 : index
    %c0_153 = arith.constant 0 : index
    %416 = vector.load %arg4[%c0_152, %c0_153] : memref<8x16xf32, #tpu.memory_space<vmem>>, vector<8x16xf32>
    %cst_154 = arith.constant dense<0.000000e+00> : vector<8x32xf32>
    %417 = tpu.matmul %416, %415, %cst_154 {dimension_numbers = #tpu.dot_dimension_numbers<[1], [0], [0], [1], [0, 0, 1, 1], [], []>} : vector<8x16xf32>, vector<16x32xf32>, vector<8x32xf32> -> vector<8x32xf32>
    %418 = arith.addf %75, %417 : vector<8x32xf32>
    %c11 = arith.constant 11 : index
    %c0_155 = arith.constant 0 : index
    %419 = vector.load %arg9[%c11, %c0_155] : memref<26x192xf32, #tpu.memory_space<vmem>>, vector<1x32xf32>
    %c12 = arith.constant 12 : index
    %c0_156 = arith.constant 0 : index
    %420 = vector.load %arg9[%c12, %c0_156] : memref<26x192xf32, #tpu.memory_space<vmem>>, vector<1x32xf32>
    %cst_157 = arith.constant dense<0.000000e+00> : vector<32xf32>
    %421 = vector.multi_reduction <add>, %418, %cst_157 [0] : vector<8x32xf32> to vector<32xf32>
    %422 = vector.shape_cast %421 : vector<32xf32> to vector<1x32xf32>
    %cst_158 = arith.constant 8.000000e+00 : f32
    %423 = vector.broadcast %cst_158 : f32 to vector<1x32xf32>
    %424 = arith.divf %422, %423 : vector<1x32xf32>
    %425 = vector.broadcast %424 : vector<1x32xf32> to vector<8x32xf32>
    %426 = arith.subf %418, %425 : vector<8x32xf32>
    %427 = arith.mulf %426, %426 : vector<8x32xf32>
    %cst_159 = arith.constant dense<0.000000e+00> : vector<32xf32>
    %428 = vector.multi_reduction <add>, %427, %cst_159 [0] : vector<8x32xf32> to vector<32xf32>
    %429 = vector.shape_cast %428 : vector<32xf32> to vector<1x32xf32>
    %cst_160 = arith.constant 8.000000e+00 : f32
    %430 = vector.broadcast %cst_160 : f32 to vector<1x32xf32>
    %431 = arith.divf %429, %430 : vector<1x32xf32>
    %432 = vector.broadcast %424 : vector<1x32xf32> to vector<8x32xf32>
    %433 = arith.subf %418, %432 : vector<8x32xf32>
    %434 = vector.broadcast %419 : vector<1x32xf32> to vector<8x32xf32>
    %435 = arith.mulf %434, %433 : vector<8x32xf32>
    %cst_161 = arith.constant 9.99999974E-6 : f32
    %436 = vector.broadcast %cst_161 : f32 to vector<1x32xf32>
    %437 = arith.addf %431, %436 : vector<1x32xf32>
    %438 = math.rsqrt %437 : vector<1x32xf32>
    %439 = vector.broadcast %438 : vector<1x32xf32> to vector<8x32xf32>
    %440 = arith.mulf %435, %439 : vector<8x32xf32>
    %441 = vector.broadcast %420 : vector<1x32xf32> to vector<8x32xf32>
    %442 = arith.addf %440, %441 : vector<8x32xf32>
    %c14 = arith.constant 14 : index
    %c0_162 = arith.constant 0 : index
    %443 = vector.load %arg9[%c14, %c0_162] : memref<26x192xf32, #tpu.memory_space<vmem>>, vector<1x192xf32>
    %c0_163 = arith.constant 0 : index
    %c0_164 = arith.constant 0 : index
    %444 = vector.load %arg20[%c0_163, %c0_164] : memref<32x192xf32, #tpu.memory_space<vmem>>, vector<32x192xf32>
    %cst_165 = arith.constant dense<0.000000e+00> : vector<8x192xf32>
    %445 = tpu.matmul %442, %444, %cst_165 {dimension_numbers = #tpu.dot_dimension_numbers<[1], [0], [0], [1], [0, 0, 1, 1], [], []>} : vector<8x32xf32>, vector<32x192xf32>, vector<8x192xf32> -> vector<8x192xf32>
    %446 = vector.broadcast %443 : vector<1x192xf32> to vector<8x192xf32>
    %447 = arith.addf %445, %446 : vector<8x192xf32>
    %c15 = arith.constant 15 : index
    %c0_166 = arith.constant 0 : index
    %448 = vector.load %arg9[%c15, %c0_166] : memref<26x192xf32, #tpu.memory_space<vmem>>, vector<1x192xf32>
    %c16 = arith.constant 16 : index
    %c0_167 = arith.constant 0 : index
    %449 = vector.load %arg9[%c16, %c0_167] : memref<26x192xf32, #tpu.memory_space<vmem>>, vector<1x192xf32>
    %cst_168 = arith.constant dense<0.000000e+00> : vector<192xf32>
    %450 = vector.multi_reduction <add>, %447, %cst_168 [0] : vector<8x192xf32> to vector<192xf32>
    %451 = vector.shape_cast %450 : vector<192xf32> to vector<1x192xf32>
    %cst_169 = arith.constant 8.000000e+00 : f32
    %452 = vector.broadcast %cst_169 : f32 to vector<1x192xf32>
    %453 = arith.divf %451, %452 : vector<1x192xf32>
    %454 = vector.broadcast %453 : vector<1x192xf32> to vector<8x192xf32>
    %455 = arith.subf %447, %454 : vector<8x192xf32>
    %456 = arith.mulf %455, %455 : vector<8x192xf32>
    %cst_170 = arith.constant dense<0.000000e+00> : vector<192xf32>
    %457 = vector.multi_reduction <add>, %456, %cst_170 [0] : vector<8x192xf32> to vector<192xf32>
    %458 = vector.shape_cast %457 : vector<192xf32> to vector<1x192xf32>
    %cst_171 = arith.constant 8.000000e+00 : f32
    %459 = vector.broadcast %cst_171 : f32 to vector<1x192xf32>
    %460 = arith.divf %458, %459 : vector<1x192xf32>
    %461 = vector.broadcast %453 : vector<1x192xf32> to vector<8x192xf32>
    %462 = arith.subf %447, %461 : vector<8x192xf32>
    %463 = vector.broadcast %448 : vector<1x192xf32> to vector<8x192xf32>
    %464 = arith.mulf %463, %462 : vector<8x192xf32>
    %cst_172 = arith.constant 9.99999974E-6 : f32
    %465 = vector.broadcast %cst_172 : f32 to vector<1x192xf32>
    %466 = arith.addf %460, %465 : vector<1x192xf32>
    %467 = math.rsqrt %466 : vector<1x192xf32>
    %468 = vector.broadcast %467 : vector<1x192xf32> to vector<8x192xf32>
    %469 = arith.mulf %464, %468 : vector<8x192xf32>
    %470 = vector.broadcast %449 : vector<1x192xf32> to vector<8x192xf32>
    %471 = arith.addf %469, %470 : vector<8x192xf32>
    %c4_173 = arith.constant 4 : index
    %472 = memref.load %arg10[%c4_173] : memref<8xf32, #tpu.memory_space<smem>>
    %cst_174 = arith.constant 0.000000e+00 : f32
    %473 = vector.broadcast %cst_174 : f32 to vector<8x192xf32>
    %474 = arith.cmpf oge, %471, %473 : vector<8x192xf32>
    %475 = vector.broadcast %472 : f32 to vector<8x192xf32>
    %476 = arith.mulf %475, %471 : vector<8x192xf32>
    %477 = arith.select %474, %471, %476 : vector<8x192xi1>, vector<8x192xf32>
    %c17 = arith.constant 17 : index
    %c0_175 = arith.constant 0 : index
    %478 = vector.load %arg9[%c17, %c0_175] : memref<26x192xf32, #tpu.memory_space<vmem>>, vector<1x192xf32>
    %c0_176 = arith.constant 0 : index
    %c0_177 = arith.constant 0 : index
    %479 = vector.load %arg21[%c0_176, %c0_177] : memref<192x192xf32, #tpu.memory_space<vmem>>, vector<192x192xf32>
    %cst_178 = arith.constant dense<0.000000e+00> : vector<8x192xf32>
    %480 = tpu.matmul %477, %479, %cst_178 {dimension_numbers = #tpu.dot_dimension_numbers<[1], [0], [0], [1], [0, 0, 1, 1], [], []>} : vector<8x192xf32>, vector<192x192xf32>, vector<8x192xf32> -> vector<8x192xf32>
    %481 = vector.broadcast %478 : vector<1x192xf32> to vector<8x192xf32>
    %482 = arith.addf %480, %481 : vector<8x192xf32>
    %c18 = arith.constant 18 : index
    %c0_179 = arith.constant 0 : index
    %483 = vector.load %arg9[%c18, %c0_179] : memref<26x192xf32, #tpu.memory_space<vmem>>, vector<1x192xf32>
    %c19 = arith.constant 19 : index
    %c0_180 = arith.constant 0 : index
    %484 = vector.load %arg9[%c19, %c0_180] : memref<26x192xf32, #tpu.memory_space<vmem>>, vector<1x192xf32>
    %cst_181 = arith.constant dense<0.000000e+00> : vector<192xf32>
    %485 = vector.multi_reduction <add>, %482, %cst_181 [0] : vector<8x192xf32> to vector<192xf32>
    %486 = vector.shape_cast %485 : vector<192xf32> to vector<1x192xf32>
    %cst_182 = arith.constant 8.000000e+00 : f32
    %487 = vector.broadcast %cst_182 : f32 to vector<1x192xf32>
    %488 = arith.divf %486, %487 : vector<1x192xf32>
    %489 = vector.broadcast %488 : vector<1x192xf32> to vector<8x192xf32>
    %490 = arith.subf %482, %489 : vector<8x192xf32>
    %491 = arith.mulf %490, %490 : vector<8x192xf32>
    %cst_183 = arith.constant dense<0.000000e+00> : vector<192xf32>
    %492 = vector.multi_reduction <add>, %491, %cst_183 [0] : vector<8x192xf32> to vector<192xf32>
    %493 = vector.shape_cast %492 : vector<192xf32> to vector<1x192xf32>
    %cst_184 = arith.constant 8.000000e+00 : f32
    %494 = vector.broadcast %cst_184 : f32 to vector<1x192xf32>
    %495 = arith.divf %493, %494 : vector<1x192xf32>
    %496 = vector.broadcast %488 : vector<1x192xf32> to vector<8x192xf32>
    %497 = arith.subf %482, %496 : vector<8x192xf32>
    %498 = vector.broadcast %483 : vector<1x192xf32> to vector<8x192xf32>
    %499 = arith.mulf %498, %497 : vector<8x192xf32>
    %cst_185 = arith.constant 9.99999974E-6 : f32
    %500 = vector.broadcast %cst_185 : f32 to vector<1x192xf32>
    %501 = arith.addf %495, %500 : vector<1x192xf32>
    %502 = math.rsqrt %501 : vector<1x192xf32>
    %503 = vector.broadcast %502 : vector<1x192xf32> to vector<8x192xf32>
    %504 = arith.mulf %499, %503 : vector<8x192xf32>
    %505 = vector.broadcast %484 : vector<1x192xf32> to vector<8x192xf32>
    %506 = arith.addf %504, %505 : vector<8x192xf32>
    %c5_186 = arith.constant 5 : index
    %507 = memref.load %arg10[%c5_186] : memref<8xf32, #tpu.memory_space<smem>>
    %cst_187 = arith.constant 0.000000e+00 : f32
    %508 = vector.broadcast %cst_187 : f32 to vector<8x192xf32>
    %509 = arith.cmpf oge, %506, %508 : vector<8x192xf32>
    %510 = vector.broadcast %507 : f32 to vector<8x192xf32>
    %511 = arith.mulf %510, %506 : vector<8x192xf32>
    %512 = arith.select %509, %506, %511 : vector<8x192xi1>, vector<8x192xf32>
    %c20 = arith.constant 20 : index
    %c0_188 = arith.constant 0 : index
    %513 = vector.load %arg9[%c20, %c0_188] : memref<26x192xf32, #tpu.memory_space<vmem>>, vector<1x192xf32>
    %c0_189 = arith.constant 0 : index
    %c0_190 = arith.constant 0 : index
    %514 = vector.load %arg22[%c0_189, %c0_190] : memref<192x192xf32, #tpu.memory_space<vmem>>, vector<192x192xf32>
    %cst_191 = arith.constant dense<0.000000e+00> : vector<8x192xf32>
    %515 = tpu.matmul %512, %514, %cst_191 {dimension_numbers = #tpu.dot_dimension_numbers<[1], [0], [0], [1], [0, 0, 1, 1], [], []>} : vector<8x192xf32>, vector<192x192xf32>, vector<8x192xf32> -> vector<8x192xf32>
    %516 = vector.broadcast %513 : vector<1x192xf32> to vector<8x192xf32>
    %517 = arith.addf %515, %516 : vector<8x192xf32>
    %518 = arith.addf %517, %447 : vector<8x192xf32>
    %cst_192 = arith.constant 5.000000e-01 : f32
    %519 = vector.broadcast %cst_192 : f32 to vector<8x192xf32>
    %520 = arith.mulf %518, %519 : vector<8x192xf32>
    %c21 = arith.constant 21 : index
    %c0_193 = arith.constant 0 : index
    %521 = vector.load %arg9[%c21, %c0_193] : memref<26x192xf32, #tpu.memory_space<vmem>>, vector<1x192xf32>
    %c22 = arith.constant 22 : index
    %c0_194 = arith.constant 0 : index
    %522 = vector.load %arg9[%c22, %c0_194] : memref<26x192xf32, #tpu.memory_space<vmem>>, vector<1x192xf32>
    %cst_195 = arith.constant dense<0.000000e+00> : vector<192xf32>
    %523 = vector.multi_reduction <add>, %520, %cst_195 [0] : vector<8x192xf32> to vector<192xf32>
    %524 = vector.shape_cast %523 : vector<192xf32> to vector<1x192xf32>
    %cst_196 = arith.constant 8.000000e+00 : f32
    %525 = vector.broadcast %cst_196 : f32 to vector<1x192xf32>
    %526 = arith.divf %524, %525 : vector<1x192xf32>
    %527 = vector.broadcast %526 : vector<1x192xf32> to vector<8x192xf32>
    %528 = arith.subf %520, %527 : vector<8x192xf32>
    %529 = arith.mulf %528, %528 : vector<8x192xf32>
    %cst_197 = arith.constant dense<0.000000e+00> : vector<192xf32>
    %530 = vector.multi_reduction <add>, %529, %cst_197 [0] : vector<8x192xf32> to vector<192xf32>
    %531 = vector.shape_cast %530 : vector<192xf32> to vector<1x192xf32>
    %cst_198 = arith.constant 8.000000e+00 : f32
    %532 = vector.broadcast %cst_198 : f32 to vector<1x192xf32>
    %533 = arith.divf %531, %532 : vector<1x192xf32>
    %534 = vector.broadcast %526 : vector<1x192xf32> to vector<8x192xf32>
    %535 = arith.subf %520, %534 : vector<8x192xf32>
    %536 = vector.broadcast %521 : vector<1x192xf32> to vector<8x192xf32>
    %537 = arith.mulf %536, %535 : vector<8x192xf32>
    %cst_199 = arith.constant 9.99999974E-6 : f32
    %538 = vector.broadcast %cst_199 : f32 to vector<1x192xf32>
    %539 = arith.addf %533, %538 : vector<1x192xf32>
    %540 = math.rsqrt %539 : vector<1x192xf32>
    %541 = vector.broadcast %540 : vector<1x192xf32> to vector<8x192xf32>
    %542 = arith.mulf %537, %541 : vector<8x192xf32>
    %543 = vector.broadcast %522 : vector<1x192xf32> to vector<8x192xf32>
    %544 = arith.addf %542, %543 : vector<8x192xf32>
    %c6_200 = arith.constant 6 : index
    %545 = memref.load %arg10[%c6_200] : memref<8xf32, #tpu.memory_space<smem>>
    %cst_201 = arith.constant 0.000000e+00 : f32
    %546 = vector.broadcast %cst_201 : f32 to vector<8x192xf32>
    %547 = arith.cmpf oge, %544, %546 : vector<8x192xf32>
    %548 = vector.broadcast %545 : f32 to vector<8x192xf32>
    %549 = arith.mulf %548, %544 : vector<8x192xf32>
    %550 = arith.select %547, %544, %549 : vector<8x192xi1>, vector<8x192xf32>
    %c23 = arith.constant 23 : index
    %c0_202 = arith.constant 0 : index
    %551 = vector.load %arg9[%c23, %c0_202] : memref<26x192xf32, #tpu.memory_space<vmem>>, vector<1x192xf32>
    %c0_203 = arith.constant 0 : index
    %c0_204 = arith.constant 0 : index
    %552 = vector.load %arg23[%c0_203, %c0_204] : memref<192x192xf32, #tpu.memory_space<vmem>>, vector<192x192xf32>
    %cst_205 = arith.constant dense<0.000000e+00> : vector<8x192xf32>
    %553 = tpu.matmul %550, %552, %cst_205 {dimension_numbers = #tpu.dot_dimension_numbers<[1], [0], [0], [1], [0, 0, 1, 1], [], []>} : vector<8x192xf32>, vector<192x192xf32>, vector<8x192xf32> -> vector<8x192xf32>
    %554 = vector.broadcast %551 : vector<1x192xf32> to vector<8x192xf32>
    %555 = arith.addf %553, %554 : vector<8x192xf32>
    %556 = arith.addf %555, %520 : vector<8x192xf32>
    %cst_206 = arith.constant 5.000000e-01 : f32
    %557 = vector.broadcast %cst_206 : f32 to vector<8x192xf32>
    %558 = arith.mulf %556, %557 : vector<8x192xf32>
    %c24 = arith.constant 24 : index
    %c0_207 = arith.constant 0 : index
    %559 = vector.load %arg9[%c24, %c0_207] : memref<26x192xf32, #tpu.memory_space<vmem>>, vector<1x192xf32>
    %c25 = arith.constant 25 : index
    %c0_208 = arith.constant 0 : index
    %560 = vector.load %arg9[%c25, %c0_208] : memref<26x192xf32, #tpu.memory_space<vmem>>, vector<1x192xf32>
    %cst_209 = arith.constant dense<0.000000e+00> : vector<192xf32>
    %561 = vector.multi_reduction <add>, %558, %cst_209 [0] : vector<8x192xf32> to vector<192xf32>
    %562 = vector.shape_cast %561 : vector<192xf32> to vector<1x192xf32>
    %cst_210 = arith.constant 8.000000e+00 : f32
    %563 = vector.broadcast %cst_210 : f32 to vector<1x192xf32>
    %564 = arith.divf %562, %563 : vector<1x192xf32>
    %565 = vector.broadcast %564 : vector<1x192xf32> to vector<8x192xf32>
    %566 = arith.subf %558, %565 : vector<8x192xf32>
    %567 = arith.mulf %566, %566 : vector<8x192xf32>
    %cst_211 = arith.constant dense<0.000000e+00> : vector<192xf32>
    %568 = vector.multi_reduction <add>, %567, %cst_211 [0] : vector<8x192xf32> to vector<192xf32>
    %569 = vector.shape_cast %568 : vector<192xf32> to vector<1x192xf32>
    %cst_212 = arith.constant 8.000000e+00 : f32
    %570 = vector.broadcast %cst_212 : f32 to vector<1x192xf32>
    %571 = arith.divf %569, %570 : vector<1x192xf32>
    %572 = vector.broadcast %564 : vector<1x192xf32> to vector<8x192xf32>
    %573 = arith.subf %558, %572 : vector<8x192xf32>
    %574 = vector.broadcast %559 : vector<1x192xf32> to vector<8x192xf32>
    %575 = arith.mulf %574, %573 : vector<8x192xf32>
    %cst_213 = arith.constant 9.99999974E-6 : f32
    %576 = vector.broadcast %cst_213 : f32 to vector<1x192xf32>
    %577 = arith.addf %571, %576 : vector<1x192xf32>
    %578 = math.rsqrt %577 : vector<1x192xf32>
    %579 = vector.broadcast %578 : vector<1x192xf32> to vector<8x192xf32>
    %580 = arith.mulf %575, %579 : vector<8x192xf32>
    %581 = vector.broadcast %560 : vector<1x192xf32> to vector<8x192xf32>
    %582 = arith.addf %580, %581 : vector<8x192xf32>
    %c7_214 = arith.constant 7 : index
    %583 = memref.load %arg10[%c7_214] : memref<8xf32, #tpu.memory_space<smem>>
    %cst_215 = arith.constant 0.000000e+00 : f32
    %584 = vector.broadcast %cst_215 : f32 to vector<8x192xf32>
    %585 = arith.cmpf oge, %582, %584 : vector<8x192xf32>
    %586 = vector.broadcast %583 : f32 to vector<8x192xf32>
    %587 = arith.mulf %586, %582 : vector<8x192xf32>
    %588 = arith.select %585, %582, %587 : vector<8x192xi1>, vector<8x192xf32>
    %c13 = arith.constant 13 : index
    %c0_216 = arith.constant 0 : index
    %589 = vector.load %arg9[%c13, %c0_216] : memref<26x192xf32, #tpu.memory_space<vmem>>, vector<1x32xf32>
    %c0_217 = arith.constant 0 : index
    %c0_218 = arith.constant 0 : index
    %590 = vector.load %arg24[%c0_217, %c0_218] : memref<192x32xf32, #tpu.memory_space<vmem>>, vector<192x32xf32>
    %cst_219 = arith.constant dense<0.000000e+00> : vector<8x32xf32>
    %591 = tpu.matmul %588, %590, %cst_219 {dimension_numbers = #tpu.dot_dimension_numbers<[1], [0], [0], [1], [0, 0, 1, 1], [], []>} : vector<8x192xf32>, vector<192x32xf32>, vector<8x32xf32> -> vector<8x32xf32>
    %592 = vector.broadcast %589 : vector<1x32xf32> to vector<8x32xf32>
    %593 = arith.addf %591, %592 : vector<8x32xf32>
    %c0_220 = arith.constant 0 : index
    %c0_221 = arith.constant 0 : index
    %594 = vector.load %arg25[%c0_220, %c0_221] : memref<8x32xf32, #tpu.memory_space<vmem>>, vector<8x32xf32>
    tpu.vector_store %arg25[%c0_220, %c0_221], %593 {strides = array<i32>} : memref<8x32xf32, #tpu.memory_space<vmem>>, vector<8x32xf32>,
    return
  }
}

</mosaic_0001>

<llo_original>
// kernel: drug_encoder_forward.1
$region0: #{drug_encoder_forward.1}
  #allocation0 [shape = 'u32[]', space=smem, size = 0x4, offset = 0x4, fixed_abs, tag = 'smem constant byte address 0x4 - core index']
  #allocation1 [shape = 'u32[72,128]{1,0:T(1,128)}', space=vmem, size = 0x9000, scoped, tag = 'internal scratch']
  %s0 = inlined_call_operand.vmem [shape: f32[8,16], index: 0, kind: input, shape index: {}]
  %s1 = inlined_call_operand.vmem [shape: f32[16,8], index: 1, kind: input, shape index: {}]
  %s2 = inlined_call_operand.vmem [shape: f32[16,8], index: 2, kind: input, shape index: {}]
  %s3 = inlined_call_operand.vmem [shape: f32[16,8], index: 3, kind: input, shape index: {}]
  %s4 = inlined_call_operand.vmem [shape: f32[8,16], index: 4, kind: input, shape index: {}]
  %s5 = inlined_call_operand.vmem [shape: f32[16,16], index: 5, kind: input, shape index: {}]
  %s6 = inlined_call_operand.vmem [shape: f32[16,16], index: 6, kind: input, shape index: {}]
  %s7 = inlined_call_operand.vmem [shape: f32[2,16], index: 7, kind: input, shape index: {}]
  %s8 = inlined_call_operand.vmem [shape: f32[16,2], index: 8, kind: input, shape index: {}]
  %s9 = inlined_call_operand.vmem [shape: f32[26,192], index: 9, kind: input, shape index: {}]
  %s10 = inlined_call_operand.vmem [shape: f32[8], index: 10, kind: input, shape index: {}]
  %s11 = inlined_call_operand.vmem [shape: f32[16,32], index: 11, kind: input, shape index: {}]
  %s12 = inlined_call_operand.vmem [shape: f32[32,32], index: 12, kind: input, shape index: {}]
  %s13 = inlined_call_operand.vmem [shape: f32[32,32], index: 13, kind: input, shape index: {}]
  %s14 = inlined_call_operand.vmem [shape: f32[32,32], index: 14, kind: input, shape index: {}]
  %s15 = inlined_call_operand.vmem [shape: f32[32,32], index: 15, kind: input, shape index: {}]
  %s16 = inlined_call_operand.vmem [shape: f32[8,32], index: 16, kind: input, shape index: {}]
  %s17 = inlined_call_operand.vmem [shape: f32[32,35], index: 17, kind: input, shape index: {}]
  %s18 = inlined_call_operand.vmem [shape: f32[32,32], index: 18, kind: input, shape index: {}]
  %s19 = inlined_call_operand.vmem [shape: f32[32,4], index: 19, kind: input, shape index: {}]
  %s20 = inlined_call_operand.vmem [shape: f32[32,192], index: 20, kind: input, shape index: {}]
  %s21 = inlined_call_operand.vmem [shape: f32[192,192], index: 21, kind: input, shape index: {}]
  %s22 = inlined_call_operand.vmem [shape: f32[192,192], index: 22, kind: input, shape index: {}]
  %s23 = inlined_call_operand.vmem [shape: f32[192,192], index: 23, kind: input, shape index: {}]
  %s24 = inlined_call_operand.vmem [shape: f32[192,32], index: 24, kind: input, shape index: {}]
  %s25 = inlined_call_operand.hbm [shape: f32[8,32], index: 25, kind: output, shape index: {}]
  %s26 = sld [smem:[#allocation0]]
  $region114: #{drug_encoder_forward.1} parent=0
    _
  %s28 = ssub.s32 1, %s26
  %s29 = scalar_select 0, %s28, %s26
  $region1: #{drug_encoder_forward.1} parent=0
    #allocation2 [shape = 'u8[512]{0}', space=smem, size = 0x200, scoped, tag = 'input window, operand 10, single buffered']
    #allocation3 [shape = 's32[1]{0}', space=sflag, size = 0x4, scoped, tag = 'scoped memory for drug_encoder_forward.1']
    #allocation4 [shape = 's32[1]{0}', space=sflag, size = 0x4, scoped, tag = 'scoped memory for drug_encoder_forward.1']
    #allocation5 [shape = 'u8[4096]{0}', space=vmem, size = 0x1000, scoped, tag = 'output window, operand 0, single buffered']
    %30 = vsyncpa [#allocation4], 0
    %31 = vsyncpa [#allocation3], 0
    // Predicated region
    $region2: #{drug_encoder_forward.1} parent=1 // pred_check
      _
    $region3: #{drug_encoder_forward.1} parent=1 // pred_check_branch
      %33 = sbr.rel (0) target = $region5
    $region4: #{drug_encoder_forward.1} parent=1 // pred_region
      _
    $region5: #{drug_encoder_forward.1} parent=1 // pred_fallthru
      _
    // Predicated region
    $region6: #{drug_encoder_forward.1} parent=1 // pred_check
      _
    $region7: #{drug_encoder_forward.1} parent=1 // pred_check_branch
      %35 = sbr.rel (0) target = $region9
    $region8: #{drug_encoder_forward.1} parent=1 // pred_region
      _
    $region9: #{drug_encoder_forward.1} parent=1 // pred_fallthru
      _
    // Predicated region
    $region10: #{drug_encoder_forward.1} parent=1 // pred_check
      _
    $region11: #{drug_encoder_forward.1} parent=1 // pred_check_branch
      %37 = sbr.rel (0) target = $region13
    $region12: #{drug_encoder_forward.1} parent=1 // pred_region
      _
    $region13: #{drug_encoder_forward.1} parent=1 // pred_fallthru
      _
    // Predicated region
    $region14: #{drug_encoder_forward.1} parent=1 // pred_check
      _
    $region15: #{drug_encoder_forward.1} parent=1 // pred_check_branch
      %39 = sbr.rel (0) target = $region17
    $region16: #{drug_encoder_forward.1} parent=1 // pred_region
      _
    $region17: #{drug_encoder_forward.1} parent=1 // pred_fallthru
      _
    // Predicated region
    $region18: #{drug_encoder_forward.1} parent=1 // pred_check
      _
    $region19: #{drug_encoder_forward.1} parent=1 // pred_check_branch
      %41 = sbr.rel (0) target = $region21
    $region20: #{drug_encoder_forward.1} parent=1 // pred_region
      _
    $region21: #{drug_encoder_forward.1} parent=1 // pred_fallthru
      _
    // Predicated region
    $region22: #{drug_encoder_forward.1} parent=1 // pred_check
      _
    $region23: #{drug_encoder_forward.1} parent=1 // pred_check_branch
      %43 = sbr.rel (0) target = $region25
    $region24: #{drug_encoder_forward.1} parent=1 // pred_region
      _
    $region25: #{drug_encoder_forward.1} parent=1 // pred_fallthru
      _
    // Predicated region
    $region26: #{drug_encoder_forward.1} parent=1 // pred_check
      _
    $region27: #{drug_encoder_forward.1} parent=1 // pred_check_branch
      %45 = sbr.rel (0) target = $region29
    $region28: #{drug_encoder_forward.1} parent=1 // pred_region
      _
    $region29: #{drug_encoder_forward.1} parent=1 // pred_fallthru
      _
    // Predicated region
    $region30: #{drug_encoder_forward.1} parent=1 // pred_check
      _
    $region31: #{drug_encoder_forward.1} parent=1 // pred_check_branch
      %47 = sbr.rel (0) target = $region33
    $region32: #{drug_encoder_forward.1} parent=1 // pred_region
      _
    $region33: #{drug_encoder_forward.1} parent=1 // pred_fallthru
      _
    // Predicated region
    $region34: #{drug_encoder_forward.1} parent=1 // pred_check
      _
    $region35: #{drug_encoder_forward.1} parent=1 // pred_check_branch
      %49 = sbr.rel (0) target = $region37
    $region36: #{drug_encoder_forward.1} parent=1 // pred_region
      _
    $region37: #{drug_encoder_forward.1} parent=1 // pred_fallthru
      _
    // Predicated region
    $region38: #{drug_encoder_forward.1} parent=1 // pred_check
      _
    $region39: #{drug_encoder_forward.1} parent=1 // pred_check_branch
      %51 = sbr.rel (0) target = $region41
    $region40: #{drug_encoder_forward.1} parent=1 // pred_region
      _
    $region41: #{drug_encoder_forward.1} parent=1 // pred_fallthru
      _
    // Predicated region
    $region42: #{drug_encoder_forward.1} parent=1 // pred_check
      _
    $region43: #{drug_encoder_forward.1} parent=1 // pred_check_branch
      %53 = sbr.rel (0) target = $region45
    $region44: #{drug_encoder_forward.1} parent=1 // pred_region
      %55 = vsyncadd [#allocation4], 0
      %s57 = sshll.u32 %s10, 4
      %s58 = int_to_ptr.vmem [resolvable:$true] %s57
      %60 = dma.vmem_to_smem %s58, 16, [#allocation2], [#allocation4]
    $region45: #{drug_encoder_forward.1} parent=1 // pred_fallthru
      _
    // Predicated region
    $region46: #{drug_encoder_forward.1} parent=1 // pred_check
      _
    $region47: #{drug_encoder_forward.1} parent=1 // pred_check_branch
      %62 = sbr.rel (0) target = $region49
    $region48: #{drug_encoder_forward.1} parent=1 // pred_region
      _
    $region49: #{drug_encoder_forward.1} parent=1 // pred_fallthru
      _
    // Predicated region
    $region50: #{drug_encoder_forward.1} parent=1 // pred_check
      _
    $region51: #{drug_encoder_forward.1} parent=1 // pred_check_branch
      %64 = sbr.rel (0) target = $region53
    $region52: #{drug_encoder_forward.1} parent=1 // pred_region
      _
    $region53: #{drug_encoder_forward.1} parent=1 // pred_fallthru
      _
    // Predicated region
    $region54: #{drug_encoder_forward.1} parent=1 // pred_check
      _
    $region55: #{drug_encoder_forward.1} parent=1 // pred_check_branch
      %66 = sbr.rel (0) target = $region57
    $region56: #{drug_encoder_forward.1} parent=1 // pred_region
      _
    $region57: #{drug_encoder_forward.1} parent=1 // pred_fallthru
      _
    // Predicated region
    $region58: #{drug_encoder_forward.1} parent=1 // pred_check
      _
    $region59: #{drug_encoder_forward.1} parent=1 // pred_check_branch
      %68 = sbr.rel (0) target = $region61
    $region60: #{drug_encoder_forward.1} parent=1 // pred_region
      _
    $region61: #{drug_encoder_forward.1} parent=1 // pred_fallthru
      _
    // Predicated region
    $region62: #{drug_encoder_forward.1} parent=1 // pred_check
      _
    $region63: #{drug_encoder_forward.1} parent=1 // pred_check_branch
      %70 = sbr.rel (0) target = $region65
    $region64: #{drug_encoder_forward.1} parent=1 // pred_region
      _
    $region65: #{drug_encoder_forward.1} parent=1 // pred_fallthru
      _
    // Predicated region
    $region66: #{drug_encoder_forward.1} parent=1 // pred_check
      _
    $region67: #{drug_encoder_forward.1} parent=1 // pred_check_branch
      %72 = sbr.rel (0) target = $region69
    $region68: #{drug_encoder_forward.1} parent=1 // pred_region
      _
    $region69: #{drug_encoder_forward.1} parent=1 // pred_fallthru
      _
    // Predicated region
    $region70: #{drug_encoder_forward.1} parent=1 // pred_check
      _
    $region71: #{drug_encoder_forward.1} parent=1 // pred_check_branch
      %74 = sbr.rel (0) target = $region73
    $region72: #{drug_encoder_forward.1} parent=1 // pred_region
      _
    $region73: #{drug_encoder_forward.1} parent=1 // pred_fallthru
      _
    // Predicated region
    $region74: #{drug_encoder_forward.1} parent=1 // pred_check
      _
    $region75: #{drug_encoder_forward.1} parent=1 // pred_check_branch
      %76 = sbr.rel (0) target = $region77
    $region76: #{drug_encoder_forward.1} parent=1 // pred_region
      _
    $region77: #{drug_encoder_forward.1} parent=1 // pred_fallthru
      _
    // Predicated region
    $region78: #{drug_encoder_forward.1} parent=1 // pred_check
      _
    $region79: #{drug_encoder_forward.1} parent=1 // pred_check_branch
      %78 = sbr.rel (0) target = $region81
    $region80: #{drug_encoder_forward.1} parent=1 // pred_region
      _
    $region81: #{drug_encoder_forward.1} parent=1 // pred_fallthru
      _
    // Predicated region
    $region82: #{drug_encoder_forward.1} parent=1 // pred_check
      _
    $region83: #{drug_encoder_forward.1} parent=1 // pred_check_branch
      %80 = sbr.rel (0) target = $region85
    $region84: #{drug_encoder_forward.1} parent=1 // pred_region
      _
    $region85: #{drug_encoder_forward.1} parent=1 // pred_fallthru
      _
    // Predicated region
    $region86: #{drug_encoder_forward.1} parent=1 // pred_check
      _
    $region87: #{drug_encoder_forward.1} parent=1 // pred_check_branch
      %82 = sbr.rel (0) target = $region89
    $region88: #{drug_encoder_forward.1} parent=1 // pred_region
      _
    $region89: #{drug_encoder_forward.1} parent=1 // pred_fallthru
      _
    // Predicated region
    $region90: #{drug_encoder_forward.1} parent=1 // pred_check
      _
    $region91: #{drug_encoder_forward.1} parent=1 // pred_check_branch
      %84 = sbr.rel (0) target = $region93
    $region92: #{drug_encoder_forward.1} parent=1 // pred_region
      _
    $region93: #{drug_encoder_forward.1} parent=1 // pred_fallthru
      _
    // Predicated region
    $region94: #{drug_encoder_forward.1} parent=1 // pred_check
      _
    $region95: #{drug_encoder_forward.1} parent=1 // pred_check_branch
      %86 = sbr.rel (0) target = $region97
    $region96: #{drug_encoder_forward.1} parent=1 // pred_region
      _
    $region97: #{drug_encoder_forward.1} parent=1 // pred_fallthru
      _
    // Predicated region
    $region98: #{drug_encoder_forward.1} parent=1 // pred_check
      _
    $region99: #{drug_encoder_forward.1} parent=1 // pred_check_branch
      %88 = sbr.rel (0) target = $region101
    $region100: #{drug_encoder_forward.1} parent=1 // pred_region
      _
    $region101: #{drug_encoder_forward.1} parent=1 // pred_fallthru
      _
    // Predicated region
    $region102: #{drug_encoder_forward.1} parent=1 // pred_check
      _
    $region103: #{drug_encoder_forward.1} parent=1 // pred_check_branch
      %90 = sbr.rel (0) target = $region105
    $region104: #{drug_encoder_forward.1} parent=1 // pred_region
      %92 = dma.done [#allocation4], 16
    $region105: #{drug_encoder_forward.1} parent=1 // pred_fallthru
      _
    %93 = sfence
    %v94 = vld [vmem:[%s0] sm:$0xff]
    %v95 = vld [vmem:[%s9] ss:$0 sm:$0xff]
    %v96 = vld [vmem:[%s11] sm:$0xff]
    %v97 = vld [vmem:[%s11 + $0x8] sm:$0xff]
    %vm98 = vcmask 130048
    %v100 = vsel %vm98, %v94, 0
    %102 = vmatpush.msra.mxu0 0.0
    %103 = vmatpush.msra.mxu0 0.0
    %104 = vmatpush.msra.mxu0 0.0
    %105 = vmatpush.msra.mxu0 0.0
    %106 = vmatpush.msra.mxu0 0.0
    %107 = vmatpush.msra.mxu0 0.0
    %108 = vmatpush.msra.mxu0 0.0
    %109 = vmatpush.msra.mxu0 0.0
    %110 = vmatpush.msra.mxu0 0.0
    %111 = vmatpush.msra.mxu0 0.0
    %112 = vmatpush.msra.mxu0 0.0
    %113 = vmatpush.msra.mxu0 0.0
    %114 = vmatpush.msra.mxu0 0.0
    %115 = vmatpush.msra.mxu0 0.0
    %116 = vmatpush.msra.mxu0 %v97
    %117 = vmatpush.msra.mxu0 %v96
    %118 = vmatmul.f32.gmra.mxu0 %v100
    %v119 = vpop.f32.mrf.mxu0
    %v120 = vadd.f32 %v95, %v119
    %121 = vdwg.mxu0
    %s122 = sld [smem:[#allocation2]]
    %vm123 = vcmp.ge.f32.partialorder %v120, 0.0
    %v124 = vstv %s122
    %v125 = vmul.f32 %v124, %v120
    %v126 = vsel %vm123, %v120, %v125
    %v127 = vld [vmem:[%s9 + $0x1] ss:$0 sm:$0xff]
    %v128 = vld [vmem:[%s12] sm:$0xff]
    %v129 = vld [vmem:[%s12 + $0x8] sm:$0xff]
    %v130 = vld [vmem:[%s12 + $0x10] sm:$0xff]
    %v131 = vld [vmem:[%s12 + $0x18] sm:$0xff]
    %vm132 = vcmask 261120
    %v134 = vsel %vm132, %v126, 0
    %136 = vmatpush.msra.mxu0 0.0
    %137 = vmatpush.msra.mxu0 0.0
    %138 = vmatpush.msra.mxu0 0.0
    %139 = vmatpush.msra.mxu0 0.0
    %140 = vmatpush.msra.mxu0 0.0
    %141 = vmatpush.msra.mxu0 0.0
    %142 = vmatpush.msra.mxu0 0.0
    %143 = vmatpush.msra.mxu0 0.0
    %144 = vmatpush.msra.mxu0 0.0
    %145 = vmatpush.msra.mxu0 0.0
    %146 = vmatpush.msra.mxu0 0.0
    %147 = vmatpush.msra.mxu0 0.0
    %148 = vmatpush.msra.mxu0 %v131
    %149 = vmatpush.msra.mxu0 %v130
    %150 = vmatpush.msra.mxu0 %v129
    %151 = vmatpush.msra.mxu0 %v128
    %152 = vmatmul.f32.gmra.mxu0 %v134
    %v153 = vpop.f32.mrf.mxu0
    %v154 = vadd.f32 %v127, %v153
    %155 = vdwg.mxu0
    %v156 = vld [vmem:[%s9 + $0x2] ss:$0 sm:$0xff]
    %v157 = vld [vmem:[%s9 + $0x3] ss:$0 sm:$0xff]
    %v158 = vsel %vm132, %v154, 0.0
    %v159 = vrot.slane %v158, 4
    %v160 = vadd.f32 %v158, %v159
    %v161 = vrot.slane %v160, 2
    %v162 = vadd.f32 %v160, %v161
    %v163 = vrot.slane %v162, 1
    %v164 = vadd.f32 %v162, %v163
    %v165 = vrcp.pop 8.0
    %v166 = vmul.f32 8.0, %v165
    %v167 = vsub.f32 1.0, %v166
    %v168 = vmul.f32 %v165, %v167
    %v169 = vadd.f32 %v165, %v168
    %vm170 = vweird.f32 %v165
    %v171 = vsel %vm170, %v165, %v169
    %v172 = vmul.f32 %v164, %v171
    %v173 = vsub.f32 %v154, %v172
    %v174 = vmul.f32 %v173, %v173
    %v175 = vsel %vm132, %v174, 0.0
    %v176 = vrot.slane %v175, 4
    %v177 = vadd.f32 %v175, %v176
    %v178 = vrot.slane %v177, 2
    %v179 = vadd.f32 %v177, %v178
    %v180 = vrot.slane %v179, 1
    %v181 = vadd.f32 %v179, %v180
    %v182 = vmul.f32 %v181, %v171
    %v183 = vmul.f32 %v156, %v173
    %v184 = vadd.f32 %v182, 1e-05
    %v185 = vrsqrt.pop %v184
    %v186 = vmul.f32 %v185, %v184
    %v187 = vmul.f32 %v186, %v185
    %v188 = vmul.f32 0.5, %v187
    %v189 = vsub.f32 1.5, %v188
    %v190 = vmul.f32 %v185, %v189
    %vm191 = vweird.f32 %v184
    %vm192 = vweird.f32 %v185
    %vm193 = vmor %vm191, %vm192
    %v194 = vsel %vm193, %v185, %v190
    %v195 = vmul.f32 %v183, %v194
    %v196 = vadd.f32 %v195, %v157
    %s197 = sld [smem:[#allocation2 + $0x1]]
    %vm198 = vcmp.ge.f32.partialorder %v196, 0.0
    %v199 = vstv %s197
    %v200 = vmul.f32 %v199, %v196
    %v201 = vsel %vm198, %v196, %v200
    %v202 = vld [vmem:[%s9 + $0x4] ss:$0 sm:$0xff]
    %v203 = vld [vmem:[%s13] sm:$0xff]
    %v204 = vld [vmem:[%s13 + $0x8] sm:$0xff]
    %v205 = vld [vmem:[%s13 + $0x10] sm:$0xff]
    %v206 = vld [vmem:[%s13 + $0x18] sm:$0xff]
    %v208 = vsel %vm132, %v201, 0
    %210 = vmatpush.msra.mxu0 0.0
    %211 = vmatpush.msra.mxu0 0.0
    %212 = vmatpush.msra.mxu0 0.0
    %213 = vmatpush.msra.mxu0 0.0
    %214 = vmatpush.msra.mxu0 0.0
    %215 = vmatpush.msra.mxu0 0.0
    %216 = vmatpush.msra.mxu0 0.0
    %217 = vmatpush.msra.mxu0 0.0
    %218 = vmatpush.msra.mxu0 0.0
    %219 = vmatpush.msra.mxu0 0.0
    %220 = vmatpush.msra.mxu0 0.0
    %221 = vmatpush.msra.mxu0 0.0
    %222 = vmatpush.msra.mxu0 %v206
    %223 = vmatpush.msra.mxu0 %v205
    %224 = vmatpush.msra.mxu0 %v204
    %225 = vmatpush.msra.mxu0 %v203
    %226 = vmatmul.f32.gmra.mxu0 %v208
    %v227 = vpop.f32.mrf.mxu0
    %v228 = vadd.f32 %v202, %v227
    %229 = vdwg.mxu0
    %v230 = vld [vmem:[%s9 + $0x5] ss:$0 sm:$0xff]
    %v231 = vld [vmem:[%s9 + $0x6] ss:$0 sm:$0xff]
    %v232 = vsel %vm132, %v228, 0.0
    %v233 = vrot.slane %v232, 4
    %v234 = vadd.f32 %v232, %v233
    %v235 = vrot.slane %v234, 2
    %v236 = vadd.f32 %v234, %v235
    %v237 = vrot.slane %v236, 1
    %v238 = vadd.f32 %v236, %v237
    %v239 = vmul.f32 %v238, %v171
    %v240 = vsub.f32 %v228, %v239
    %v241 = vmul.f32 %v240, %v240
    %v242 = vsel %vm132, %v241, 0.0
    %v243 = vrot.slane %v242, 4
    %v244 = vadd.f32 %v242, %v243
    %v245 = vrot.slane %v244, 2
    %v246 = vadd.f32 %v244, %v245
    %v247 = vrot.slane %v246, 1
    %v248 = vadd.f32 %v246, %v247
    %v249 = vmul.f32 %v248, %v171
    %v250 = vmul.f32 %v230, %v240
    %v251 = vadd.f32 %v249, 1e-05
    %v252 = vrsqrt.pop %v251
    %v253 = vmul.f32 %v252, %v251
    %v254 = vmul.f32 %v253, %v252
    %v255 = vmul.f32 0.5, %v254
    %v256 = vsub.f32 1.5, %v255
    %v257 = vmul.f32 %v252, %v256
    %vm258 = vweird.f32 %v251
    %vm259 = vweird.f32 %v252
    %vm260 = vmor %vm258, %vm259
    %v261 = vsel %vm260, %v252, %v257
    %v262 = vmul.f32 %v250, %v261
    %v263 = vadd.f32 %v262, %v231
    %v264 = vld [vmem:[%s14] sm:$0xff]
    %v265 = vld [vmem:[%s14 + $0x8] sm:$0xff]
    %v266 = vld [vmem:[%s14 + $0x10] sm:$0xff]
    %v267 = vld [vmem:[%s14 + $0x18] sm:$0xff]
    %v269 = vsel %vm132, %v263, 0
    %271 = vmatpush.msra.mxu0 0.0
    %272 = vmatpush.msra.mxu0 0.0
    %273 = vmatpush.msra.mxu0 0.0
    %274 = vmatpush.msra.mxu0 0.0
    %275 = vmatpush.msra.mxu0 0.0
    %276 = vmatpush.msra.mxu0 0.0
    %277 = vmatpush.msra.mxu0 0.0
    %278 = vmatpush.msra.mxu0 0.0
    %279 = vmatpush.msra.mxu0 0.0
    %280 = vmatpush.msra.mxu0 0.0
    %281 = vmatpush.msra.mxu0 0.0
    %282 = vmatpush.msra.mxu0 0.0
    %283 = vmatpush.msra.mxu0 %v267
    %284 = vmatpush.msra.mxu0 %v266
    %285 = vmatpush.msra.mxu0 %v265
    %286 = vmatpush.msra.mxu0 %v264
    %287 = vmatmul.f32.gmra.mxu0 %v269
    %v288 = vpop.f32.mrf.mxu0
    %v289 = vadd.f32 0.0, %v288
    %290 = vdwg.mxu0
    %v291 = vld [vmem:[%s15] sm:$0xff]
    %v292 = vld [vmem:[%s15 + $0x8] sm:$0xff]
    %v293 = vld [vmem:[%s15 + $0x10] sm:$0xff]
    %v294 = vld [vmem:[%s15 + $0x18] sm:$0xff]
    %295 = vmatpush.msra.mxu0 0.0
    %296 = vmatpush.msra.mxu0 0.0
    %297 = vmatpush.msra.mxu0 0.0
    %298 = vmatpush.msra.mxu0 0.0
    %299 = vmatpush.msra.mxu0 0.0
    %300 = vmatpush.msra.mxu0 0.0
    %301 = vmatpush.msra.mxu0 0.0
    %302 = vmatpush.msra.mxu0 0.0
    %303 = vmatpush.msra.mxu0 0.0
    %304 = vmatpush.msra.mxu0 0.0
    %305 = vmatpush.msra.mxu0 0.0
    %306 = vmatpush.msra.mxu0 0.0
    %307 = vmatpush.msra.mxu0 %v294
    %308 = vmatpush.msra.mxu0 %v293
    %309 = vmatpush.msra.mxu0 %v292
    %310 = vmatpush.msra.mxu0 %v291
    %311 = vmatmul.f32.gmra.mxu0 %v269
    %v312 = vpop.f32.mrf.mxu0
    %v313 = vadd.f32 0.0, %v312
    %314 = vdwg.mxu0
    %v315 = vld [vmem:[%s2] sm:$0xff]
    %v316 = vld [vmem:[%s2 + $0x8] sm:$0xff]
    %v317 = vld [vmem:[%s3] sm:$0xff]
    %v318 = vld [vmem:[%s3 + $0x8] sm:$0xff]
    %vm319 = vcmask 64512
    %v321 = vsel %vm319, %v317, 0
    %v324 = vsel %vm319, %v318, 0
    %326 = vmatpush.msra.mxu0 0.0
    %327 = vmatpush.msra.mxu0 0.0
    %328 = vmatpush.msra.mxu0 0.0
    %329 = vmatpush.msra.mxu0 0.0
    %330 = vmatpush.msra.mxu0 0.0
    %331 = vmatpush.msra.mxu0 0.0
    %332 = vmatpush.msra.mxu0 0.0
    %333 = vmatpush.msra.mxu0 0.0
    %334 = vmatpush.msra.mxu0 0.0
    %335 = vmatpush.msra.mxu0 0.0
    %336 = vmatpush.msra.mxu0 0.0
    %337 = vmatpush.msra.mxu0 0.0
    %338 = vmatpush.msra.mxu0 0.0
    %339 = vmatpush.msra.mxu0 0.0
    %340 = vmatpush.msra.mxu0 0.0
    %341 = vmatpush.msra.mxu0 %v313
    %342 = vmatmul.f32.gmra.mxu0 %v321
    %v343 = vpop.f32.mrf.mxu0
    %v344 = vadd.f32 0.0, %v343
    %345 = vmatmul.f32.gmra.mxu0 %v324
    %v346 = vpop.f32.mrf.mxu0
    %v347 = vadd.f32 0.0, %v346
    %348 = vdwg.mxu0
    %v350 = vsel %vm319, %v315, 0
    %v353 = vsel %vm319, %v316, 0
    %355 = vmatpush.msra.mxu0 0.0
    %356 = vmatpush.msra.mxu0 0.0
    %357 = vmatpush.msra.mxu0 0.0
    %358 = vmatpush.msra.mxu0 0.0
    %359 = vmatpush.msra.mxu0 0.0
    %360 = vmatpush.msra.mxu0 0.0
    %361 = vmatpush.msra.mxu0 0.0
    %362 = vmatpush.msra.mxu0 0.0
    %363 = vmatpush.msra.mxu0 0.0
    %364 = vmatpush.msra.mxu0 0.0
    %365 = vmatpush.msra.mxu0 0.0
    %366 = vmatpush.msra.mxu0 0.0
    %367 = vmatpush.msra.mxu0 0.0
    %368 = vmatpush.msra.mxu0 0.0
    %369 = vmatpush.msra.mxu0 0.0
    %370 = vmatpush.msra.mxu0 %v289
    %371 = vmatmul.f32.gmra.mxu0 %v350
    %v372 = vpop.f32.mrf.mxu0
    %v373 = vadd.f32 %v344, %v372
    %374 = vmatmul.f32.gmra.mxu0 %v353
    %v375 = vpop.f32.mrf.mxu0
    %v376 = vadd.f32 %v347, %v375
    %377 = vdwg.mxu0
    %v378 = vld [vmem:[%s1] sm:$0xff]
    %v379 = vld [vmem:[%s1 + $0x8] sm:$0xff]
    %v380 = vld [vmem:[%s16] sm:$0xff]
    %v382 = vsel %vm319, %v378, 0
    %v385 = vsel %vm319, %v379, 0
    %387 = vmatpush.msra.mxu0 0.0
    %388 = vmatpush.msra.mxu0 0.0
    %389 = vmatpush.msra.mxu0 0.0
    %390 = vmatpush.msra.mxu0 0.0
    %391 = vmatpush.msra.mxu0 0.0
    %392 = vmatpush.msra.mxu0 0.0
    %393 = vmatpush.msra.mxu0 0.0
    %394 = vmatpush.msra.mxu0 0.0
    %395 = vmatpush.msra.mxu0 0.0
    %396 = vmatpush.msra.mxu0 0.0
    %397 = vmatpush.msra.mxu0 0.0
    %398 = vmatpush.msra.mxu0 0.0
    %399 = vmatpush.msra.mxu0 0.0
    %400 = vmatpush.msra.mxu0 0.0
    %401 = vmatpush.msra.mxu0 0.0
    %402 = vmatpush.msra.mxu0 %v380
    %403 = vmatmul.f32.gmra.mxu0 %v382
    %v404 = vpop.f32.mrf.mxu0
    %v405 = vadd.f32 0.0, %v404
    %406 = vmatmul.f32.gmra.mxu0 %v385
    %v407 = vpop.f32.mrf.mxu0
    %v408 = vadd.f32 0.0, %v407
    %409 = vdwg.mxu0
    %v410 = vadd.f32 %v373, %v405
    %v411 = vadd.f32 %v376, %v408
    %v412 = vmul.f32 %v410, 0.33333334
    %v413 = vmul.f32 %v411, 0.33333334
    %v414 = vld [vmem:[%s5] sm:$0xff]
    %v415 = vld [vmem:[%s5 + $0x8] sm:$0xff]
    %v416 = vld [vmem:[%s6] sm:$0xff]
    %v417 = vld [vmem:[%s6 + $0x8] sm:$0xff]
    %v418 = vlaneseq
    %v419 = vshrl.u32 %v418, 7
    %v420 = vadd.s32 %v419, 8
    %v421 = vlaneseq
    %v422 = vand.u32 %v421, 127
    %vm423 = vcmp.gt.f32.partialorder %v414, 0.0
    %vm424 = vcmp.gt.f32.partialorder %v415, 0.0
    %vm425 = vcmp.eq.s32.totalorder %v419, %v422
    %vm426 = vcmp.eq.s32.totalorder %v420, %v422
    %vm427 = vmor %vm423, %vm425
    %vm428 = vmor %vm424, %vm426
    %v429 = vsel %vm427, 0.0, -1e+30
    %v430 = vsel %vm428, 0.0, -1e+30
    %v431 = vld [vmem:[%s7] sm:$0x3]
    %v432 = vld [vmem:[%s8] sm:$0xff]
    %v433 = vld [vmem:[%s8 + $0x8] sm:$0xff]
    %vm434 = vcmp.gt.f32.partialorder %v432, 0.0
    %vm435 = vcmp.gt.f32.partialorder %v433, 0.0
    %v436 = vld [vmem:[%s17] sm:$0xff]
    %v437 = vld [vmem:[%s17 + $0x8] sm:$0xff]
    %v438 = vld [vmem:[%s17 + $0x10] sm:$0xff]
    %v439 = vld [vmem:[%s17 + $0x18] sm:$0xff]
    %v440 = vld [vmem:[%s18] sm:$0xff]
    %v441 = vld [vmem:[%s18 + $0x8] sm:$0xff]
    %v442 = vld [vmem:[%s18 + $0x10] sm:$0xff]
    %v443 = vld [vmem:[%s18 + $0x18] sm:$0xff]
    %v444 = vld [vmem:[%s19] sm:$0xff]
    %v445 = vld [vmem:[%s19 + $0x8] sm:$0xff]
    %v446 = vld [vmem:[%s19 + $0x10] sm:$0xff]
    %v447 = vld [vmem:[%s19 + $0x18] sm:$0xff]
    %v448 = vld [vmem:[%s9 + $0x12] ss:$0 sm:$0xff]
    %v449 = vld [vmem:[%s9 + $0x7] ss:$0 sm:$0xff]
    %v450 = vld [vmem:[%s9 + $0x10] ss:$0 sm:$0xff]
    %s451 = sld [smem:[#allocation2 + $0x2]]
    %s452 = sld [smem:[#allocation2 + $0x3]]
    %v454 = vsel %vm98, %v414, 0
    %v457 = vsel %vm98, %v415, 0
    %459 = vmatpush.msra.mxu0 0.0
    %460 = vmatpush.msra.mxu0 0.0
    %461 = vmatpush.msra.mxu0 0.0
    %462 = vmatpush.msra.mxu0 0.0
    %463 = vmatpush.msra.mxu0 0.0
    %464 = vmatpush.msra.mxu0 0.0
    %465 = vmatpush.msra.mxu0 0.0
    %466 = vmatpush.msra.mxu0 0.0
    %467 = vmatpush.msra.mxu0 0.0
    %468 = vmatpush.msra.mxu0 0.0
    %469 = vmatpush.msra.mxu0 0.0
    %470 = vmatpush.msra.mxu0 0.0
    %471 = vmatpush.msra.mxu0 0.0
    %472 = vmatpush.msra.mxu0 0.0
    %473 = vmatpush.msra.mxu0 %v413
    %474 = vmatpush.msra.mxu0 %v412
    %475 = vmatmul.f32.gmra.mxu0 %v454
    %v476 = vpop.f32.mrf.mxu0
    %v477 = vadd.f32 0.0, %v476
    %478 = vmatmul.f32.gmra.mxu0 %v457
    %v479 = vpop.f32.mrf.mxu0
    %v480 = vadd.f32 0.0, %v479
    %481 = vdwg.mxu0
    %v482 = vadd.f32 %v412, %v477
    %v483 = vadd.f32 %v413, %v480
    %v485 = vsel %vm132, %v482, 0
    %v488 = vsel %vm132, %v483, 0
    %490 = vmatpush.msra.mxu0 0.0
    %491 = vmatpush.msra.mxu0 0.0
    %492 = vmatpush.msra.mxu0 0.0
    %493 = vmatpush.msra.mxu0 0.0
    %494 = vmatpush.msra.mxu0 0.0
    %495 = vmatpush.msra.mxu0 0.0
    %496 = vmatpush.msra.mxu0 0.0
    %497 = vmatpush.msra.mxu0 0.0
    %498 = vmatpush.msra.mxu0 0.0
    %499 = vmatpush.msra.mxu0 0.0
    %500 = vmatpush.msra.mxu0 0.0
    %501 = vmatpush.msra.mxu0 0.0
    %502 = vmatpush.msra.mxu0 %v439
    %503 = vmatpush.msra.mxu0 %v438
    %504 = vmatpush.msra.mxu0 %v437
    %505 = vmatpush.msra.mxu0 %v436
    %506 = vmatmul.f32.gmra.mxu0 %v485
    %v507 = vpop.f32.mrf.mxu0
    %v508 = vadd.f32 0.0, %v507
    %509 = vmatmul.f32.gmra.mxu0 %v488
    %v510 = vpop.f32.mrf.mxu0
    %v511 = vadd.f32 0.0, %v510
    %512 = vdwg.mxu0
    %v513 = vstv %s452
    %v514 = vadd.f32 %v508, %v513
    %v515 = vadd.f32 %v511, %v513
    %v516 = vstv %s451
    %519 = vrot.lane.b32.xlu0 %v508, 96
    %v520 = vpop.permute.xlu0 %519
    %521 = vrot.lane.b32.xlu0 %v511, 96
    %v522 = vpop.permute.xlu0 %521
    %v526 = vsel %vm98, %v416, 0
    %v529 = vsel %vm98, %v417, 0
    %531 = vmatpush.msra.mxu0 0.0
    %532 = vmatpush.msra.mxu0 0.0
    %533 = vmatpush.msra.mxu0 0.0
    %534 = vmatpush.msra.mxu0 0.0
    %535 = vmatpush.msra.mxu0 0.0
    %536 = vmatpush.msra.mxu0 0.0
    %537 = vmatpush.msra.mxu0 0.0
    %538 = vmatpush.msra.mxu0 0.0
    %539 = vmatpush.msra.mxu0 0.0
    %540 = vmatpush.msra.mxu0 0.0
    %541 = vmatpush.msra.mxu0 0.0
    %542 = vmatpush.msra.mxu0 0.0
    %543 = vmatpush.msra.mxu0 0.0
    %544 = vmatpush.msra.mxu0 0.0
    %545 = vmatpush.msra.mxu0 %v522
    %546 = vmatpush.msra.mxu0 %v520
    %547 = vmatmul.f32.gmra.mxu0 %v526
    %v548 = vpop.f32.mrf.mxu0
    %v549 = vadd.f32 %v516, %v548
    %550 = vmatmul.f32.gmra.mxu0 %v529
    %v551 = vpop.f32.mrf.mxu0
    %v552 = vadd.f32 %v516, %v551
    %553 = vdwg.mxu0
    %v554 = vmul.f32 %v549, 0.6
    %v555 = vmul.f32 %v552, 0.6
    %v556 = vmul.f32 %v514, 0.4
    %v557 = vmul.f32 %v515, 0.4
    %560 = vrot.lane.b32.xlu0 %v556, 95
    %v561 = vpop.permute.xlu0 %560
    %562 = vrot.lane.b32.xlu0 %v557, 95
    %v563 = vpop.permute.xlu0 %562
    %v566 = vadd.f32 %v554, %v561
    %v567 = vadd.f32 %v555, %v563
    %v569 = vsel %vm132, %v448, 0
    %571 = vmatpush.xpose.msra.mxu0 0.0
    %572 = vmatpush.xpose.msra.mxu0 0.0
    %573 = vmatpush.xpose.msra.mxu0 0.0
    %574 = vmatpush.xpose.msra.mxu0 0.0
    %575 = vmatpush.xpose.msra.mxu0 0.0
    %576 = vmatpush.xpose.msra.mxu0 0.0
    %577 = vmatpush.xpose.msra.mxu0 0.0
    %578 = vmatpush.xpose.msra.mxu0 0.0
    %579 = vmatpush.xpose.msra.mxu0 0.0
    %580 = vmatpush.xpose.msra.mxu0 0.0
    %581 = vmatpush.xpose.msra.mxu0 0.0
    %582 = vmatpush.xpose.msra.mxu0 0.0
    %583 = vmatpush.xpose.msra.mxu0 0.0
    %584 = vmatpush.xpose.msra.mxu0 0.0
    %585 = vmatpush.xpose.msra.mxu0 %v488
    %586 = vmatpush.xpose.msra.mxu0 %v485
    %587 = vmatmul.f32.gmra.mxu0 %v569
    %v588 = vpop.f32.mrf.mxu0
    %v589 = vadd.f32 0.0, %v588
    %590 = vdwg.mxu0
    %591 = vset.pattern.permute.xlu0 34
    %592 = vperm.xlu0 %591, %v508
    %v593 = vpop.permute.xlu0 %592
    %595 = vset.pattern.permute.xlu0 34
    %596 = vperm.xlu0 %595, %v511
    %v597 = vpop.permute.xlu0 %596
    %v599 = vperm.slane %v589, 0
    %v600 = vadd.f32 %v593, %v599
    %v601 = vadd.f32 %v597, %v599
    %vm602 = vcmp.ge.f32.partialorder %v600, 0.0
    %vm603 = vcmp.ge.f32.partialorder %v601, 0.0
    %v604 = vmul.f32 %v600, 0.2
    %v605 = vmul.f32 %v601, 0.2
    %v606 = vsel %vm602, %v600, %v604
    %v607 = vsel %vm603, %v601, %v605
    %v608 = vadd.f32 %v606, %v429
    %v609 = vadd.f32 %v607, %v430
    %v610 = vsel %vm98, %v608, -inf
    %611 = vmax.xlane.f32.xlu0 %v610
    %v612 = vpop.xlane.xlu0 %611
    %v613 = vsel %vm98, %v609, -inf
    %614 = vmax.xlane.f32.xlu0 %v613
    %v615 = vpop.xlane.xlu0 %614
    %v616 = vsub.f32 %v608, %v612
    %v617 = vsub.f32 %v609, %v615
    %v618 = vmul.f32 %v616, 1.442695
    %v619 = vpow.pop %v618
    %v620 = vmul.f32 %v617, 1.442695
    %v621 = vpow.pop %v620
    %v622 = vsel %vm98, %v619, 0.0
    %623 = vadd.xlane.f32.xlu0 %v622
    %v624 = vpop.xlane.xlu0 %623
    %v625 = vsel %vm98, %v621, 0.0
    %626 = vadd.xlane.f32.xlu0 %v625
    %v627 = vpop.xlane.xlu0 %626
    %v628 = vrcp.pop %v624
    %v629 = vrcp.pop %v627
    %v630 = vmul.f32 %v619, %v628
    %v631 = vmul.f32 %v621, %v629
    %v633 = vsel %vm98, %v630, 0
    %v636 = vsel %vm98, %v631, 0
    %638 = vmatpush.msra.mxu0 0.0
    %639 = vmatpush.msra.mxu0 0.0
    %640 = vmatpush.msra.mxu0 0.0
    %641 = vmatpush.msra.mxu0 0.0
    %642 = vmatpush.msra.mxu0 0.0
    %643 = vmatpush.msra.mxu0 0.0
    %644 = vmatpush.msra.mxu0 0.0
    %645 = vmatpush.msra.mxu0 0.0
    %646 = vmatpush.msra.mxu0 0.0
    %647 = vmatpush.msra.mxu0 0.0
    %648 = vmatpush.msra.mxu0 0.0
    %649 = vmatpush.msra.mxu0 0.0
    %650 = vmatpush.msra.mxu0 0.0
    %651 = vmatpush.msra.mxu0 0.0
    %652 = vmatpush.msra.mxu0 %v511
    %653 = vmatpush.msra.mxu0 %v508
    %654 = vmatmul.f32.gmra.mxu0 %v633
    %v655 = vpop.f32.mrf.mxu0
    %v656 = vadd.f32 %v449, %v655
    %657 = vmatmul.f32.gmra.mxu0 %v636
    %v658 = vpop.f32.mrf.mxu0
    %v659 = vadd.f32 %v449, %v658
    %660 = vdwg.mxu0
    %662 = vset.pattern.permute.xlu0 0
    %663 = vperm.xlu0 %662, %v566
    %v664 = vpop.permute.xlu0 %663
    %667 = vset.pattern.permute.xlu0 0
    %668 = vperm.xlu0 %667, %v567
    %v669 = vpop.permute.xlu0 %668
    %v671 = vsel %vm434, %v664, -1e+30
    %v672 = vsel %vm435, %v669, -1e+30
    %vm673 = vcmask 15360
    %v674 = vsel %vm673, %v671, -inf
    %v675 = vsel %vm673, %v672, -inf
    %v676 = vmax.f32 %v674, %v675
    %v677 = vrot.slane %v676, 4
    %v678 = vmax.f32 %v676, %v677
    %v679 = vrot.slane %v678, 2
    %v680 = vmax.f32 %v678, %v679
    %v681 = vrot.slane %v680, 1
    %v682 = vmax.f32 %v680, %v681
    %v683 = vsel %vm434, %v682, 0.0
    %v684 = vsel %vm435, %v682, 0.0
    %v685 = vsel %vm673, %v683, 0.0
    %686 = vadd.xlane.f32.xlu0 %v685
    %v687 = vpop.xlane.xlu0 %686
    %v688 = vsel %vm673, %v684, 0.0
    %689 = vadd.xlane.f32.xlu0 %v688
    %v690 = vpop.xlane.xlu0 %689
    %v691 = vsub.f32 %v566, %v687
    %v692 = vsub.f32 %v567, %v690
    %v693 = vmul.f32 %v691, 1.442695
    %v694 = vpow.pop %v693
    %v695 = vmul.f32 %v692, 1.442695
    %v696 = vpow.pop %v695
    %v698 = vsel %vm98, %v431, 0
    %700 = vmatpush.msra.mxu0 0.0
    %701 = vmatpush.msra.mxu0 0.0
    %702 = vmatpush.msra.mxu0 0.0
    %703 = vmatpush.msra.mxu0 0.0
    %704 = vmatpush.msra.mxu0 0.0
    %705 = vmatpush.msra.mxu0 0.0
    %706 = vmatpush.msra.mxu0 0.0
    %707 = vmatpush.msra.mxu0 0.0
    %708 = vmatpush.msra.mxu0 0.0
    %709 = vmatpush.msra.mxu0 0.0
    %710 = vmatpush.msra.mxu0 0.0
    %711 = vmatpush.msra.mxu0 0.0
    %712 = vmatpush.msra.mxu0 0.0
    %713 = vmatpush.msra.mxu0 0.0
    %714 = vmatpush.msra.mxu0 %v696
    %715 = vmatpush.msra.mxu0 %v694
    %716 = vmatmul.f32.gmra.mxu0 %v698
    %v717 = vpop.f32.mrf.mxu0
    %v718 = vadd.f32 0.0, %v717
    %719 = vdwg.mxu0
    %721 = vset.pattern.permute.xlu0 0
    %722 = vperm.xlu0 %721, %v694
    %v723 = vpop.permute.xlu0 %722
    %726 = vset.pattern.permute.xlu0 0
    %727 = vperm.xlu0 %726, %v696
    %v728 = vpop.permute.xlu0 %727
    %v730 = vmul.f32 %v656, %v723
    %v731 = vmul.f32 %v659, %v728
    %732 = vmatpush.msra.mxu0 0.0
    %733 = vmatpush.msra.mxu0 0.0
    %734 = vmatpush.msra.mxu0 0.0
    %735 = vmatpush.msra.mxu0 0.0
    %736 = vmatpush.msra.mxu0 0.0
    %737 = vmatpush.msra.mxu0 0.0
    %738 = vmatpush.msra.mxu0 0.0
    %739 = vmatpush.msra.mxu0 0.0
    %740 = vmatpush.msra.mxu0 0.0
    %741 = vmatpush.msra.mxu0 0.0
    %742 = vmatpush.msra.mxu0 0.0
    %743 = vmatpush.msra.mxu0 0.0
    %744 = vmatpush.msra.mxu0 0.0
    %745 = vmatpush.msra.mxu0 0.0
    %746 = vmatpush.msra.mxu0 %v731
    %747 = vmatpush.msra.mxu0 %v730
    %748 = vmatmul.f32.gmra.mxu0 %v698
    %v749 = vpop.f32.mrf.mxu0
    %v750 = vadd.f32 0.0, %v749
    %751 = vdwg.mxu0
    %v752 = vrcp.pop %v718
    %754 = vset.pattern.permute.xlu0 0
    %755 = vperm.xlu0 %754, %v752
    %v756 = vpop.permute.xlu0 %755
    %v758 = vmul.f32 %v750, %v756
    %v760 = vsel %vm132, %v758, 0
    %762 = vmatpush.msra.mxu0 0.0
    %763 = vmatpush.msra.mxu0 0.0
    %764 = vmatpush.msra.mxu0 0.0
    %765 = vmatpush.msra.mxu0 0.0
    %766 = vmatpush.msra.mxu0 0.0
    %767 = vmatpush.msra.mxu0 0.0
    %768 = vmatpush.msra.mxu0 0.0
    %769 = vmatpush.msra.mxu0 0.0
    %770 = vmatpush.msra.mxu0 0.0
    %771 = vmatpush.msra.mxu0 0.0
    %772 = vmatpush.msra.mxu0 0.0
    %773 = vmatpush.msra.mxu0 0.0
    %774 = vmatpush.msra.mxu0 %v443
    %775 = vmatpush.msra.mxu0 %v442
    %776 = vmatpush.msra.mxu0 %v441
    %777 = vmatpush.msra.mxu0 %v440
    %778 = vmatmul.f32.gmra.mxu0 %v760
    %v779 = vpop.f32.mrf.mxu0
    %v780 = vadd.f32 %v450, %v779
    %781 = vdwg.mxu0
    %v782 = vtanh.pop %v780
    %v784 = vsel %vm132, %v782, 0
    %786 = vmatpush.msra.mxu0 0.0
    %787 = vmatpush.msra.mxu0 0.0
    %788 = vmatpush.msra.mxu0 0.0
    %789 = vmatpush.msra.mxu0 0.0
    %790 = vmatpush.msra.mxu0 0.0
    %791 = vmatpush.msra.mxu0 0.0
    %792 = vmatpush.msra.mxu0 0.0
    %793 = vmatpush.msra.mxu0 0.0
    %794 = vmatpush.msra.mxu0 0.0
    %795 = vmatpush.msra.mxu0 0.0
    %796 = vmatpush.msra.mxu0 0.0
    %797 = vmatpush.msra.mxu0 0.0
    %798 = vmatpush.msra.mxu0 %v447
    %799 = vmatpush.msra.mxu0 %v446
    %800 = vmatpush.msra.mxu0 %v445
    %801 = vmatpush.msra.mxu0 %v444
    %802 = vmatmul.f32.gmra.mxu0 %v784
    %v803 = vpop.f32.mrf.mxu0
    %v804 = vadd.f32 0.0, %v803
    %805 = vdwg.mxu0
    %806 = vmatpush.msra.mxu0 0.0
    %807 = vmatpush.msra.mxu0 0.0
    %808 = vmatpush.msra.mxu0 0.0
    %809 = vmatpush.msra.mxu0 0.0
    %810 = vmatpush.msra.mxu0 0.0
    %811 = vmatpush.msra.mxu0 0.0
    %812 = vmatpush.msra.mxu0 0.0
    %813 = vmatpush.msra.mxu0 0.0
    %814 = vmatpush.msra.mxu0 0.0
    %815 = vmatpush.msra.mxu0 0.0
    %816 = vmatpush.msra.mxu0 0.0
    %817 = vmatpush.msra.mxu0 0.0
    %818 = vmatpush.msra.mxu0 0.0
    %819 = vmatpush.msra.mxu0 0.0
    %820 = vmatpush.msra.mxu0 %v483
    %821 = vmatpush.msra.mxu0 %v482
    %822 = vmatmul.f32.gmra.mxu0 %v454
    %v823 = vpop.f32.mrf.mxu0
    %v824 = vadd.f32 0.0, %v823
    %825 = vmatmul.f32.gmra.mxu0 %v457
    %v826 = vpop.f32.mrf.mxu0
    %v827 = vadd.f32 0.0, %v826
    %828 = vdwg.mxu0
    %v829 = vadd.f32 %v412, %v824
    %v830 = vadd.f32 %v413, %v827
    %v832 = vsel %vm132, %v829, 0
    %v835 = vsel %vm132, %v830, 0
    %837 = vmatpush.msra.mxu0 0.0
    %838 = vmatpush.msra.mxu0 0.0
    %839 = vmatpush.msra.mxu0 0.0
    %840 = vmatpush.msra.mxu0 0.0
    %841 = vmatpush.msra.mxu0 0.0
    %842 = vmatpush.msra.mxu0 0.0
    %843 = vmatpush.msra.mxu0 0.0
    %844 = vmatpush.msra.mxu0 0.0
    %845 = vmatpush.msra.mxu0 0.0
    %846 = vmatpush.msra.mxu0 0.0
    %847 = vmatpush.msra.mxu0 0.0
    %848 = vmatpush.msra.mxu0 0.0
    %849 = vmatpush.msra.mxu0 %v439
    %850 = vmatpush.msra.mxu0 %v438
    %851 = vmatpush.msra.mxu0 %v437
    %852 = vmatpush.msra.mxu0 %v436
    %853 = vmatmul.f32.gmra.mxu0 %v832
    %v854 = vpop.f32.mrf.mxu0
    %v855 = vadd.f32 0.0, %v854
    %856 = vmatmul.f32.gmra.mxu0 %v835
    %v857 = vpop.f32.mrf.mxu0
    %v858 = vadd.f32 0.0, %v857
    %859 = vdwg.mxu0
    %v860 = vadd.f32 %v855, %v513
    %v861 = vadd.f32 %v858, %v513
    %864 = vrot.lane.b32.xlu0 %v855, 96
    %v865 = vpop.permute.xlu0 %864
    %866 = vrot.lane.b32.xlu0 %v858, 96
    %v867 = vpop.permute.xlu0 %866
    %870 = vmatpush.msra.mxu0 0.0
    %871 = vmatpush.msra.mxu0 0.0
    %872 = vmatpush.msra.mxu0 0.0
    %873 = vmatpush.msra.mxu0 0.0
    %874 = vmatpush.msra.mxu0 0.0
    %875 = vmatpush.msra.mxu0 0.0
    %876 = vmatpush.msra.mxu0 0.0
    %877 = vmatpush.msra.mxu0 0.0
    %878 = vmatpush.msra.mxu0 0.0
    %879 = vmatpush.msra.mxu0 0.0
    %880 = vmatpush.msra.mxu0 0.0
    %881 = vmatpush.msra.mxu0 0.0
    %882 = vmatpush.msra.mxu0 0.0
    %883 = vmatpush.msra.mxu0 0.0
    %884 = vmatpush.msra.mxu0 %v867
    %885 = vmatpush.msra.mxu0 %v865
    %886 = vmatmul.f32.gmra.mxu0 %v526
    %v887 = vpop.f32.mrf.mxu0
    %v888 = vadd.f32 %v516, %v887
    %889 = vmatmul.f32.gmra.mxu0 %v529
    %v890 = vpop.f32.mrf.mxu0
    %v891 = vadd.f32 %v516, %v890
    %892 = vdwg.mxu0
    %v893 = vmul.f32 %v888, 0.6
    %v894 = vmul.f32 %v891, 0.6
    %v895 = vmul.f32 %v860, 0.4
    %v896 = vmul.f32 %v861, 0.4
    %899 = vrot.lane.b32.xlu0 %v895, 95
    %v900 = vpop.permute.xlu0 %899
    %901 = vrot.lane.b32.xlu0 %v896, 95
    %v902 = vpop.permute.xlu0 %901
    %v905 = vadd.f32 %v893, %v900
    %v906 = vadd.f32 %v894, %v902
    %907 = vmatpush.xpose.msra.mxu0 0.0
    %908 = vmatpush.xpose.msra.mxu0 0.0
    %909 = vmatpush.xpose.msra.mxu0 0.0
    %910 = vmatpush.xpose.msra.mxu0 0.0
    %911 = vmatpush.xpose.msra.mxu0 0.0
    %912 = vmatpush.xpose.msra.mxu0 0.0
    %913 = vmatpush.xpose.msra.mxu0 0.0
    %914 = vmatpush.xpose.msra.mxu0 0.0
    %915 = vmatpush.xpose.msra.mxu0 0.0
    %916 = vmatpush.xpose.msra.mxu0 0.0
    %917 = vmatpush.xpose.msra.mxu0 0.0
    %918 = vmatpush.xpose.msra.mxu0 0.0
    %919 = vmatpush.xpose.msra.mxu0 0.0
    %920 = vmatpush.xpose.msra.mxu0 0.0
    %921 = vmatpush.xpose.msra.mxu0 %v835
    %922 = vmatpush.xpose.msra.mxu0 %v832
    %923 = vmatmul.f32.gmra.mxu0 %v569
    %v924 = vpop.f32.mrf.mxu0
    %v925 = vadd.f32 0.0, %v924
    %926 = vdwg.mxu0
    %927 = vset.pattern.permute.xlu0 34
    %928 = vperm.xlu0 %927, %v855
    %v929 = vpop.permute.xlu0 %928
    %931 = vset.pattern.permute.xlu0 34
    %932 = vperm.xlu0 %931, %v858
    %v933 = vpop.permute.xlu0 %932
    %v935 = vperm.slane %v925, 0
    %v936 = vadd.f32 %v929, %v935
    %v937 = vadd.f32 %v933, %v935
    %vm938 = vcmp.ge.f32.partialorder %v936, 0.0
    %vm939 = vcmp.ge.f32.partialorder %v937, 0.0
    %v940 = vmul.f32 %v936, 0.2
    %v941 = vmul.f32 %v937, 0.2
    %v942 = vsel %vm938, %v936, %v940
    %v943 = vsel %vm939, %v937, %v941
    %v944 = vadd.f32 %v942, %v429
    %v945 = vadd.f32 %v943, %v430
    %v946 = vsel %vm98, %v944, -inf
    %947 = vmax.xlane.f32.xlu0 %v946
    %v948 = vpop.xlane.xlu0 %947
    %v949 = vsel %vm98, %v945, -inf
    %950 = vmax.xlane.f32.xlu0 %v949
    %v951 = vpop.xlane.xlu0 %950
    %v952 = vsub.f32 %v944, %v948
    %v953 = vsub.f32 %v945, %v951
    %v954 = vmul.f32 %v952, 1.442695
    %v955 = vpow.pop %v954
    %v956 = vmul.f32 %v953, 1.442695
    %v957 = vpow.pop %v956
    %v958 = vsel %vm98, %v955, 0.0
    %959 = vadd.xlane.f32.xlu0 %v958
    %v960 = vpop.xlane.xlu0 %959
    %v961 = vsel %vm98, %v957, 0.0
    %962 = vadd.xlane.f32.xlu0 %v961
    %v963 = vpop.xlane.xlu0 %962
    %v964 = vrcp.pop %v960
    %v965 = vrcp.pop %v963
    %v966 = vmul.f32 %v955, %v964
    %v967 = vmul.f32 %v957, %v965
    %v969 = vsel %vm98, %v966, 0
    %v972 = vsel %vm98, %v967, 0
    %974 = vmatpush.msra.mxu0 0.0
    %975 = vmatpush.msra.mxu0 0.0
    %976 = vmatpush.msra.mxu0 0.0
    %977 = vmatpush.msra.mxu0 0.0
    %978 = vmatpush.msra.mxu0 0.0
    %979 = vmatpush.msra.mxu0 0.0
    %980 = vmatpush.msra.mxu0 0.0
    %981 = vmatpush.msra.mxu0 0.0
    %982 = vmatpush.msra.mxu0 0.0
    %983 = vmatpush.msra.mxu0 0.0
    %984 = vmatpush.msra.mxu0 0.0
    %985 = vmatpush.msra.mxu0 0.0
    %986 = vmatpush.msra.mxu0 0.0
    %987 = vmatpush.msra.mxu0 0.0
    %988 = vmatpush.msra.mxu0 %v858
    %989 = vmatpush.msra.mxu0 %v855
    %990 = vmatmul.f32.gmra.mxu0 %v969
    %v991 = vpop.f32.mrf.mxu0
    %v992 = vadd.f32 %v449, %v991
    %993 = vmatmul.f32.gmra.mxu0 %v972
    %v994 = vpop.f32.mrf.mxu0
    %v995 = vadd.f32 %v449, %v994
    %996 = vdwg.mxu0
    %998 = vset.pattern.permute.xlu0 0
    %999 = vperm.xlu0 %998, %v905
    %v1000 = vpop.permute.xlu0 %999
    %1003 = vset.pattern.permute.xlu0 0
    %1004 = vperm.xlu0 %1003, %v906
    %v1005 = vpop.permute.xlu0 %1004
    %v1007 = vsel %vm434, %v1000, -1e+30
    %v1008 = vsel %vm435, %v1005, -1e+30
    %v1009 = vsel %vm673, %v1007, -inf
    %v1010 = vsel %vm673, %v1008, -inf
    %v1011 = vmax.f32 %v1009, %v1010
    %v1012 = vrot.slane %v1011, 4
    %v1013 = vmax.f32 %v1011, %v1012
    %v1014 = vrot.slane %v1013, 2
    %v1015 = vmax.f32 %v1013, %v1014
    %v1016 = vrot.slane %v1015, 1
    %v1017 = vmax.f32 %v1015, %v1016
    %v1018 = vsel %vm434, %v1017, 0.0
    %v1019 = vsel %vm435, %v1017, 0.0
    %v1020 = vsel %vm673, %v1018, 0.0
    %1021 = vadd.xlane.f32.xlu0 %v1020
    %v1022 = vpop.xlane.xlu0 %1021
    %v1023 = vsel %vm673, %v1019, 0.0
    %1024 = vadd.xlane.f32.xlu0 %v1023
    %v1025 = vpop.xlane.xlu0 %1024
    %v1026 = vsub.f32 %v905, %v1022
    %v1027 = vsub.f32 %v906, %v1025
    %v1028 = vmul.f32 %v1026, 1.442695
    %v1029 = vpow.pop %v1028
    %v1030 = vmul.f32 %v1027, 1.442695
    %v1031 = vpow.pop %v1030
    %1032 = vmatpush.msra.mxu0 0.0
    %1033 = vmatpush.msra.mxu0 0.0
    %1034 = vmatpush.msra.mxu0 0.0
    %1035 = vmatpush.msra.mxu0 0.0
    %1036 = vmatpush.msra.mxu0 0.0
    %1037 = vmatpush.msra.mxu0 0.0
    %1038 = vmatpush.msra.mxu0 0.0
    %1039 = vmatpush.msra.mxu0 0.0
    %1040 = vmatpush.msra.mxu0 0.0
    %1041 = vmatpush.msra.mxu0 0.0
    %1042 = vmatpush.msra.mxu0 0.0
    %1043 = vmatpush.msra.mxu0 0.0
    %1044 = vmatpush.msra.mxu0 0.0
    %1045 = vmatpush.msra.mxu0 0.0
    %1046 = vmatpush.msra.mxu0 %v1031
    %1047 = vmatpush.msra.mxu0 %v1029
    %1048 = vmatmul.f32.gmra.mxu0 %v698
    %v1049 = vpop.f32.mrf.mxu0
    %v1050 = vadd.f32 0.0, %v1049
    %1051 = vdwg.mxu0
    %1053 = vset.pattern.permute.xlu0 0
    %1054 = vperm.xlu0 %1053, %v1029
    %v1055 = vpop.permute.xlu0 %1054
    %1058 = vset.pattern.permute.xlu0 0
    %1059 = vperm.xlu0 %1058, %v1031
    %v1060 = vpop.permute.xlu0 %1059
    %v1062 = vmul.f32 %v992, %v1055
    %v1063 = vmul.f32 %v995, %v1060
    %1064 = vmatpush.msra.mxu0 0.0
    %1065 = vmatpush.msra.mxu0 0.0
    %1066 = vmatpush.msra.mxu0 0.0
    %1067 = vmatpush.msra.mxu0 0.0
    %1068 = vmatpush.msra.mxu0 0.0
    %1069 = vmatpush.msra.mxu0 0.0
    %1070 = vmatpush.msra.mxu0 0.0
    %1071 = vmatpush.msra.mxu0 0.0
    %1072 = vmatpush.msra.mxu0 0.0
    %1073 = vmatpush.msra.mxu0 0.0
    %1074 = vmatpush.msra.mxu0 0.0
    %1075 = vmatpush.msra.mxu0 0.0
    %1076 = vmatpush.msra.mxu0 0.0
    %1077 = vmatpush.msra.mxu0 0.0
    %1078 = vmatpush.msra.mxu0 %v1063
    %1079 = vmatpush.msra.mxu0 %v1062
    %1080 = vmatmul.f32.gmra.mxu0 %v698
    %v1081 = vpop.f32.mrf.mxu0
    %v1082 = vadd.f32 0.0, %v1081
    %1083 = vdwg.mxu0
    %v1084 = vrcp.pop %v1050
    %1086 = vset.pattern.permute.xlu0 0
    %1087 = vperm.xlu0 %1086, %v1084
    %v1088 = vpop.permute.xlu0 %1087
    %v1090 = vmul.f32 %v1082, %v1088
    %v1092 = vsel %vm132, %v1090, 0
    %1094 = vmatpush.msra.mxu0 0.0
    %1095 = vmatpush.msra.mxu0 0.0
    %1096 = vmatpush.msra.mxu0 0.0
    %1097 = vmatpush.msra.mxu0 0.0
    %1098 = vmatpush.msra.mxu0 0.0
    %1099 = vmatpush.msra.mxu0 0.0
    %1100 = vmatpush.msra.mxu0 0.0
    %1101 = vmatpush.msra.mxu0 0.0
    %1102 = vmatpush.msra.mxu0 0.0
    %1103 = vmatpush.msra.mxu0 0.0
    %1104 = vmatpush.msra.mxu0 0.0
    %1105 = vmatpush.msra.mxu0 0.0
    %1106 = vmatpush.msra.mxu0 %v443
    %1107 = vmatpush.msra.mxu0 %v442
    %1108 = vmatpush.msra.mxu0 %v441
    %1109 = vmatpush.msra.mxu0 %v440
    %1110 = vmatmul.f32.gmra.mxu0 %v1092
    %v1111 = vpop.f32.mrf.mxu0
    %v1112 = vadd.f32 %v450, %v1111
    %1113 = vdwg.mxu0
    %v1114 = vtanh.pop %v1112
    %1119 = vrot.lane.b32.xlu0 %v444, 127
    %v1120 = vpop.permute.xlu0 %1119
    %1121 = vrot.lane.b32.xlu0 %v445, 127
    %v1122 = vpop.permute.xlu0 %1121
    %1123 = vrot.lane.b32.xlu0 %v446, 127
    %v1124 = vpop.permute.xlu0 %1123
    %1125 = vrot.lane.b32.xlu0 %v447, 127
    %v1126 = vpop.permute.xlu0 %1125
    %v1132 = vsel %vm132, %v1114, 0
    %1134 = vmatpush.msra.mxu0 0.0
    %1135 = vmatpush.msra.mxu0 0.0
    %1136 = vmatpush.msra.mxu0 0.0
    %1137 = vmatpush.msra.mxu0 0.0
    %1138 = vmatpush.msra.mxu0 0.0
    %1139 = vmatpush.msra.mxu0 0.0
    %1140 = vmatpush.msra.mxu0 0.0
    %1141 = vmatpush.msra.mxu0 0.0
    %1142 = vmatpush.msra.mxu0 0.0
    %1143 = vmatpush.msra.mxu0 0.0
    %1144 = vmatpush.msra.mxu0 0.0
    %1145 = vmatpush.msra.mxu0 0.0
    %1146 = vmatpush.msra.mxu0 %v1126
    %1147 = vmatpush.msra.mxu0 %v1124
    %1148 = vmatpush.msra.mxu0 %v1122
    %1149 = vmatpush.msra.mxu0 %v1120
    %1150 = vmatmul.f32.gmra.mxu0 %v1132
    %v1151 = vpop.f32.mrf.mxu0
    %v1152 = vadd.f32 0.0, %v1151
    %1153 = vdwg.mxu0
    %1154 = vmatpush.msra.mxu0 0.0
    %1155 = vmatpush.msra.mxu0 0.0
    %1156 = vmatpush.msra.mxu0 0.0
    %1157 = vmatpush.msra.mxu0 0.0
    %1158 = vmatpush.msra.mxu0 0.0
    %1159 = vmatpush.msra.mxu0 0.0
    %1160 = vmatpush.msra.mxu0 0.0
    %1161 = vmatpush.msra.mxu0 0.0
    %1162 = vmatpush.msra.mxu0 0.0
    %1163 = vmatpush.msra.mxu0 0.0
    %1164 = vmatpush.msra.mxu0 0.0
    %1165 = vmatpush.msra.mxu0 0.0
    %1166 = vmatpush.msra.mxu0 0.0
    %1167 = vmatpush.msra.mxu0 0.0
    %1168 = vmatpush.msra.mxu0 %v830
    %1169 = vmatpush.msra.mxu0 %v829
    %1170 = vmatmul.f32.gmra.mxu0 %v454
    %v1171 = vpop.f32.mrf.mxu0
    %v1172 = vadd.f32 0.0, %v1171
    %1173 = vmatmul.f32.gmra.mxu0 %v457
    %v1174 = vpop.f32.mrf.mxu0
    %v1175 = vadd.f32 0.0, %v1174
    %1176 = vdwg.mxu0
    %v1177 = vadd.f32 %v412, %v1172
    %v1178 = vadd.f32 %v413, %v1175
    %v1180 = vsel %vm132, %v1177, 0
    %v1183 = vsel %vm132, %v1178, 0
    %1185 = vmatpush.msra.mxu0 0.0
    %1186 = vmatpush.msra.mxu0 0.0
    %1187 = vmatpush.msra.mxu0 0.0
    %1188 = vmatpush.msra.mxu0 0.0
    %1189 = vmatpush.msra.mxu0 0.0
    %1190 = vmatpush.msra.mxu0 0.0
    %1191 = vmatpush.msra.mxu0 0.0
    %1192 = vmatpush.msra.mxu0 0.0
    %1193 = vmatpush.msra.mxu0 0.0
    %1194 = vmatpush.msra.mxu0 0.0
    %1195 = vmatpush.msra.mxu0 0.0
    %1196 = vmatpush.msra.mxu0 0.0
    %1197 = vmatpush.msra.mxu0 %v439
    %1198 = vmatpush.msra.mxu0 %v438
    %1199 = vmatpush.msra.mxu0 %v437
    %1200 = vmatpush.msra.mxu0 %v436
    %1201 = vmatmul.f32.gmra.mxu0 %v1180
    %v1202 = vpop.f32.mrf.mxu0
    %v1203 = vadd.f32 0.0, %v1202
    %1204 = vmatmul.f32.gmra.mxu0 %v1183
    %v1205 = vpop.f32.mrf.mxu0
    %v1206 = vadd.f32 0.0, %v1205
    %1207 = vdwg.mxu0
    %v1208 = vadd.f32 %v1203, %v513
    %v1209 = vadd.f32 %v1206, %v513
    %1212 = vrot.lane.b32.xlu0 %v1203, 96
    %v1213 = vpop.permute.xlu0 %1212
    %1214 = vrot.lane.b32.xlu0 %v1206, 96
    %v1215 = vpop.permute.xlu0 %1214
    %1218 = vmatpush.msra.mxu0 0.0
    %1219 = vmatpush.msra.mxu0 0.0
    %1220 = vmatpush.msra.mxu0 0.0
    %1221 = vmatpush.msra.mxu0 0.0
    %1222 = vmatpush.msra.mxu0 0.0
    %1223 = vmatpush.msra.mxu0 0.0
    %1224 = vmatpush.msra.mxu0 0.0
    %1225 = vmatpush.msra.mxu0 0.0
    %1226 = vmatpush.msra.mxu0 0.0
    %1227 = vmatpush.msra.mxu0 0.0
    %1228 = vmatpush.msra.mxu0 0.0
    %1229 = vmatpush.msra.mxu0 0.0
    %1230 = vmatpush.msra.mxu0 0.0
    %1231 = vmatpush.msra.mxu0 0.0
    %1232 = vmatpush.msra.mxu0 %v1215
    %1233 = vmatpush.msra.mxu0 %v1213
    %1234 = vmatmul.f32.gmra.mxu0 %v526
    %v1235 = vpop.f32.mrf.mxu0
    %v1236 = vadd.f32 %v516, %v1235
    %1237 = vmatmul.f32.gmra.mxu0 %v529
    %v1238 = vpop.f32.mrf.mxu0
    %v1239 = vadd.f32 %v516, %v1238
    %1240 = vdwg.mxu0
    %v1241 = vmul.f32 %v1236, 0.6
    %v1242 = vmul.f32 %v1239, 0.6
    %v1243 = vmul.f32 %v1208, 0.4
    %v1244 = vmul.f32 %v1209, 0.4
    %1247 = vrot.lane.b32.xlu0 %v1243, 95
    %v1248 = vpop.permute.xlu0 %1247
    %1249 = vrot.lane.b32.xlu0 %v1244, 95
    %v1250 = vpop.permute.xlu0 %1249
    %v1253 = vadd.f32 %v1241, %v1248
    %v1254 = vadd.f32 %v1242, %v1250
    %1255 = vmatpush.xpose.msra.mxu0 0.0
    %1256 = vmatpush.xpose.msra.mxu0 0.0
    %1257 = vmatpush.xpose.msra.mxu0 0.0
    %1258 = vmatpush.xpose.msra.mxu0 0.0
    %1259 = vmatpush.xpose.msra.mxu0 0.0
    %1260 = vmatpush.xpose.msra.mxu0 0.0
    %1261 = vmatpush.xpose.msra.mxu0 0.0
    %1262 = vmatpush.xpose.msra.mxu0 0.0
    %1263 = vmatpush.xpose.msra.mxu0 0.0
    %1264 = vmatpush.xpose.msra.mxu0 0.0
    %1265 = vmatpush.xpose.msra.mxu0 0.0
    %1266 = vmatpush.xpose.msra.mxu0 0.0
    %1267 = vmatpush.xpose.msra.mxu0 0.0
    %1268 = vmatpush.xpose.msra.mxu0 0.0
    %1269 = vmatpush.xpose.msra.mxu0 %v1183
    %1270 = vmatpush.xpose.msra.mxu0 %v1180
    %1271 = vmatmul.f32.gmra.mxu0 %v569
    %v1272 = vpop.f32.mrf.mxu0
    %v1273 = vadd.f32 0.0, %v1272
    %1274 = vdwg.mxu0
    %1275 = vset.pattern.permute.xlu0 34
    %1276 = vperm.xlu0 %1275, %v1203
    %v1277 = vpop.permute.xlu0 %1276
    %1279 = vset.pattern.permute.xlu0 34
    %1280 = vperm.xlu0 %1279, %v1206
    %v1281 = vpop.permute.xlu0 %1280
    %v1283 = vperm.slane %v1273, 0
    %v1284 = vadd.f32 %v1277, %v1283
    %v1285 = vadd.f32 %v1281, %v1283
    %vm1286 = vcmp.ge.f32.partialorder %v1284, 0.0
    %vm1287 = vcmp.ge.f32.partialorder %v1285, 0.0
    %v1288 = vmul.f32 %v1284, 0.2
    %v1289 = vmul.f32 %v1285, 0.2
    %v1290 = vsel %vm1286, %v1284, %v1288
    %v1291 = vsel %vm1287, %v1285, %v1289
    %v1292 = vadd.f32 %v1290, %v429
    %v1293 = vadd.f32 %v1291, %v430
    %v1294 = vsel %vm98, %v1292, -inf
    %1295 = vmax.xlane.f32.xlu0 %v1294
    %v1296 = vpop.xlane.xlu0 %1295
    %v1297 = vsel %vm98, %v1293, -inf
    %1298 = vmax.xlane.f32.xlu0 %v1297
    %v1299 = vpop.xlane.xlu0 %1298
    %v1300 = vsub.f32 %v1292, %v1296
    %v1301 = vsub.f32 %v1293, %v1299
    %v1302 = vmul.f32 %v1300, 1.442695
    %v1303 = vpow.pop %v1302
    %v1304 = vmul.f32 %v1301, 1.442695
    %v1305 = vpow.pop %v1304
    %v1306 = vsel %vm98, %v1303, 0.0
    %1307 = vadd.xlane.f32.xlu0 %v1306
    %v1308 = vpop.xlane.xlu0 %1307
    %v1309 = vsel %vm98, %v1305, 0.0
    %1310 = vadd.xlane.f32.xlu0 %v1309
    %v1311 = vpop.xlane.xlu0 %1310
    %v1312 = vrcp.pop %v1308
    %v1313 = vrcp.pop %v1311
    %v1314 = vmul.f32 %v1303, %v1312
    %v1315 = vmul.f32 %v1305, %v1313
    %v1317 = vsel %vm98, %v1314, 0
    %v1320 = vsel %vm98, %v1315, 0
    %1322 = vmatpush.msra.mxu0 0.0
    %1323 = vmatpush.msra.mxu0 0.0
    %1324 = vmatpush.msra.mxu0 0.0
    %1325 = vmatpush.msra.mxu0 0.0
    %1326 = vmatpush.msra.mxu0 0.0
    %1327 = vmatpush.msra.mxu0 0.0
    %1328 = vmatpush.msra.mxu0 0.0
    %1329 = vmatpush.msra.mxu0 0.0
    %1330 = vmatpush.msra.mxu0 0.0
    %1331 = vmatpush.msra.mxu0 0.0
    %1332 = vmatpush.msra.mxu0 0.0
    %1333 = vmatpush.msra.mxu0 0.0
    %1334 = vmatpush.msra.mxu0 0.0
    %1335 = vmatpush.msra.mxu0 0.0
    %1336 = vmatpush.msra.mxu0 %v1206
    %1337 = vmatpush.msra.mxu0 %v1203
    %1338 = vmatmul.f32.gmra.mxu0 %v1317
    %v1339 = vpop.f32.mrf.mxu0
    %v1340 = vadd.f32 %v449, %v1339
    %1341 = vmatmul.f32.gmra.mxu0 %v1320
    %v1342 = vpop.f32.mrf.mxu0
    %v1343 = vadd.f32 %v449, %v1342
    %1344 = vdwg.mxu0
    %1346 = vset.pattern.permute.xlu0 0
    %1347 = vperm.xlu0 %1346, %v1253
    %v1348 = vpop.permute.xlu0 %1347
    %1351 = vset.pattern.permute.xlu0 0
    %1352 = vperm.xlu0 %1351, %v1254
    %v1353 = vpop.permute.xlu0 %1352
    %v1355 = vsel %vm434, %v1348, -1e+30
    %v1356 = vsel %vm435, %v1353, -1e+30
    %v1357 = vsel %vm673, %v1355, -inf
    %v1358 = vsel %vm673, %v1356, -inf
    %v1359 = vmax.f32 %v1357, %v1358
    %v1360 = vrot.slane %v1359, 4
    %v1361 = vmax.f32 %v1359, %v1360
    %v1362 = vrot.slane %v1361, 2
    %v1363 = vmax.f32 %v1361, %v1362
    %v1364 = vrot.slane %v1363, 1
    %v1365 = vmax.f32 %v1363, %v1364
    %v1366 = vsel %vm434, %v1365, 0.0
    %v1367 = vsel %vm435, %v1365, 0.0
    %v1368 = vsel %vm673, %v1366, 0.0
    %1369 = vadd.xlane.f32.xlu0 %v1368
    %v1370 = vpop.xlane.xlu0 %1369
    %v1371 = vsel %vm673, %v1367, 0.0
    %1372 = vadd.xlane.f32.xlu0 %v1371
    %v1373 = vpop.xlane.xlu0 %1372
    %v1374 = vsub.f32 %v1253, %v1370
    %v1375 = vsub.f32 %v1254, %v1373
    %v1376 = vmul.f32 %v1374, 1.442695
    %v1377 = vpow.pop %v1376
    %v1378 = vmul.f32 %v1375, 1.442695
    %v1379 = vpow.pop %v1378
    %1380 = vmatpush.msra.mxu0 0.0
    %1381 = vmatpush.msra.mxu0 0.0
    %1382 = vmatpush.msra.mxu0 0.0
    %1383 = vmatpush.msra.mxu0 0.0
    %1384 = vmatpush.msra.mxu0 0.0
    %1385 = vmatpush.msra.mxu0 0.0
    %1386 = vmatpush.msra.mxu0 0.0
    %1387 = vmatpush.msra.mxu0 0.0
    %1388 = vmatpush.msra.mxu0 0.0
    %1389 = vmatpush.msra.mxu0 0.0
    %1390 = vmatpush.msra.mxu0 0.0
    %1391 = vmatpush.msra.mxu0 0.0
    %1392 = vmatpush.msra.mxu0 0.0
    %1393 = vmatpush.msra.mxu0 0.0
    %1394 = vmatpush.msra.mxu0 %v1379
    %1395 = vmatpush.msra.mxu0 %v1377
    %1396 = vmatmul.f32.gmra.mxu0 %v698
    %v1397 = vpop.f32.mrf.mxu0
    %v1398 = vadd.f32 0.0, %v1397
    %1399 = vdwg.mxu0
    %1401 = vset.pattern.permute.xlu0 0
    %1402 = vperm.xlu0 %1401, %v1377
    %v1403 = vpop.permute.xlu0 %1402
    %1406 = vset.pattern.permute.xlu0 0
    %1407 = vperm.xlu0 %1406, %v1379
    %v1408 = vpop.permute.xlu0 %1407
    %v1410 = vmul.f32 %v1340, %v1403
    %v1411 = vmul.f32 %v1343, %v1408
    %1412 = vmatpush.msra.mxu0 0.0
    %1413 = vmatpush.msra.mxu0 0.0
    %1414 = vmatpush.msra.mxu0 0.0
    %1415 = vmatpush.msra.mxu0 0.0
    %1416 = vmatpush.msra.mxu0 0.0
    %1417 = vmatpush.msra.mxu0 0.0
    %1418 = vmatpush.msra.mxu0 0.0
    %1419 = vmatpush.msra.mxu0 0.0
    %1420 = vmatpush.msra.mxu0 0.0
    %1421 = vmatpush.msra.mxu0 0.0
    %1422 = vmatpush.msra.mxu0 0.0
    %1423 = vmatpush.msra.mxu0 0.0
    %1424 = vmatpush.msra.mxu0 0.0
    %1425 = vmatpush.msra.mxu0 0.0
    %1426 = vmatpush.msra.mxu0 %v1411
    %1427 = vmatpush.msra.mxu0 %v1410
    %1428 = vmatmul.f32.gmra.mxu0 %v698
    %v1429 = vpop.f32.mrf.mxu0
    %v1430 = vadd.f32 0.0, %v1429
    %1431 = vdwg.mxu0
    %v1432 = vrcp.pop %v1398
    %1434 = vset.pattern.permute.xlu0 0
    %1435 = vperm.xlu0 %1434, %v1432
    %v1436 = vpop.permute.xlu0 %1435
    %v1438 = vmul.f32 %v1430, %v1436
    %v1440 = vsel %vm132, %v1438, 0
    %1442 = vmatpush.msra.mxu0 0.0
    %1443 = vmatpush.msra.mxu0 0.0
    %1444 = vmatpush.msra.mxu0 0.0
    %1445 = vmatpush.msra.mxu0 0.0
    %1446 = vmatpush.msra.mxu0 0.0
    %1447 = vmatpush.msra.mxu0 0.0
    %1448 = vmatpush.msra.mxu0 0.0
    %1449 = vmatpush.msra.mxu0 0.0
    %1450 = vmatpush.msra.mxu0 0.0
    %1451 = vmatpush.msra.mxu0 0.0
    %1452 = vmatpush.msra.mxu0 0.0
    %1453 = vmatpush.msra.mxu0 0.0
    %1454 = vmatpush.msra.mxu0 %v443
    %1455 = vmatpush.msra.mxu0 %v442
    %1456 = vmatpush.msra.mxu0 %v441
    %1457 = vmatpush.msra.mxu0 %v440
    %1458 = vmatmul.f32.gmra.mxu0 %v1440
    %v1459 = vpop.f32.mrf.mxu0
    %v1460 = vadd.f32 %v450, %v1459
    %1461 = vdwg.mxu0
    %v1462 = vtanh.pop %v1460
    %1463 = vrot.lane.b32.xlu0 %v444, 126
    %v1464 = vpop.permute.xlu0 %1463
    %1465 = vrot.lane.b32.xlu0 %v445, 126
    %v1466 = vpop.permute.xlu0 %1465
    %1467 = vrot.lane.b32.xlu0 %v446, 126
    %v1468 = vpop.permute.xlu0 %1467
    %1469 = vrot.lane.b32.xlu0 %v447, 126
    %v1470 = vpop.permute.xlu0 %1469
    %v1476 = vsel %vm132, %v1462, 0
    %1478 = vmatpush.msra.mxu0 0.0
    %1479 = vmatpush.msra.mxu0 0.0
    %1480 = vmatpush.msra.mxu0 0.0
    %1481 = vmatpush.msra.mxu0 0.0
    %1482 = vmatpush.msra.mxu0 0.0
    %1483 = vmatpush.msra.mxu0 0.0
    %1484 = vmatpush.msra.mxu0 0.0
    %1485 = vmatpush.msra.mxu0 0.0
    %1486 = vmatpush.msra.mxu0 0.0
    %1487 = vmatpush.msra.mxu0 0.0
    %1488 = vmatpush.msra.mxu0 0.0
    %1489 = vmatpush.msra.mxu0 0.0
    %1490 = vmatpush.msra.mxu0 %v1470
    %1491 = vmatpush.msra.mxu0 %v1468
    %1492 = vmatpush.msra.mxu0 %v1466
    %1493 = vmatpush.msra.mxu0 %v1464
    %1494 = vmatmul.f32.gmra.mxu0 %v1476
    %v1495 = vpop.f32.mrf.mxu0
    %v1496 = vadd.f32 0.0, %v1495
    %1497 = vdwg.mxu0
    %1498 = vmatpush.msra.mxu0 0.0
    %1499 = vmatpush.msra.mxu0 0.0
    %1500 = vmatpush.msra.mxu0 0.0
    %1501 = vmatpush.msra.mxu0 0.0
    %1502 = vmatpush.msra.mxu0 0.0
    %1503 = vmatpush.msra.mxu0 0.0
    %1504 = vmatpush.msra.mxu0 0.0
    %1505 = vmatpush.msra.mxu0 0.0
    %1506 = vmatpush.msra.mxu0 0.0
    %1507 = vmatpush.msra.mxu0 0.0
    %1508 = vmatpush.msra.mxu0 0.0
    %1509 = vmatpush.msra.mxu0 0.0
    %1510 = vmatpush.msra.mxu0 0.0
    %1511 = vmatpush.msra.mxu0 0.0
    %1512 = vmatpush.msra.mxu0 %v1178
    %1513 = vmatpush.msra.mxu0 %v1177
    %1514 = vmatmul.f32.gmra.mxu0 %v454
    %v1515 = vpop.f32.mrf.mxu0
    %v1516 = vadd.f32 0.0, %v1515
    %1517 = vmatmul.f32.gmra.mxu0 %v457
    %v1518 = vpop.f32.mrf.mxu0
    %v1519 = vadd.f32 0.0, %v1518
    %1520 = vdwg.mxu0
    %v1521 = vadd.f32 %v412, %v1516
    %v1522 = vadd.f32 %v413, %v1519
    %v1524 = vsel %vm132, %v1521, 0
    %v1527 = vsel %vm132, %v1522, 0
    %1529 = vmatpush.msra.mxu0 0.0
    %1530 = vmatpush.msra.mxu0 0.0
    %1531 = vmatpush.msra.mxu0 0.0
    %1532 = vmatpush.msra.mxu0 0.0
    %1533 = vmatpush.msra.mxu0 0.0
    %1534 = vmatpush.msra.mxu0 0.0
    %1535 = vmatpush.msra.mxu0 0.0
    %1536 = vmatpush.msra.mxu0 0.0
    %1537 = vmatpush.msra.mxu0 0.0
    %1538 = vmatpush.msra.mxu0 0.0
    %1539 = vmatpush.msra.mxu0 0.0
    %1540 = vmatpush.msra.mxu0 0.0
    %1541 = vmatpush.msra.mxu0 %v439
    %1542 = vmatpush.msra.mxu0 %v438
    %1543 = vmatpush.msra.mxu0 %v437
    %1544 = vmatpush.msra.mxu0 %v436
    %1545 = vmatmul.f32.gmra.mxu0 %v1524
    %v1546 = vpop.f32.mrf.mxu0
    %v1547 = vadd.f32 0.0, %v1546
    %1548 = vmatmul.f32.gmra.mxu0 %v1527
    %v1549 = vpop.f32.mrf.mxu0
    %v1550 = vadd.f32 0.0, %v1549
    %1551 = vdwg.mxu0
    %v1552 = vadd.f32 %v1547, %v513
    %v1553 = vadd.f32 %v1550, %v513
    %1556 = vrot.lane.b32.xlu0 %v1547, 96
    %v1557 = vpop.permute.xlu0 %1556
    %1558 = vrot.lane.b32.xlu0 %v1550, 96
    %v1559 = vpop.permute.xlu0 %1558
    %1562 = vmatpush.msra.mxu0 0.0
    %1563 = vmatpush.msra.mxu0 0.0
    %1564 = vmatpush.msra.mxu0 0.0
    %1565 = vmatpush.msra.mxu0 0.0
    %1566 = vmatpush.msra.mxu0 0.0
    %1567 = vmatpush.msra.mxu0 0.0
    %1568 = vmatpush.msra.mxu0 0.0
    %1569 = vmatpush.msra.mxu0 0.0
    %1570 = vmatpush.msra.mxu0 0.0
    %1571 = vmatpush.msra.mxu0 0.0
    %1572 = vmatpush.msra.mxu0 0.0
    %1573 = vmatpush.msra.mxu0 0.0
    %1574 = vmatpush.msra.mxu0 0.0
    %1575 = vmatpush.msra.mxu0 0.0
    %1576 = vmatpush.msra.mxu0 %v1559
    %1577 = vmatpush.msra.mxu0 %v1557
    %1578 = vmatmul.f32.gmra.mxu0 %v526
    %v1579 = vpop.f32.mrf.mxu0
    %v1580 = vadd.f32 %v516, %v1579
    %1581 = vmatmul.f32.gmra.mxu0 %v529
    %v1582 = vpop.f32.mrf.mxu0
    %v1583 = vadd.f32 %v516, %v1582
    %1584 = vdwg.mxu0
    %v1585 = vmul.f32 %v1580, 0.6
    %v1586 = vmul.f32 %v1583, 0.6
    %v1587 = vmul.f32 %v1552, 0.4
    %v1588 = vmul.f32 %v1553, 0.4
    %1591 = vrot.lane.b32.xlu0 %v1587, 95
    %v1592 = vpop.permute.xlu0 %1591
    %1593 = vrot.lane.b32.xlu0 %v1588, 95
    %v1594 = vpop.permute.xlu0 %1593
    %v1597 = vadd.f32 %v1585, %v1592
    %v1598 = vadd.f32 %v1586, %v1594
    %1599 = vmatpush.xpose.msra.mxu0 0.0
    %1600 = vmatpush.xpose.msra.mxu0 0.0
    %1601 = vmatpush.xpose.msra.mxu0 0.0
    %1602 = vmatpush.xpose.msra.mxu0 0.0
    %1603 = vmatpush.xpose.msra.mxu0 0.0
    %1604 = vmatpush.xpose.msra.mxu0 0.0
    %1605 = vmatpush.xpose.msra.mxu0 0.0
    %1606 = vmatpush.xpose.msra.mxu0 0.0
    %1607 = vmatpush.xpose.msra.mxu0 0.0
    %1608 = vmatpush.xpose.msra.mxu0 0.0
    %1609 = vmatpush.xpose.msra.mxu0 0.0
    %1610 = vmatpush.xpose.msra.mxu0 0.0
    %1611 = vmatpush.xpose.msra.mxu0 0.0
    %1612 = vmatpush.xpose.msra.mxu0 0.0
    %1613 = vmatpush.xpose.msra.mxu0 %v1527
    %1614 = vmatpush.xpose.msra.mxu0 %v1524
    %1615 = vmatmul.f32.gmra.mxu0 %v569
    %v1616 = vpop.f32.mrf.mxu0
    %v1617 = vadd.f32 0.0, %v1616
    %1618 = vdwg.mxu0
    %1619 = vset.pattern.permute.xlu0 34
    %1620 = vperm.xlu0 %1619, %v1547
    %v1621 = vpop.permute.xlu0 %1620
    %1623 = vset.pattern.permute.xlu0 34
    %1624 = vperm.xlu0 %1623, %v1550
    %v1625 = vpop.permute.xlu0 %1624
    %v1627 = vperm.slane %v1617, 0
    %v1628 = vadd.f32 %v1621, %v1627
    %v1629 = vadd.f32 %v1625, %v1627
    %vm1630 = vcmp.ge.f32.partialorder %v1628, 0.0
    %vm1631 = vcmp.ge.f32.partialorder %v1629, 0.0
    %v1632 = vmul.f32 %v1628, 0.2
    %v1633 = vmul.f32 %v1629, 0.2
    %v1634 = vsel %vm1630, %v1628, %v1632
    %v1635 = vsel %vm1631, %v1629, %v1633
    %v1636 = vadd.f32 %v1634, %v429
    %v1637 = vadd.f32 %v1635, %v430
    %v1638 = vsel %vm98, %v1636, -inf
    %1639 = vmax.xlane.f32.xlu0 %v1638
    %v1640 = vpop.xlane.xlu0 %1639
    %v1641 = vsel %vm98, %v1637, -inf
    %1642 = vmax.xlane.f32.xlu0 %v1641
    %v1643 = vpop.xlane.xlu0 %1642
    %v1644 = vsub.f32 %v1636, %v1640
    %v1645 = vsub.f32 %v1637, %v1643
    %v1646 = vmul.f32 %v1644, 1.442695
    %v1647 = vpow.pop %v1646
    %v1648 = vmul.f32 %v1645, 1.442695
    %v1649 = vpow.pop %v1648
    %v1650 = vsel %vm98, %v1647, 0.0
    %1651 = vadd.xlane.f32.xlu0 %v1650
    %v1652 = vpop.xlane.xlu0 %1651
    %v1653 = vsel %vm98, %v1649, 0.0
    %1654 = vadd.xlane.f32.xlu0 %v1653
    %v1655 = vpop.xlane.xlu0 %1654
    %v1656 = vrcp.pop %v1652
    %v1657 = vrcp.pop %v1655
    %v1658 = vmul.f32 %v1647, %v1656
    %v1659 = vmul.f32 %v1649, %v1657
    %v1661 = vsel %vm98, %v1658, 0
    %v1664 = vsel %vm98, %v1659, 0
    %1666 = vmatpush.msra.mxu0 0.0
    %1667 = vmatpush.msra.mxu0 0.0
    %1668 = vmatpush.msra.mxu0 0.0
    %1669 = vmatpush.msra.mxu0 0.0
    %1670 = vmatpush.msra.mxu0 0.0
    %1671 = vmatpush.msra.mxu0 0.0
    %1672 = vmatpush.msra.mxu0 0.0
    %1673 = vmatpush.msra.mxu0 0.0
    %1674 = vmatpush.msra.mxu0 0.0
    %1675 = vmatpush.msra.mxu0 0.0
    %1676 = vmatpush.msra.mxu0 0.0
    %1677 = vmatpush.msra.mxu0 0.0
    %1678 = vmatpush.msra.mxu0 0.0
    %1679 = vmatpush.msra.mxu0 0.0
    %1680 = vmatpush.msra.mxu0 %v1550
    %1681 = vmatpush.msra.mxu0 %v1547
    %1682 = vmatmul.f32.gmra.mxu0 %v1661
    %v1683 = vpop.f32.mrf.mxu0
    %v1684 = vadd.f32 %v449, %v1683
    %1685 = vmatmul.f32.gmra.mxu0 %v1664
    %v1686 = vpop.f32.mrf.mxu0
    %v1687 = vadd.f32 %v449, %v1686
    %1688 = vdwg.mxu0
    %1690 = vset.pattern.permute.xlu0 0
    %1691 = vperm.xlu0 %1690, %v1597
    %v1692 = vpop.permute.xlu0 %1691
    %1695 = vset.pattern.permute.xlu0 0
    %1696 = vperm.xlu0 %1695, %v1598
    %v1697 = vpop.permute.xlu0 %1696
    %v1699 = vsel %vm434, %v1692, -1e+30
    %v1700 = vsel %vm435, %v1697, -1e+30
    %v1701 = vsel %vm673, %v1699, -inf
    %v1702 = vsel %vm673, %v1700, -inf
    %v1703 = vmax.f32 %v1701, %v1702
    %v1704 = vrot.slane %v1703, 4
    %v1705 = vmax.f32 %v1703, %v1704
    %v1706 = vrot.slane %v1705, 2
    %v1707 = vmax.f32 %v1705, %v1706
    %v1708 = vrot.slane %v1707, 1
    %v1709 = vmax.f32 %v1707, %v1708
    %v1710 = vsel %vm434, %v1709, 0.0
    %v1711 = vsel %vm435, %v1709, 0.0
    %v1712 = vsel %vm673, %v1710, 0.0
    %1713 = vadd.xlane.f32.xlu0 %v1712
    %v1714 = vpop.xlane.xlu0 %1713
    %v1715 = vsel %vm673, %v1711, 0.0
    %1716 = vadd.xlane.f32.xlu0 %v1715
    %v1717 = vpop.xlane.xlu0 %1716
    %v1718 = vsub.f32 %v1597, %v1714
    %v1719 = vsub.f32 %v1598, %v1717
    %v1720 = vmul.f32 %v1718, 1.442695
    %v1721 = vpow.pop %v1720
    %v1722 = vmul.f32 %v1719, 1.442695
    %v1723 = vpow.pop %v1722
    %1724 = vmatpush.msra.mxu0 0.0
    %1725 = vmatpush.msra.mxu0 0.0
    %1726 = vmatpush.msra.mxu0 0.0
    %1727 = vmatpush.msra.mxu0 0.0
    %1728 = vmatpush.msra.mxu0 0.0
    %1729 = vmatpush.msra.mxu0 0.0
    %1730 = vmatpush.msra.mxu0 0.0
    %1731 = vmatpush.msra.mxu0 0.0
    %1732 = vmatpush.msra.mxu0 0.0
    %1733 = vmatpush.msra.mxu0 0.0
    %1734 = vmatpush.msra.mxu0 0.0
    %1735 = vmatpush.msra.mxu0 0.0
    %1736 = vmatpush.msra.mxu0 0.0
    %1737 = vmatpush.msra.mxu0 0.0
    %1738 = vmatpush.msra.mxu0 %v1723
    %1739 = vmatpush.msra.mxu0 %v1721
    %1740 = vmatmul.f32.gmra.mxu0 %v698
    %v1741 = vpop.f32.mrf.mxu0
    %v1742 = vadd.f32 0.0, %v1741
    %1743 = vdwg.mxu0
    %1745 = vset.pattern.permute.xlu0 0
    %1746 = vperm.xlu0 %1745, %v1721
    %v1747 = vpop.permute.xlu0 %1746
    %1750 = vset.pattern.permute.xlu0 0
    %1751 = vperm.xlu0 %1750, %v1723
    %v1752 = vpop.permute.xlu0 %1751
    %v1754 = vmul.f32 %v1684, %v1747
    %v1755 = vmul.f32 %v1687, %v1752
    %1756 = vmatpush.msra.mxu0 0.0
    %1757 = vmatpush.msra.mxu0 0.0
    %1758 = vmatpush.msra.mxu0 0.0
    %1759 = vmatpush.msra.mxu0 0.0
    %1760 = vmatpush.msra.mxu0 0.0
    %1761 = vmatpush.msra.mxu0 0.0
    %1762 = vmatpush.msra.mxu0 0.0
    %1763 = vmatpush.msra.mxu0 0.0
    %1764 = vmatpush.msra.mxu0 0.0
    %1765 = vmatpush.msra.mxu0 0.0
    %1766 = vmatpush.msra.mxu0 0.0
    %1767 = vmatpush.msra.mxu0 0.0
    %1768 = vmatpush.msra.mxu0 0.0
    %1769 = vmatpush.msra.mxu0 0.0
    %1770 = vmatpush.msra.mxu0 %v1755
    %1771 = vmatpush.msra.mxu0 %v1754
    %1772 = vmatmul.f32.gmra.mxu0 %v698
    %v1773 = vpop.f32.mrf.mxu0
    %v1774 = vadd.f32 0.0, %v1773
    %1775 = vdwg.mxu0
    %v1776 = vrcp.pop %v1742
    %1778 = vset.pattern.permute.xlu0 0
    %1779 = vperm.xlu0 %1778, %v1776
    %v1780 = vpop.permute.xlu0 %1779
    %v1782 = vmul.f32 %v1774, %v1780
    %v1784 = vsel %vm132, %v1782, 0
    %1786 = vmatpush.msra.mxu0 0.0
    %1787 = vmatpush.msra.mxu0 0.0
    %1788 = vmatpush.msra.mxu0 0.0
    %1789 = vmatpush.msra.mxu0 0.0
    %1790 = vmatpush.msra.mxu0 0.0
    %1791 = vmatpush.msra.mxu0 0.0
    %1792 = vmatpush.msra.mxu0 0.0
    %1793 = vmatpush.msra.mxu0 0.0
    %1794 = vmatpush.msra.mxu0 0.0
    %1795 = vmatpush.msra.mxu0 0.0
    %1796 = vmatpush.msra.mxu0 0.0
    %1797 = vmatpush.msra.mxu0 0.0
    %1798 = vmatpush.msra.mxu0 %v443
    %1799 = vmatpush.msra.mxu0 %v442
    %1800 = vmatpush.msra.mxu0 %v441
    %1801 = vmatpush.msra.mxu0 %v440
    %1802 = vmatmul.f32.gmra.mxu0 %v1784
    %v1803 = vpop.f32.mrf.mxu0
    %v1804 = vadd.f32 %v450, %v1803
    %1805 = vdwg.mxu0
    %v1806 = vtanh.pop %v1804
    %1807 = vrot.lane.b32.xlu0 %v444, 125
    %v1808 = vpop.permute.xlu0 %1807
    %1809 = vrot.lane.b32.xlu0 %v445, 125
    %v1810 = vpop.permute.xlu0 %1809
    %1811 = vrot.lane.b32.xlu0 %v446, 125
    %v1812 = vpop.permute.xlu0 %1811
    %1813 = vrot.lane.b32.xlu0 %v447, 125
    %v1814 = vpop.permute.xlu0 %1813
    %v1820 = vsel %vm132, %v1806, 0
    %1822 = vmatpush.msra.mxu0 0.0
    %1823 = vmatpush.msra.mxu0 0.0
    %1824 = vmatpush.msra.mxu0 0.0
    %1825 = vmatpush.msra.mxu0 0.0
    %1826 = vmatpush.msra.mxu0 0.0
    %1827 = vmatpush.msra.mxu0 0.0
    %1828 = vmatpush.msra.mxu0 0.0
    %1829 = vmatpush.msra.mxu0 0.0
    %1830 = vmatpush.msra.mxu0 0.0
    %1831 = vmatpush.msra.mxu0 0.0
    %1832 = vmatpush.msra.mxu0 0.0
    %1833 = vmatpush.msra.mxu0 0.0
    %1834 = vmatpush.msra.mxu0 %v1814
    %1835 = vmatpush.msra.mxu0 %v1812
    %1836 = vmatpush.msra.mxu0 %v1810
    %1837 = vmatpush.msra.mxu0 %v1808
    %1838 = vmatmul.f32.gmra.mxu0 %v1820
    %v1839 = vpop.f32.mrf.mxu0
    %v1840 = vadd.f32 0.0, %v1839
    %1841 = vdwg.mxu0
    %1843 = vrot.lane.b32.xlu0 %v1152, 1
    %v1844 = vpop.permute.xlu0 %1843
    %1847 = vrot.lane.b32.xlu0 %v1496, 2
    %v1848 = vpop.permute.xlu0 %1847
    %1851 = vrot.lane.b32.xlu0 %v1840, 3
    %v1852 = vpop.permute.xlu0 %1851
    %vm1854 = vcmask 7168
    %v1855 = vsel %vm1854, %v804, %v1844
    %v1856 = vsel %vm673, %v1855, %v1848
    %vm1857 = vcmask 23552
    %v1858 = vsel %vm1857, %v1856, %v1852
    %v1859 = vld [vmem:[%s9 + $0x11] ss:$0 sm:$0xff]
    %v1860 = vadd.f32 %v1858, %v1859
    %vm1861 = vcmask 25600
    %v1862 = vsel %vm1861, %v1860, -inf
    %1863 = vmax.xlane.f32.xlu0 %v1862
    %v1864 = vpop.xlane.xlu0 %1863
    %v1865 = vsub.f32 %v1860, %v1864
    %v1866 = vmul.f32 %v1865, 1.442695
    %v1867 = vpow.pop %v1866
    %v1868 = vsel %vm1861, %v1867, 0.0
    %1869 = vadd.xlane.f32.xlu0 %v1868
    %v1870 = vpop.xlane.xlu0 %1869
    %v1871 = vrcp.pop %v1870
    %v1872 = vmul.f32 %v1867, %v1871
    %v1874 = vsel %vm673, %v432, 0
    %v1877 = vsel %vm673, %v433, 0
    %vm1879 = vcmask 1041408
    %v1881 = vsel %vm1879, %v1872, 0
    %1883 = vmatpush.msra.mxu0 0.0
    %1884 = vmatpush.msra.mxu0 0.0
    %1885 = vmatpush.msra.mxu0 0.0
    %1886 = vmatpush.msra.mxu0 0.0
    %1887 = vmatpush.msra.mxu0 0.0
    %1888 = vmatpush.msra.mxu0 0.0
    %1889 = vmatpush.msra.mxu0 0.0
    %1890 = vmatpush.msra.mxu0 0.0
    %1891 = vmatpush.msra.mxu0 0.0
    %1892 = vmatpush.msra.mxu0 0.0
    %1893 = vmatpush.msra.mxu0 0.0
    %1894 = vmatpush.msra.mxu0 0.0
    %1895 = vmatpush.msra.mxu0 0.0
    %1896 = vmatpush.msra.mxu0 0.0
    %1897 = vmatpush.msra.mxu0 0.0
    %1898 = vmatpush.msra.mxu0 %v1881
    %1899 = vmatmul.f32.gmra.mxu0 %v1874
    %v1900 = vpop.f32.mrf.mxu0
    %v1901 = vadd.f32 0.0, %v1900
    %1902 = vmatmul.f32.gmra.mxu0 %v1877
    %v1903 = vpop.f32.mrf.mxu0
    %v1904 = vadd.f32 0.0, %v1903
    %1905 = vdwg.mxu0
    %1907 = vset.pattern.permute.xlu0 0
    %1908 = vperm.xlu0 %1907, %v1901
    %v1909 = vpop.permute.xlu0 %1908
    %1912 = vset.pattern.permute.xlu0 0
    %1913 = vperm.xlu0 %1912, %v1904
    %v1914 = vpop.permute.xlu0 %1913
    %v1916 = vmul.f32 %v482, %v1909
    %v1917 = vmul.f32 %v483, %v1914
    %1918 = vset.pattern.permute.xlu0 1
    %1919 = vperm.xlu0 %1918, %v1901
    %v1920 = vpop.permute.xlu0 %1919
    %1922 = vset.pattern.permute.xlu0 1
    %1923 = vperm.xlu0 %1922, %v1904
    %v1924 = vpop.permute.xlu0 %1923
    %v1926 = vmul.f32 %v829, %v1920
    %v1927 = vmul.f32 %v830, %v1924
    %v1928 = vadd.f32 %v1916, %v1926
    %v1929 = vadd.f32 %v1917, %v1927
    %1930 = vset.pattern.permute.xlu0 2
    %1931 = vperm.xlu0 %1930, %v1901
    %v1932 = vpop.permute.xlu0 %1931
    %1934 = vset.pattern.permute.xlu0 2
    %1935 = vperm.xlu0 %1934, %v1904
    %v1936 = vpop.permute.xlu0 %1935
    %v1938 = vmul.f32 %v1177, %v1932
    %v1939 = vmul.f32 %v1178, %v1936
    %v1940 = vadd.f32 %v1928, %v1938
    %v1941 = vadd.f32 %v1929, %v1939
    %1942 = vset.pattern.permute.xlu0 3
    %1943 = vperm.xlu0 %1942, %v1901
    %v1944 = vpop.permute.xlu0 %1943
    %1946 = vset.pattern.permute.xlu0 3
    %1947 = vperm.xlu0 %1946, %v1904
    %v1948 = vpop.permute.xlu0 %1947
    %v1950 = vmul.f32 %v1521, %v1944
    %v1951 = vmul.f32 %v1522, %v1948
    %v1952 = vadd.f32 %v1940, %v1950
    %v1953 = vadd.f32 %v1941, %v1951
    %v1954 = vld [vmem:[%s4] sm:$0xff]
    %v1956 = vsel %vm98, %v1954, 0
    %1958 = vmatpush.msra.mxu0 0.0
    %1959 = vmatpush.msra.mxu0 0.0
    %1960 = vmatpush.msra.mxu0 0.0
    %1961 = vmatpush.msra.mxu0 0.0
    %1962 = vmatpush.msra.mxu0 0.0
    %1963 = vmatpush.msra.mxu0 0.0
    %1964 = vmatpush.msra.mxu0 0.0
    %1965 = vmatpush.msra.mxu0 0.0
    %1966 = vmatpush.msra.mxu0 0.0
    %1967 = vmatpush.msra.mxu0 0.0
    %1968 = vmatpush.msra.mxu0 0.0
    %1969 = vmatpush.msra.mxu0 0.0
    %1970 = vmatpush.msra.mxu0 0.0
    %1971 = vmatpush.msra.mxu0 0.0
    %1972 = vmatpush.msra.mxu0 %v1953
    %1973 = vmatpush.msra.mxu0 %v1952
    %1974 = vmatmul.f32.gmra.mxu0 %v1956
    %v1975 = vpop.f32.mrf.mxu0
    %v1976 = vadd.f32 0.0, %v1975
    %1977 = vdwg.mxu0
    %v1978 = vadd.f32 %v263, %v1976
    %v1979 = vld [vmem:[%s9 + $0x13] ss:$0 sm:$0xff]
    %v1980 = vld [vmem:[%s9 + $0x14] ss:$0 sm:$0xff]
    %v1981 = vsel %vm132, %v1978, 0.0
    %v1982 = vrot.slane %v1981, 4
    %v1983 = vadd.f32 %v1981, %v1982
    %v1984 = vrot.slane %v1983, 2
    %v1985 = vadd.f32 %v1983, %v1984
    %v1986 = vrot.slane %v1985, 1
    %v1987 = vadd.f32 %v1985, %v1986
    %v1988 = vmul.f32 %v1987, %v171
    %v1989 = vsub.f32 %v1978, %v1988
    %v1990 = vmul.f32 %v1989, %v1989
    %v1991 = vsel %vm132, %v1990, 0.0
    %v1992 = vrot.slane %v1991, 4
    %v1993 = vadd.f32 %v1991, %v1992
    %v1994 = vrot.slane %v1993, 2
    %v1995 = vadd.f32 %v1993, %v1994
    %v1996 = vrot.slane %v1995, 1
    %v1997 = vadd.f32 %v1995, %v1996
    %v1998 = vmul.f32 %v1997, %v171
    %v1999 = vmul.f32 %v1979, %v1989
    %v2000 = vadd.f32 %v1998, 1e-05
    %v2001 = vrsqrt.pop %v2000
    %v2002 = vmul.f32 %v2001, %v2000
    %v2003 = vmul.f32 %v2002, %v2001
    %v2004 = vmul.f32 0.5, %v2003
    %v2005 = vsub.f32 1.5, %v2004
    %v2006 = vmul.f32 %v2001, %v2005
    %vm2007 = vweird.f32 %v2000
    %vm2008 = vweird.f32 %v2001
    %vm2009 = vmor %vm2007, %vm2008
    %v2010 = vsel %vm2009, %v2001, %v2006
    %v2011 = vmul.f32 %v1999, %v2010
    %v2012 = vadd.f32 %v2011, %v1980
    %s2013 = scalar_lea.vmem %s9, 22
    %v2014 = vld [vmem:[%s2013] ss:$8 sm:$0x3]
    %v2015 = vld [vmem:[%s20] sm:$0xff]
    %v2016 = vld [vmem:[%s20 + $0x8] sm:$0xff]
    %v2017 = vld [vmem:[%s20 + $0x10] sm:$0xff]
    %v2018 = vld [vmem:[%s20 + $0x18] sm:$0xff]
    %v2019 = vld [vmem:[%s20 + $0x20] sm:$0xff]
    %v2020 = vld [vmem:[%s20 + $0x28] sm:$0xff]
    %v2021 = vld [vmem:[%s20 + $0x30] sm:$0xff]
    %v2022 = vld [vmem:[%s20 + $0x38] sm:$0xff]
    %v2024 = vperm.slane %v2014, 0
    %v2025 = vperm.slane %v2014, 1
    %v2029 = vsel %vm132, %v2012, 0
    %2031 = vmatpush.msra.mxu0 0.0
    %2032 = vmatpush.msra.mxu0 0.0
    %2033 = vmatpush.msra.mxu0 0.0
    %2034 = vmatpush.msra.mxu0 0.0
    %2035 = vmatpush.msra.mxu0 0.0
    %2036 = vmatpush.msra.mxu0 0.0
    %2037 = vmatpush.msra.mxu0 0.0
    %2038 = vmatpush.msra.mxu0 0.0
    %2039 = vmatpush.msra.mxu0 0.0
    %2040 = vmatpush.msra.mxu0 0.0
    %2041 = vmatpush.msra.mxu0 0.0
    %2042 = vmatpush.msra.mxu0 0.0
    %2043 = vmatpush.msra.mxu0 %v2021
    %2044 = vmatpush.msra.mxu0 %v2019
    %2045 = vmatpush.msra.mxu0 %v2017
    %2046 = vmatpush.msra.mxu0 %v2015
    %2047 = vmatmul.f32.gmra.mxu0 %v2029
    %v2048 = vpop.f32.mrf.mxu0
    %v2049 = vadd.f32 %v2024, %v2048
    %2050 = vdwg.mxu0
    %2051 = vmatpush.msra.mxu0 0.0
    %2052 = vmatpush.msra.mxu0 0.0
    %2053 = vmatpush.msra.mxu0 0.0
    %2054 = vmatpush.msra.mxu0 0.0
    %2055 = vmatpush.msra.mxu0 0.0
    %2056 = vmatpush.msra.mxu0 0.0
    %2057 = vmatpush.msra.mxu0 0.0
    %2058 = vmatpush.msra.mxu0 0.0
    %2059 = vmatpush.msra.mxu0 0.0
    %2060 = vmatpush.msra.mxu0 0.0
    %2061 = vmatpush.msra.mxu0 0.0
    %2062 = vmatpush.msra.mxu0 0.0
    %2063 = vmatpush.msra.mxu0 %v2022
    %2064 = vmatpush.msra.mxu0 %v2020
    %2065 = vmatpush.msra.mxu0 %v2018
    %2066 = vmatpush.msra.mxu0 %v2016
    %2067 = vmatmul.f32.gmra.mxu0 %v2029
    %v2068 = vpop.f32.mrf.mxu0
    %v2069 = vadd.f32 %v2025, %v2068
    %2070 = vdwg.mxu0
    %s2071 = scalar_lea.vmem %s9, 23
    %v2072 = vld [vmem:[%s2071] ss:$8 sm:$0x3]
    %s2073 = scalar_lea.vmem %s9, 32
    %v2074 = vld [vmem:[%s2073] ss:$8 sm:$0x3]
    %v2075 = vrot.slane %v2049, 4
    %v2076 = vadd.f32 %v2049, %v2075
    %v2077 = vrot.slane %v2076, 2
    %v2078 = vadd.f32 %v2076, %v2077
    %v2079 = vrot.slane %v2078, 1
    %v2080 = vadd.f32 %v2078, %v2079
    %vm2081 = vcmask 523264
    %v2082 = vsel %vm2081, %v2069, 0.0
    %v2083 = vrot.slane %v2082, 4
    %v2084 = vadd.f32 %v2082, %v2083
    %v2085 = vrot.slane %v2084, 2
    %v2086 = vadd.f32 %v2084, %v2085
    %v2087 = vrot.slane %v2086, 1
    %v2088 = vadd.f32 %v2086, %v2087
    %v2089 = vmul.f32 %v2080, %v171
    %v2090 = vmul.f32 %v2088, %v171
    %v2091 = vsub.f32 %v2049, %v2089
    %v2092 = vsub.f32 %v2069, %v2090
    %v2093 = vmul.f32 %v2091, %v2091
    %v2094 = vmul.f32 %v2092, %v2092
    %v2095 = vrot.slane %v2093, 4
    %v2096 = vadd.f32 %v2093, %v2095
    %v2097 = vrot.slane %v2096, 2
    %v2098 = vadd.f32 %v2096, %v2097
    %v2099 = vrot.slane %v2098, 1
    %v2100 = vadd.f32 %v2098, %v2099
    %v2101 = vsel %vm2081, %v2094, 0.0
    %v2102 = vrot.slane %v2101, 4
    %v2103 = vadd.f32 %v2101, %v2102
    %v2104 = vrot.slane %v2103, 2
    %v2105 = vadd.f32 %v2103, %v2104
    %v2106 = vrot.slane %v2105, 1
    %v2107 = vadd.f32 %v2105, %v2106
    %v2108 = vmul.f32 %v2100, %v171
    %v2109 = vmul.f32 %v2107, %v171
    %v2111 = vperm.slane %v2072, 0
    %v2112 = vperm.slane %v2072, 1
    %v2115 = vmul.f32 %v2111, %v2091
    %v2116 = vmul.f32 %v2112, %v2092
    %v2117 = vadd.f32 %v2108, 1e-05
    %v2118 = vadd.f32 %v2109, 1e-05
    %v2119 = vrsqrt.pop %v2117
    %v2120 = vmul.f32 %v2119, %v2117
    %v2121 = vmul.f32 %v2120, %v2119
    %v2122 = vmul.f32 0.5, %v2121
    %v2123 = vsub.f32 1.5, %v2122
    %v2124 = vmul.f32 %v2119, %v2123
    %vm2125 = vweird.f32 %v2117
    %vm2126 = vweird.f32 %v2119
    %vm2127 = vmor %vm2125, %vm2126
    %v2128 = vsel %vm2127, %v2119, %v2124
    %v2129 = vrsqrt.pop %v2118
    %v2130 = vmul.f32 %v2129, %v2118
    %v2131 = vmul.f32 %v2130, %v2129
    %v2132 = vmul.f32 0.5, %v2131
    %v2133 = vsub.f32 1.5, %v2132
    %v2134 = vmul.f32 %v2129, %v2133
    %vm2135 = vweird.f32 %v2118
    %vm2136 = vweird.f32 %v2129
    %vm2137 = vmor %vm2135, %vm2136
    %v2138 = vsel %vm2137, %v2129, %v2134
    %v2139 = vmul.f32 %v2115, %v2128
    %v2140 = vmul.f32 %v2116, %v2138
    %v2142 = vperm.slane %v2074, 0
    %v2143 = vperm.slane %v2074, 1
    %v2146 = vadd.f32 %v2139, %v2142
    %v2147 = vadd.f32 %v2140, %v2143
    %s2148 = sld [smem:[#allocation2 + $0x4]]
    %vm2149 = vcmp.ge.f32.partialorder %v2146, 0.0
    %vm2150 = vcmp.ge.f32.partialorder %v2147, 0.0
    %v2151 = vstv %s2148
    %v2152 = vmul.f32 %v2151, %v2146
    %v2153 = vmul.f32 %v2151, %v2147
    %v2154 = vsel %vm2149, %v2146, %v2152
    %v2155 = vsel %vm2150, %v2147, %v2153
    %s2156 = scalar_lea.vmem %s9, 33
    %v2157 = vld [vmem:[%s2156] ss:$8 sm:$0x3]
    %v2158 = vld [vmem:[%s21] sm:$0xff]
    %v2159 = vld [vmem:[%s21 + $0x8] sm:$0xff]
    %v2160 = vld [vmem:[%s21 + $0x10] sm:$0xff]
    %v2161 = vld [vmem:[%s21 + $0x18] sm:$0xff]
    %v2162 = vld [vmem:[%s21 + $0x20] sm:$0xff]
    %v2163 = vld [vmem:[%s21 + $0x28] sm:$0xff]
    %v2164 = vld [vmem:[%s21 + $0x30] sm:$0xff]
    %v2165 = vld [vmem:[%s21 + $0x38] sm:$0xff]
    %v2166 = vld [vmem:[%s21 + $0x40] sm:$0xff]
    %v2167 = vld [vmem:[%s21 + $0x48] sm:$0xff]
    %v2168 = vld [vmem:[%s21 + $0x50] sm:$0xff]
    %v2169 = vld [vmem:[%s21 + $0x58] sm:$0xff]
    %v2170 = vld [vmem:[%s21 + $0x60] sm:$0xff]
    %v2171 = vld [vmem:[%s21 + $0x68] sm:$0xff]
    %v2172 = vld [vmem:[%s21 + $0x70] sm:$0xff]
    %v2173 = vld [vmem:[%s21 + $0x78] sm:$0xff]
    %v2174 = vld [vmem:[%s21 + $0x80] sm:$0xff]
    %v2175 = vld [vmem:[%s21 + $0x88] sm:$0xff]
    %v2176 = vld [vmem:[%s21 + $0x90] sm:$0xff]
    %v2177 = vld [vmem:[%s21 + $0x98] sm:$0xff]
    %v2178 = vld [vmem:[%s21 + $0xa0] sm:$0xff]
    %v2179 = vld [vmem:[%s21 + $0xa8] sm:$0xff]
    %v2180 = vld [vmem:[%s21 + $0xb0] sm:$0xff]
    %v2181 = vld [vmem:[%s21 + $0xb8] sm:$0xff]
    %v2182 = vld [vmem:[%s21 + $0xc0] sm:$0xff]
    %v2183 = vld [vmem:[%s21 + $0xc8] sm:$0xff]
    %v2184 = vld [vmem:[%s21 + $0xd0] sm:$0xff]
    %v2185 = vld [vmem:[%s21 + $0xd8] sm:$0xff]
    %v2186 = vld [vmem:[%s21 + $0xe0] sm:$0xff]
    %v2187 = vld [vmem:[%s21 + $0xe8] sm:$0xff]
    %v2188 = vld [vmem:[%s21 + $0xf0] sm:$0xff]
    %v2189 = vld [vmem:[%s21 + $0xf8] sm:$0xff]
    %v2190 = vld [vmem:[%s21 + $0x100] sm:$0xff]
    %v2191 = vld [vmem:[%s21 + $0x108] sm:$0xff]
    %v2192 = vld [vmem:[%s21 + $0x110] sm:$0xff]
    %v2193 = vld [vmem:[%s21 + $0x118] sm:$0xff]
    %v2194 = vld [vmem:[%s21 + $0x120] sm:$0xff]
    %v2195 = vld [vmem:[%s21 + $0x128] sm:$0xff]
    %v2196 = vld [vmem:[%s21 + $0x130] sm:$0xff]
    %v2197 = vld [vmem:[%s21 + $0x138] sm:$0xff]
    %v2198 = vld [vmem:[%s21 + $0x140] sm:$0xff]
    %v2199 = vld [vmem:[%s21 + $0x148] sm:$0xff]
    %v2200 = vld [vmem:[%s21 + $0x150] sm:$0xff]
    %v2201 = vld [vmem:[%s21 + $0x158] sm:$0xff]
    %v2202 = vld [vmem:[%s21 + $0x160] sm:$0xff]
    %v2203 = vld [vmem:[%s21 + $0x168] sm:$0xff]
    %v2204 = vld [vmem:[%s21 + $0x170] sm:$0xff]
    %v2205 = vld [vmem:[%s21 + $0x178] sm:$0xff]
    %v2207 = vperm.slane %v2157, 0
    %v2208 = vperm.slane %v2157, 1
    %v2212 = vsel %vm2081, %v2155, 0
    %2214 = vmatpush.msra.mxu0 %v2188
    %2215 = vmatpush.msra.mxu0 %v2186
    %2216 = vmatpush.msra.mxu0 %v2184
    %2217 = vmatpush.msra.mxu0 %v2182
    %2218 = vmatpush.msra.mxu0 %v2180
    %2219 = vmatpush.msra.mxu0 %v2178
    %2220 = vmatpush.msra.mxu0 %v2176
    %2221 = vmatpush.msra.mxu0 %v2174
    %2222 = vmatpush.msra.mxu0 %v2172
    %2223 = vmatpush.msra.mxu0 %v2170
    %2224 = vmatpush.msra.mxu0 %v2168
    %2225 = vmatpush.msra.mxu0 %v2166
    %2226 = vmatpush.msra.mxu0 %v2164
    %2227 = vmatpush.msra.mxu0 %v2162
    %2228 = vmatpush.msra.mxu0 %v2160
    %2229 = vmatpush.msra.mxu0 %v2158
    %2230 = vmatmul.f32.gmra.mxu0 %v2154
    %v2231 = vpop.f32.mrf.mxu0
    %v2232 = vadd.f32 %v2207, %v2231
    %2233 = vdwg.mxu0
    %2234 = vmatpush.msra.mxu0 0.0
    %2235 = vmatpush.msra.mxu0 0.0
    %2236 = vmatpush.msra.mxu0 0.0
    %2237 = vmatpush.msra.mxu0 0.0
    %2238 = vmatpush.msra.mxu0 0.0
    %2239 = vmatpush.msra.mxu0 0.0
    %2240 = vmatpush.msra.mxu0 0.0
    %2241 = vmatpush.msra.mxu0 0.0
    %2242 = vmatpush.msra.mxu0 %v2204
    %2243 = vmatpush.msra.mxu0 %v2202
    %2244 = vmatpush.msra.mxu0 %v2200
    %2245 = vmatpush.msra.mxu0 %v2198
    %2246 = vmatpush.msra.mxu0 %v2196
    %2247 = vmatpush.msra.mxu0 %v2194
    %2248 = vmatpush.msra.mxu0 %v2192
    %2249 = vmatpush.msra.mxu0 %v2190
    %2250 = vmatmul.f32.gmra.mxu0 %v2212
    %v2251 = vpop.f32.mrf.mxu0
    %v2252 = vadd.f32 %v2232, %v2251
    %2253 = vdwg.mxu0
    %2254 = vmatpush.msra.mxu0 %v2189
    %2255 = vmatpush.msra.mxu0 %v2187
    %2256 = vmatpush.msra.mxu0 %v2185
    %2257 = vmatpush.msra.mxu0 %v2183
    %2258 = vmatpush.msra.mxu0 %v2181
    %2259 = vmatpush.msra.mxu0 %v2179
    %2260 = vmatpush.msra.mxu0 %v2177
    %2261 = vmatpush.msra.mxu0 %v2175
    %2262 = vmatpush.msra.mxu0 %v2173
    %2263 = vmatpush.msra.mxu0 %v2171
    %2264 = vmatpush.msra.mxu0 %v2169
    %2265 = vmatpush.msra.mxu0 %v2167
    %2266 = vmatpush.msra.mxu0 %v2165
    %2267 = vmatpush.msra.mxu0 %v2163
    %2268 = vmatpush.msra.mxu0 %v2161
    %2269 = vmatpush.msra.mxu0 %v2159
    %2270 = vmatmul.f32.gmra.mxu0 %v2154
    %v2271 = vpop.f32.mrf.mxu0
    %v2272 = vadd.f32 %v2208, %v2271
    %2273 = vdwg.mxu0
    %2274 = vmatpush.msra.mxu0 0.0
    %2275 = vmatpush.msra.mxu0 0.0
    %2276 = vmatpush.msra.mxu0 0.0
    %2277 = vmatpush.msra.mxu0 0.0
    %2278 = vmatpush.msra.mxu0 0.0
    %2279 = vmatpush.msra.mxu0 0.0
    %2280 = vmatpush.msra.mxu0 0.0
    %2281 = vmatpush.msra.mxu0 0.0
    %2282 = vmatpush.msra.mxu0 %v2205
    %2283 = vmatpush.msra.mxu0 %v2203
    %2284 = vmatpush.msra.mxu0 %v2201
    %2285 = vmatpush.msra.mxu0 %v2199
    %2286 = vmatpush.msra.mxu0 %v2197
    %2287 = vmatpush.msra.mxu0 %v2195
    %2288 = vmatpush.msra.mxu0 %v2193
    %2289 = vmatpush.msra.mxu0 %v2191
    %2290 = vmatmul.f32.gmra.mxu0 %v2212
    %v2291 = vpop.f32.mrf.mxu0
    %v2292 = vadd.f32 %v2272, %v2291
    %2293 = vdwg.mxu0
    %s2294 = scalar_lea.vmem %s9, 34
    %v2295 = vld [vmem:[%s2294] ss:$8 sm:$0x3]
    %s2296 = scalar_lea.vmem %s9, 35
    %v2297 = vld [vmem:[%s2296] ss:$8 sm:$0x3]
    %v2298 = vrot.slane %v2252, 4
    %v2299 = vadd.f32 %v2252, %v2298
    %v2300 = vrot.slane %v2299, 2
    %v2301 = vadd.f32 %v2299, %v2300
    %v2302 = vrot.slane %v2301, 1
    %v2303 = vadd.f32 %v2301, %v2302
    %v2304 = vsel %vm2081, %v2292, 0.0
    %v2305 = vrot.slane %v2304, 4
    %v2306 = vadd.f32 %v2304, %v2305
    %v2307 = vrot.slane %v2306, 2
    %v2308 = vadd.f32 %v2306, %v2307
    %v2309 = vrot.slane %v2308, 1
    %v2310 = vadd.f32 %v2308, %v2309
    %v2311 = vmul.f32 %v2303, %v171
    %v2312 = vmul.f32 %v2310, %v171
    %v2313 = vsub.f32 %v2252, %v2311
    %v2314 = vsub.f32 %v2292, %v2312
    %v2315 = vmul.f32 %v2313, %v2313
    %v2316 = vmul.f32 %v2314, %v2314
    %v2317 = vrot.slane %v2315, 4
    %v2318 = vadd.f32 %v2315, %v2317
    %v2319 = vrot.slane %v2318, 2
    %v2320 = vadd.f32 %v2318, %v2319
    %v2321 = vrot.slane %v2320, 1
    %v2322 = vadd.f32 %v2320, %v2321
    %v2323 = vsel %vm2081, %v2316, 0.0
    %v2324 = vrot.slane %v2323, 4
    %v2325 = vadd.f32 %v2323, %v2324
    %v2326 = vrot.slane %v2325, 2
    %v2327 = vadd.f32 %v2325, %v2326
    %v2328 = vrot.slane %v2327, 1
    %v2329 = vadd.f32 %v2327, %v2328
    %v2330 = vmul.f32 %v2322, %v171
    %v2331 = vmul.f32 %v2329, %v171
    %v2333 = vperm.slane %v2295, 0
    %v2334 = vperm.slane %v2295, 1
    %v2337 = vmul.f32 %v2333, %v2313
    %v2338 = vmul.f32 %v2334, %v2314
    %v2339 = vadd.f32 %v2330, 1e-05
    %v2340 = vadd.f32 %v2331, 1e-05
    %v2341 = vrsqrt.pop %v2339
    %v2342 = vmul.f32 %v2341, %v2339
    %v2343 = vmul.f32 %v2342, %v2341
    %v2344 = vmul.f32 0.5, %v2343
    %v2345 = vsub.f32 1.5, %v2344
    %v2346 = vmul.f32 %v2341, %v2345
    %vm2347 = vweird.f32 %v2339
    %vm2348 = vweird.f32 %v2341
    %vm2349 = vmor %vm2347, %vm2348
    %v2350 = vsel %vm2349, %v2341, %v2346
    %v2351 = vrsqrt.pop %v2340
    %v2352 = vmul.f32 %v2351, %v2340
    %v2353 = vmul.f32 %v2352, %v2351
    %v2354 = vmul.f32 0.5, %v2353
    %v2355 = vsub.f32 1.5, %v2354
    %v2356 = vmul.f32 %v2351, %v2355
    %vm2357 = vweird.f32 %v2340
    %vm2358 = vweird.f32 %v2351
    %vm2359 = vmor %vm2357, %vm2358
    %v2360 = vsel %vm2359, %v2351, %v2356
    %v2361 = vmul.f32 %v2337, %v2350
    %v2362 = vmul.f32 %v2338, %v2360
    %v2364 = vperm.slane %v2297, 0
    %v2365 = vperm.slane %v2297, 1
    %v2368 = vadd.f32 %v2361, %v2364
    %v2369 = vadd.f32 %v2362, %v2365
    %s2370 = sld [smem:[#allocation2 + $0x5]]
    %vm2371 = vcmp.ge.f32.partialorder %v2368, 0.0
    %vm2372 = vcmp.ge.f32.partialorder %v2369, 0.0
    %v2373 = vstv %s2370
    %v2374 = vmul.f32 %v2373, %v2368
    %v2375 = vmul.f32 %v2373, %v2369
    %v2376 = vsel %vm2371, %v2368, %v2374
    %v2377 = vsel %vm2372, %v2369, %v2375
    %s2378 = scalar_lea.vmem %s9, 36
    %v2379 = vld [vmem:[%s2378] ss:$8 sm:$0x3]
    %v2380 = vld [vmem:[%s22] sm:$0xff]
    %v2381 = vld [vmem:[%s22 + $0x8] sm:$0xff]
    %v2382 = vld [vmem:[%s22 + $0x10] sm:$0xff]
    %v2383 = vld [vmem:[%s22 + $0x18] sm:$0xff]
    %v2384 = vld [vmem:[%s22 + $0x20] sm:$0xff]
    %v2385 = vld [vmem:[%s22 + $0x28] sm:$0xff]
    %v2386 = vld [vmem:[%s22 + $0x30] sm:$0xff]
    %v2387 = vld [vmem:[%s22 + $0x38] sm:$0xff]
    %v2388 = vld [vmem:[%s22 + $0x40] sm:$0xff]
    %v2389 = vld [vmem:[%s22 + $0x48] sm:$0xff]
    %v2390 = vld [vmem:[%s22 + $0x50] sm:$0xff]
    %v2391 = vld [vmem:[%s22 + $0x58] sm:$0xff]
    %v2392 = vld [vmem:[%s22 + $0x60] sm:$0xff]
    %v2393 = vld [vmem:[%s22 + $0x68] sm:$0xff]
    %v2394 = vld [vmem:[%s22 + $0x70] sm:$0xff]
    %v2395 = vld [vmem:[%s22 + $0x78] sm:$0xff]
    %v2396 = vld [vmem:[%s22 + $0x80] sm:$0xff]
    %v2397 = vld [vmem:[%s22 + $0x88] sm:$0xff]
    %v2398 = vld [vmem:[%s22 + $0x90] sm:$0xff]
    %v2399 = vld [vmem:[%s22 + $0x98] sm:$0xff]
    %v2400 = vld [vmem:[%s22 + $0xa0] sm:$0xff]
    %v2401 = vld [vmem:[%s22 + $0xa8] sm:$0xff]
    %v2402 = vld [vmem:[%s22 + $0xb0] sm:$0xff]
    %v2403 = vld [vmem:[%s22 + $0xb8] sm:$0xff]
    %v2404 = vld [vmem:[%s22 + $0xc0] sm:$0xff]
    %v2405 = vld [vmem:[%s22 + $0xc8] sm:$0xff]
    %v2406 = vld [vmem:[%s22 + $0xd0] sm:$0xff]
    %v2407 = vld [vmem:[%s22 + $0xd8] sm:$0xff]
    %v2408 = vld [vmem:[%s22 + $0xe0] sm:$0xff]
    %v2409 = vld [vmem:[%s22 + $0xe8] sm:$0xff]
    %v2410 = vld [vmem:[%s22 + $0xf0] sm:$0xff]
    %v2411 = vld [vmem:[%s22 + $0xf8] sm:$0xff]
    %v2412 = vld [vmem:[%s22 + $0x100] sm:$0xff]
    %v2413 = vld [vmem:[%s22 + $0x108] sm:$0xff]
    %v2414 = vld [vmem:[%s22 + $0x110] sm:$0xff]
    %v2415 = vld [vmem:[%s22 + $0x118] sm:$0xff]
    %v2416 = vld [vmem:[%s22 + $0x120] sm:$0xff]
    %v2417 = vld [vmem:[%s22 + $0x128] sm:$0xff]
    %v2418 = vld [vmem:[%s22 + $0x130] sm:$0xff]
    %v2419 = vld [vmem:[%s22 + $0x138] sm:$0xff]
    %v2420 = vld [vmem:[%s22 + $0x140] sm:$0xff]
    %v2421 = vld [vmem:[%s22 + $0x148] sm:$0xff]
    %v2422 = vld [vmem:[%s22 + $0x150] sm:$0xff]
    %v2423 = vld [vmem:[%s22 + $0x158] sm:$0xff]
    %v2424 = vld [vmem:[%s22 + $0x160] sm:$0xff]
    %v2425 = vld [vmem:[%s22 + $0x168] sm:$0xff]
    %v2426 = vld [vmem:[%s22 + $0x170] sm:$0xff]
    %v2427 = vld [vmem:[%s22 + $0x178] sm:$0xff]
    %v2429 = vperm.slane %v2379, 0
    %v2430 = vperm.slane %v2379, 1
    %v2434 = vsel %vm2081, %v2377, 0
    %2436 = vmatpush.msra.mxu0 %v2410
    %2437 = vmatpush.msra.mxu0 %v2408
    %2438 = vmatpush.msra.mxu0 %v2406
    %2439 = vmatpush.msra.mxu0 %v2404
    %2440 = vmatpush.msra.mxu0 %v2402
    %2441 = vmatpush.msra.mxu0 %v2400
    %2442 = vmatpush.msra.mxu0 %v2398
    %2443 = vmatpush.msra.mxu0 %v2396
    %2444 = vmatpush.msra.mxu0 %v2394
    %2445 = vmatpush.msra.mxu0 %v2392
    %2446 = vmatpush.msra.mxu0 %v2390
    %2447 = vmatpush.msra.mxu0 %v2388
    %2448 = vmatpush.msra.mxu0 %v2386
    %2449 = vmatpush.msra.mxu0 %v2384
    %2450 = vmatpush.msra.mxu0 %v2382
    %2451 = vmatpush.msra.mxu0 %v2380
    %2452 = vmatmul.f32.gmra.mxu0 %v2376
    %v2453 = vpop.f32.mrf.mxu0
    %v2454 = vadd.f32 %v2429, %v2453
    %2455 = vdwg.mxu0
    %2456 = vmatpush.msra.mxu0 0.0
    %2457 = vmatpush.msra.mxu0 0.0
    %2458 = vmatpush.msra.mxu0 0.0
    %2459 = vmatpush.msra.mxu0 0.0
    %2460 = vmatpush.msra.mxu0 0.0
    %2461 = vmatpush.msra.mxu0 0.0
    %2462 = vmatpush.msra.mxu0 0.0
    %2463 = vmatpush.msra.mxu0 0.0
    %2464 = vmatpush.msra.mxu0 %v2426
    %2465 = vmatpush.msra.mxu0 %v2424
    %2466 = vmatpush.msra.mxu0 %v2422
    %2467 = vmatpush.msra.mxu0 %v2420
    %2468 = vmatpush.msra.mxu0 %v2418
    %2469 = vmatpush.msra.mxu0 %v2416
    %2470 = vmatpush.msra.mxu0 %v2414
    %2471 = vmatpush.msra.mxu0 %v2412
    %2472 = vmatmul.f32.gmra.mxu0 %v2434
    %v2473 = vpop.f32.mrf.mxu0
    %v2474 = vadd.f32 %v2454, %v2473
    %2475 = vdwg.mxu0
    %2476 = vmatpush.msra.mxu0 %v2411
    %2477 = vmatpush.msra.mxu0 %v2409
    %2478 = vmatpush.msra.mxu0 %v2407
    %2479 = vmatpush.msra.mxu0 %v2405
    %2480 = vmatpush.msra.mxu0 %v2403
    %2481 = vmatpush.msra.mxu0 %v2401
    %2482 = vmatpush.msra.mxu0 %v2399
    %2483 = vmatpush.msra.mxu0 %v2397
    %2484 = vmatpush.msra.mxu0 %v2395
    %2485 = vmatpush.msra.mxu0 %v2393
    %2486 = vmatpush.msra.mxu0 %v2391
    %2487 = vmatpush.msra.mxu0 %v2389
    %2488 = vmatpush.msra.mxu0 %v2387
    %2489 = vmatpush.msra.mxu0 %v2385
    %2490 = vmatpush.msra.mxu0 %v2383
    %2491 = vmatpush.msra.mxu0 %v2381
    %2492 = vmatmul.f32.gmra.mxu0 %v2376
    %v2493 = vpop.f32.mrf.mxu0
    %v2494 = vadd.f32 %v2430, %v2493
    %2495 = vdwg.mxu0
    %2496 = vmatpush.msra.mxu0 0.0
    %2497 = vmatpush.msra.mxu0 0.0
    %2498 = vmatpush.msra.mxu0 0.0
    %2499 = vmatpush.msra.mxu0 0.0
    %2500 = vmatpush.msra.mxu0 0.0
    %2501 = vmatpush.msra.mxu0 0.0
    %2502 = vmatpush.msra.mxu0 0.0
    %2503 = vmatpush.msra.mxu0 0.0
    %2504 = vmatpush.msra.mxu0 %v2427
    %2505 = vmatpush.msra.mxu0 %v2425
    %2506 = vmatpush.msra.mxu0 %v2423
    %2507 = vmatpush.msra.mxu0 %v2421
    %2508 = vmatpush.msra.mxu0 %v2419
    %2509 = vmatpush.msra.mxu0 %v2417
    %2510 = vmatpush.msra.mxu0 %v2415
    %2511 = vmatpush.msra.mxu0 %v2413
    %2512 = vmatmul.f32.gmra.mxu0 %v2434
    %v2513 = vpop.f32.mrf.mxu0
    %v2514 = vadd.f32 %v2494, %v2513
    %2515 = vdwg.mxu0
    %v2516 = vadd.f32 %v2474, %v2049
    %v2517 = vadd.f32 %v2514, %v2069
    %v2518 = vmul.f32 %v2516, 0.5
    %v2519 = vmul.f32 %v2517, 0.5
    %s2520 = scalar_lea.vmem %s9, 37
    %v2521 = vld [vmem:[%s2520] ss:$8 sm:$0x3]
    %s2522 = scalar_lea.vmem %s9, 38
    %v2523 = vld [vmem:[%s2522] ss:$8 sm:$0x3]
    %v2524 = vrot.slane %v2518, 4
    %v2525 = vadd.f32 %v2518, %v2524
    %v2526 = vrot.slane %v2525, 2
    %v2527 = vadd.f32 %v2525, %v2526
    %v2528 = vrot.slane %v2527, 1
    %v2529 = vadd.f32 %v2527, %v2528
    %v2530 = vsel %vm2081, %v2519, 0.0
    %v2531 = vrot.slane %v2530, 4
    %v2532 = vadd.f32 %v2530, %v2531
    %v2533 = vrot.slane %v2532, 2
    %v2534 = vadd.f32 %v2532, %v2533
    %v2535 = vrot.slane %v2534, 1
    %v2536 = vadd.f32 %v2534, %v2535
    %v2537 = vmul.f32 %v2529, %v171
    %v2538 = vmul.f32 %v2536, %v171
    %v2539 = vsub.f32 %v2518, %v2537
    %v2540 = vsub.f32 %v2519, %v2538
    %v2541 = vmul.f32 %v2539, %v2539
    %v2542 = vmul.f32 %v2540, %v2540
    %v2543 = vrot.slane %v2541, 4
    %v2544 = vadd.f32 %v2541, %v2543
    %v2545 = vrot.slane %v2544, 2
    %v2546 = vadd.f32 %v2544, %v2545
    %v2547 = vrot.slane %v2546, 1
    %v2548 = vadd.f32 %v2546, %v2547
    %v2549 = vsel %vm2081, %v2542, 0.0
    %v2550 = vrot.slane %v2549, 4
    %v2551 = vadd.f32 %v2549, %v2550
    %v2552 = vrot.slane %v2551, 2
    %v2553 = vadd.f32 %v2551, %v2552
    %v2554 = vrot.slane %v2553, 1
    %v2555 = vadd.f32 %v2553, %v2554
    %v2556 = vmul.f32 %v2548, %v171
    %v2557 = vmul.f32 %v2555, %v171
    %v2559 = vperm.slane %v2521, 0
    %v2560 = vperm.slane %v2521, 1
    %v2563 = vmul.f32 %v2559, %v2539
    %v2564 = vmul.f32 %v2560, %v2540
    %v2565 = vadd.f32 %v2556, 1e-05
    %v2566 = vadd.f32 %v2557, 1e-05
    %v2567 = vrsqrt.pop %v2565
    %v2568 = vmul.f32 %v2567, %v2565
    %v2569 = vmul.f32 %v2568, %v2567
    %v2570 = vmul.f32 0.5, %v2569
    %v2571 = vsub.f32 1.5, %v2570
    %v2572 = vmul.f32 %v2567, %v2571
    %vm2573 = vweird.f32 %v2565
    %vm2574 = vweird.f32 %v2567
    %vm2575 = vmor %vm2573, %vm2574
    %v2576 = vsel %vm2575, %v2567, %v2572
    %v2577 = vrsqrt.pop %v2566
    %v2578 = vmul.f32 %v2577, %v2566
    %v2579 = vmul.f32 %v2578, %v2577
    %v2580 = vmul.f32 0.5, %v2579
    %v2581 = vsub.f32 1.5, %v2580
    %v2582 = vmul.f32 %v2577, %v2581
    %vm2583 = vweird.f32 %v2566
    %vm2584 = vweird.f32 %v2577
    %vm2585 = vmor %vm2583, %vm2584
    %v2586 = vsel %vm2585, %v2577, %v2582
    %v2587 = vmul.f32 %v2563, %v2576
    %v2588 = vmul.f32 %v2564, %v2586
    %v2590 = vperm.slane %v2523, 0
    %v2591 = vperm.slane %v2523, 1
    %v2594 = vadd.f32 %v2587, %v2590
    %v2595 = vadd.f32 %v2588, %v2591
    %s2596 = sld [smem:[#allocation2 + $0x6]]
    %vm2597 = vcmp.ge.f32.partialorder %v2594, 0.0
    %vm2598 = vcmp.ge.f32.partialorder %v2595, 0.0
    %v2599 = vstv %s2596
    %v2600 = vmul.f32 %v2599, %v2594
    %v2601 = vmul.f32 %v2599, %v2595
    %v2602 = vsel %vm2597, %v2594, %v2600
    %v2603 = vsel %vm2598, %v2595, %v2601
    %s2604 = scalar_lea.vmem %s9, 39
    %v2605 = vld [vmem:[%s2604] ss:$8 sm:$0x3]
    %v2606 = vld [vmem:[%s23] sm:$0xff]
    %v2607 = vld [vmem:[%s23 + $0x8] sm:$0xff]
    %v2608 = vld [vmem:[%s23 + $0x10] sm:$0xff]
    %v2609 = vld [vmem:[%s23 + $0x18] sm:$0xff]
    %v2610 = vld [vmem:[%s23 + $0x20] sm:$0xff]
    %v2611 = vld [vmem:[%s23 + $0x28] sm:$0xff]
    %v2612 = vld [vmem:[%s23 + $0x30] sm:$0xff]
    %v2613 = vld [vmem:[%s23 + $0x38] sm:$0xff]
    %v2614 = vld [vmem:[%s23 + $0x40] sm:$0xff]
    %v2615 = vld [vmem:[%s23 + $0x48] sm:$0xff]
    %v2616 = vld [vmem:[%s23 + $0x50] sm:$0xff]
    %v2617 = vld [vmem:[%s23 + $0x58] sm:$0xff]
    %v2618 = vld [vmem:[%s23 + $0x60] sm:$0xff]
    %v2619 = vld [vmem:[%s23 + $0x68] sm:$0xff]
    %v2620 = vld [vmem:[%s23 + $0x70] sm:$0xff]
    %v2621 = vld [vmem:[%s23 + $0x78] sm:$0xff]
    %v2622 = vld [vmem:[%s23 + $0x80] sm:$0xff]
    %v2623 = vld [vmem:[%s23 + $0x88] sm:$0xff]
    %v2624 = vld [vmem:[%s23 + $0x90] sm:$0xff]
    %v2625 = vld [vmem:[%s23 + $0x98] sm:$0xff]
    %v2626 = vld [vmem:[%s23 + $0xa0] sm:$0xff]
    %v2627 = vld [vmem:[%s23 + $0xa8] sm:$0xff]
    %v2628 = vld [vmem:[%s23 + $0xb0] sm:$0xff]
    %v2629 = vld [vmem:[%s23 + $0xb8] sm:$0xff]
    %v2630 = vld [vmem:[%s23 + $0xc0] sm:$0xff]
    %v2631 = vld [vmem:[%s23 + $0xc8] sm:$0xff]
    %v2632 = vld [vmem:[%s23 + $0xd0] sm:$0xff]
    %v2633 = vld [vmem:[%s23 + $0xd8] sm:$0xff]
    %v2634 = vld [vmem:[%s23 + $0xe0] sm:$0xff]
    %v2635 = vld [vmem:[%s23 + $0xe8] sm:$0xff]
    %v2636 = vld [vmem:[%s23 + $0xf0] sm:$0xff]
    %v2637 = vld [vmem:[%s23 + $0xf8] sm:$0xff]
    %v2638 = vld [vmem:[%s23 + $0x100] sm:$0xff]
    %v2639 = vld [vmem:[%s23 + $0x108] sm:$0xff]
    %v2640 = vld [vmem:[%s23 + $0x110] sm:$0xff]
    %v2641 = vld [vmem:[%s23 + $0x118] sm:$0xff]
    %v2642 = vld [vmem:[%s23 + $0x120] sm:$0xff]
    %v2643 = vld [vmem:[%s23 + $0x128] sm:$0xff]
    %v2644 = vld [vmem:[%s23 + $0x130] sm:$0xff]
    %v2645 = vld [vmem:[%s23 + $0x138] sm:$0xff]
    %v2646 = vld [vmem:[%s23 + $0x140] sm:$0xff]
    %v2647 = vld [vmem:[%s23 + $0x148] sm:$0xff]
    %v2648 = vld [vmem:[%s23 + $0x150] sm:$0xff]
    %v2649 = vld [vmem:[%s23 + $0x158] sm:$0xff]
    %v2650 = vld [vmem:[%s23 + $0x160] sm:$0xff]
    %v2651 = vld [vmem:[%s23 + $0x168] sm:$0xff]
    %v2652 = vld [vmem:[%s23 + $0x170] sm:$0xff]
    %v2653 = vld [vmem:[%s23 + $0x178] sm:$0xff]
    %v2655 = vperm.slane %v2605, 0
    %v2656 = vperm.slane %v2605, 1
    %v2660 = vsel %vm2081, %v2603, 0
    %2662 = vmatpush.msra.mxu0 %v2636
    %2663 = vmatpush.msra.mxu0 %v2634
    %2664 = vmatpush.msra.mxu0 %v2632
    %2665 = vmatpush.msra.mxu0 %v2630
    %2666 = vmatpush.msra.mxu0 %v2628
    %2667 = vmatpush.msra.mxu0 %v2626
    %2668 = vmatpush.msra.mxu0 %v2624
    %2669 = vmatpush.msra.mxu0 %v2622
    %2670 = vmatpush.msra.mxu0 %v2620
    %2671 = vmatpush.msra.mxu0 %v2618
    %2672 = vmatpush.msra.mxu0 %v2616
    %2673 = vmatpush.msra.mxu0 %v2614
    %2674 = vmatpush.msra.mxu0 %v2612
    %2675 = vmatpush.msra.mxu0 %v2610
    %2676 = vmatpush.msra.mxu0 %v2608
    %2677 = vmatpush.msra.mxu0 %v2606
    %2678 = vmatmul.f32.gmra.mxu0 %v2602
    %v2679 = vpop.f32.mrf.mxu0
    %v2680 = vadd.f32 %v2655, %v2679
    %2681 = vdwg.mxu0
    %2682 = vmatpush.msra.mxu0 0.0
    %2683 = vmatpush.msra.mxu0 0.0
    %2684 = vmatpush.msra.mxu0 0.0
    %2685 = vmatpush.msra.mxu0 0.0
    %2686 = vmatpush.msra.mxu0 0.0
    %2687 = vmatpush.msra.mxu0 0.0
    %2688 = vmatpush.msra.mxu0 0.0
    %2689 = vmatpush.msra.mxu0 0.0
    %2690 = vmatpush.msra.mxu0 %v2652
    %2691 = vmatpush.msra.mxu0 %v2650
    %2692 = vmatpush.msra.mxu0 %v2648
    %2693 = vmatpush.msra.mxu0 %v2646
    %2694 = vmatpush.msra.mxu0 %v2644
    %2695 = vmatpush.msra.mxu0 %v2642
    %2696 = vmatpush.msra.mxu0 %v2640
    %2697 = vmatpush.msra.mxu0 %v2638
    %2698 = vmatmul.f32.gmra.mxu0 %v2660
    %v2699 = vpop.f32.mrf.mxu0
    %v2700 = vadd.f32 %v2680, %v2699
    %2701 = vdwg.mxu0
    %2702 = vmatpush.msra.mxu0 %v2637
    %2703 = vmatpush.msra.mxu0 %v2635
    %2704 = vmatpush.msra.mxu0 %v2633
    %2705 = vmatpush.msra.mxu0 %v2631
    %2706 = vmatpush.msra.mxu0 %v2629
    %2707 = vmatpush.msra.mxu0 %v2627
    %2708 = vmatpush.msra.mxu0 %v2625
    %2709 = vmatpush.msra.mxu0 %v2623
    %2710 = vmatpush.msra.mxu0 %v2621
    %2711 = vmatpush.msra.mxu0 %v2619
    %2712 = vmatpush.msra.mxu0 %v2617
    %2713 = vmatpush.msra.mxu0 %v2615
    %2714 = vmatpush.msra.mxu0 %v2613
    %2715 = vmatpush.msra.mxu0 %v2611
    %2716 = vmatpush.msra.mxu0 %v2609
    %2717 = vmatpush.msra.mxu0 %v2607
    %2718 = vmatmul.f32.gmra.mxu0 %v2602
    %v2719 = vpop.f32.mrf.mxu0
    %v2720 = vadd.f32 %v2656, %v2719
    %2721 = vdwg.mxu0
    %2722 = vmatpush.msra.mxu0 0.0
    %2723 = vmatpush.msra.mxu0 0.0
    %2724 = vmatpush.msra.mxu0 0.0
    %2725 = vmatpush.msra.mxu0 0.0
    %2726 = vmatpush.msra.mxu0 0.0
    %2727 = vmatpush.msra.mxu0 0.0
    %2728 = vmatpush.msra.mxu0 0.0
    %2729 = vmatpush.msra.mxu0 0.0
    %2730 = vmatpush.msra.mxu0 %v2653
    %2731 = vmatpush.msra.mxu0 %v2651
    %2732 = vmatpush.msra.mxu0 %v2649
    %2733 = vmatpush.msra.mxu0 %v2647
    %2734 = vmatpush.msra.mxu0 %v2645
    %2735 = vmatpush.msra.mxu0 %v2643
    %2736 = vmatpush.msra.mxu0 %v2641
    %2737 = vmatpush.msra.mxu0 %v2639
    %2738 = vmatmul.f32.gmra.mxu0 %v2660
    %v2739 = vpop.f32.mrf.mxu0
    %v2740 = vadd.f32 %v2720, %v2739
    %2741 = vdwg.mxu0
    %v2742 = vadd.f32 %v2700, %v2518
    %v2743 = vadd.f32 %v2740, %v2519
    %v2744 = vmul.f32 %v2742, 0.5
    %v2745 = vmul.f32 %v2743, 0.5
    %s2746 = scalar_lea.vmem %s9, 48
    %v2747 = vld [vmem:[%s2746] ss:$8 sm:$0x3]
    %s2748 = scalar_lea.vmem %s9, 49
    %v2749 = vld [vmem:[%s2748] ss:$8 sm:$0x3]
    %v2750 = vrot.slane %v2744, 4
    %v2751 = vadd.f32 %v2744, %v2750
    %v2752 = vrot.slane %v2751, 2
    %v2753 = vadd.f32 %v2751, %v2752
    %v2754 = vrot.slane %v2753, 1
    %v2755 = vadd.f32 %v2753, %v2754
    %v2756 = vsel %vm2081, %v2745, 0.0
    %v2757 = vrot.slane %v2756, 4
    %v2758 = vadd.f32 %v2756, %v2757
    %v2759 = vrot.slane %v2758, 2
    %v2760 = vadd.f32 %v2758, %v2759
    %v2761 = vrot.slane %v2760, 1
    %v2762 = vadd.f32 %v2760, %v2761
    %v2763 = vmul.f32 %v2755, %v171
    %v2764 = vmul.f32 %v2762, %v171
    %v2765 = vsub.f32 %v2744, %v2763
    %v2766 = vsub.f32 %v2745, %v2764
    %v2767 = vmul.f32 %v2765, %v2765
    %v2768 = vmul.f32 %v2766, %v2766
    %v2769 = vrot.slane %v2767, 4
    %v2770 = vadd.f32 %v2767, %v2769
    %v2771 = vrot.slane %v2770, 2
    %v2772 = vadd.f32 %v2770, %v2771
    %v2773 = vrot.slane %v2772, 1
    %v2774 = vadd.f32 %v2772, %v2773
    %v2775 = vsel %vm2081, %v2768, 0.0
    %v2776 = vrot.slane %v2775, 4
    %v2777 = vadd.f32 %v2775, %v2776
    %v2778 = vrot.slane %v2777, 2
    %v2779 = vadd.f32 %v2777, %v2778
    %v2780 = vrot.slane %v2779, 1
    %v2781 = vadd.f32 %v2779, %v2780
    %v2782 = vmul.f32 %v2774, %v171
    %v2783 = vmul.f32 %v2781, %v171
    %v2785 = vperm.slane %v2747, 0
    %v2786 = vperm.slane %v2747, 1
    %v2789 = vmul.f32 %v2785, %v2765
    %v2790 = vmul.f32 %v2786, %v2766
    %v2791 = vadd.f32 %v2782, 1e-05
    %v2792 = vadd.f32 %v2783, 1e-05
    %v2793 = vrsqrt.pop %v2791
    %v2794 = vmul.f32 %v2793, %v2791
    %v2795 = vmul.f32 %v2794, %v2793
    %v2796 = vmul.f32 0.5, %v2795
    %v2797 = vsub.f32 1.5, %v2796
    %v2798 = vmul.f32 %v2793, %v2797
    %vm2799 = vweird.f32 %v2791
    %vm2800 = vweird.f32 %v2793
    %vm2801 = vmor %vm2799, %vm2800
    %v2802 = vsel %vm2801, %v2793, %v2798
    %v2803 = vrsqrt.pop %v2792
    %v2804 = vmul.f32 %v2803, %v2792
    %v2805 = vmul.f32 %v2804, %v2803
    %v2806 = vmul.f32 0.5, %v2805
    %v2807 = vsub.f32 1.5, %v2806
    %v2808 = vmul.f32 %v2803, %v2807
    %vm2809 = vweird.f32 %v2792
    %vm2810 = vweird.f32 %v2803
    %vm2811 = vmor %vm2809, %vm2810
    %v2812 = vsel %vm2811, %v2803, %v2808
    %v2813 = vmul.f32 %v2789, %v2802
    %v2814 = vmul.f32 %v2790, %v2812
    %v2816 = vperm.slane %v2749, 0
    %v2817 = vperm.slane %v2749, 1
    %v2820 = vadd.f32 %v2813, %v2816
    %v2821 = vadd.f32 %v2814, %v2817
    %s2822 = sld [smem:[#allocation2 + $0x7]]
    %vm2823 = vcmp.ge.f32.partialorder %v2820, 0.0
    %vm2824 = vcmp.ge.f32.partialorder %v2821, 0.0
    %v2825 = vstv %s2822
    %v2826 = vmul.f32 %v2825, %v2820
    %v2827 = vmul.f32 %v2825, %v2821
    %v2828 = vsel %vm2823, %v2820, %v2826
    %v2829 = vsel %vm2824, %v2821, %v2827
    %v2830 = vld [vmem:[%s9 + $0x15] ss:$0 sm:$0xff]
    %v2831 = vld [vmem:[%s24] sm:$0xff]
    %v2832 = vld [vmem:[%s24 + $0x8] sm:$0xff]
    %v2833 = vld [vmem:[%s24 + $0x10] sm:$0xff]
    %v2834 = vld [vmem:[%s24 + $0x18] sm:$0xff]
    %v2835 = vld [vmem:[%s24 + $0x20] sm:$0xff]
    %v2836 = vld [vmem:[%s24 + $0x28] sm:$0xff]
    %v2837 = vld [vmem:[%s24 + $0x30] sm:$0xff]
    %v2838 = vld [vmem:[%s24 + $0x38] sm:$0xff]
    %v2839 = vld [vmem:[%s24 + $0x40] sm:$0xff]
    %v2840 = vld [vmem:[%s24 + $0x48] sm:$0xff]
    %v2841 = vld [vmem:[%s24 + $0x50] sm:$0xff]
    %v2842 = vld [vmem:[%s24 + $0x58] sm:$0xff]
    %v2843 = vld [vmem:[%s24 + $0x60] sm:$0xff]
    %v2844 = vld [vmem:[%s24 + $0x68] sm:$0xff]
    %v2845 = vld [vmem:[%s24 + $0x70] sm:$0xff]
    %v2846 = vld [vmem:[%s24 + $0x78] sm:$0xff]
    %v2847 = vld [vmem:[%s24 + $0x80] sm:$0xff]
    %v2848 = vld [vmem:[%s24 + $0x88] sm:$0xff]
    %v2849 = vld [vmem:[%s24 + $0x90] sm:$0xff]
    %v2850 = vld [vmem:[%s24 + $0x98] sm:$0xff]
    %v2851 = vld [vmem:[%s24 + $0xa0] sm:$0xff]
    %v2852 = vld [vmem:[%s24 + $0xa8] sm:$0xff]
    %v2853 = vld [vmem:[%s24 + $0xb0] sm:$0xff]
    %v2854 = vld [vmem:[%s24 + $0xb8] sm:$0xff]
    %v2856 = vsel %vm2081, %v2829, 0
    %2858 = vmatpush.msra.mxu0 %v2846
    %2859 = vmatpush.msra.mxu0 %v2845
    %2860 = vmatpush.msra.mxu0 %v2844
    %2861 = vmatpush.msra.mxu0 %v2843
    %2862 = vmatpush.msra.mxu0 %v2842
    %2863 = vmatpush.msra.mxu0 %v2841
    %2864 = vmatpush.msra.mxu0 %v2840
    %2865 = vmatpush.msra.mxu0 %v2839
    %2866 = vmatpush.msra.mxu0 %v2838
    %2867 = vmatpush.msra.mxu0 %v2837
    %2868 = vmatpush.msra.mxu0 %v2836
    %2869 = vmatpush.msra.mxu0 %v2835
    %2870 = vmatpush.msra.mxu0 %v2834
    %2871 = vmatpush.msra.mxu0 %v2833
    %2872 = vmatpush.msra.mxu0 %v2832
    %2873 = vmatpush.msra.mxu0 %v2831
    %2874 = vmatmul.f32.gmra.mxu0 %v2828
    %v2875 = vpop.f32.mrf.mxu0
    %v2876 = vadd.f32 %v2830, %v2875
    %2877 = vdwg.mxu0
    %2878 = vmatpush.msra.mxu0 0.0
    %2879 = vmatpush.msra.mxu0 0.0
    %2880 = vmatpush.msra.mxu0 0.0
    %2881 = vmatpush.msra.mxu0 0.0
    %2882 = vmatpush.msra.mxu0 0.0
    %2883 = vmatpush.msra.mxu0 0.0
    %2884 = vmatpush.msra.mxu0 0.0
    %2885 = vmatpush.msra.mxu0 0.0
    %2886 = vmatpush.msra.mxu0 %v2854
    %2887 = vmatpush.msra.mxu0 %v2853
    %2888 = vmatpush.msra.mxu0 %v2852
    %2889 = vmatpush.msra.mxu0 %v2851
    %2890 = vmatpush.msra.mxu0 %v2850
    %2891 = vmatpush.msra.mxu0 %v2849
    %2892 = vmatpush.msra.mxu0 %v2848
    %2893 = vmatpush.msra.mxu0 %v2847
    %2894 = vmatmul.f32.gmra.mxu0 %v2856
    %v2895 = vpop.f32.mrf.mxu0
    %v2896 = vadd.f32 %v2876, %v2895
    %2897 = vdwg.mxu0
    %2898 = vst.msk [vmem:[#allocation5] sm:$0xff] %vm132, %v2896
    // Predicated region
    $region106: #{drug_encoder_forward.1} parent=1 // pred_check
      _
    $region107: #{drug_encoder_forward.1} parent=1 // pred_check_branch
      %2900 = sbr.rel (0) target = $region109
    $region108: #{drug_encoder_forward.1} parent=1 // pred_region
      %2902 = vsyncadd [#allocation3], 0
      %s2904 = sshll.u32 [#allocation5], 4
      %s2905 = int_to_ptr.vmem [resolvable:$true] %s2904
      %s2906 = sshll.u32 %s25, 4
      %s2907 = int_to_ptr.hbm [resolvable:$true] %s2906
      %2909 = dma.vmem_to_hbm [thread:$0]  %s2905, 128, %s2907, [#allocation3]
    $region109: #{drug_encoder_forward.1} parent=1 // pred_fallthru
      _
    // Predicated region
    $region110: #{drug_encoder_forward.1} parent=1 // pred_check
      _
    $region111: #{drug_encoder_forward.1} parent=1 // pred_check_branch
      %2911 = sbr.rel (0) target = $region113
    $region112: #{drug_encoder_forward.1} parent=1 // pred_region
      %2913 = dma.done [#allocation3], 128
    $region113: #{drug_encoder_forward.1} parent=1 // pred_fallthru
      _
    %2914 = vsyncpa [#allocation3], 1
    %2915 = vsyncpa [#allocation4], 1

</llo_original>
